<compile_context>
chip_gen: v6e
topology: v6e:2x2x1
jax: 0.10.0
libtpu: 0.0.40
codegen_flags: <defaults>
</compile_context>

<pallas_src>
import numpy as np
import jax
import jax.numpy as jnp
from jax import lax
from jax.experimental import pallas as pl
from jax.experimental.pallas import tpu as pltpu

INV_SQRT2 = 0.7071067811865476
MASK_NEG = -1e30  # large-negative (finite) mask for cross-head Gram entries


def _gelu(y):
    # exact (erf) GELU, matching torch nn.GELU(approximate='none'); f32 math
    return 0.5 * y * (1.0 + lax.erf(y * INV_SQRT2))


def _mxu(a, b):
    # MXU matmul: bf16 operands, f32 accumulation
    return jnp.dot(a.astype(jnp.bfloat16), b.astype(jnp.bfloat16),
                   preferred_element_type=jnp.float32)


# ---------------------------------------------------------------------------
# Kernel 1: fused qkv projection + channel attention (+ pooled attended, + v)
# ---------------------------------------------------------------------------
def _qkv_channel_attn_kernel(x_ref, wq_ref, wk_ref, wv_ref, bq_ref, bk_ref, bv_ref,
                             temp_ref, mask_ref, att_ref, pooled_ref, v_ref):
    f32 = jnp.float32
    x = x_ref[...].astype(jnp.bfloat16)                                   # (N, C)

    q = _mxu(x, wq_ref[...]) + bq_ref[...].astype(f32)                    # (N, C)
    k = _mxu(x, wk_ref[...]) + bk_ref[...].astype(f32)
    v = _mxu(x, wv_ref[...]) + bv_ref[...].astype(f32)
    v_ref[...] = v.astype(v_ref.dtype)          # value image feeds the dwconv branch

    # F.normalize(dim=-1) of the transposed q/k == column-wise L2 norm over N here
    qn = q / jnp.maximum(jnp.sqrt(jnp.sum(q * q, axis=0, keepdims=True)), 1e-12)
    kn = k / jnp.maximum(jnp.sqrt(jnp.sum(k * k, axis=0, keepdims=True)), 1e-12)
    qn = qn * temp_ref[...].astype(f32)         # per-head temperature folded into Gram rows

    # channel Gram: s[c, c'] = sum_n qn[n, c] * kn[n, c']   (all heads batched, lane-dense)
    s = jnp.einsum('nc,nd->cd', qn.astype(jnp.bfloat16), kn.astype(jnp.bfloat16),
                   preferred_element_type=f32)                            # (C, C)
    s = s + mask_ref[...].astype(f32)           # -1e30 across heads -> per-head softmax
    s = s - jnp.max(s, axis=-1, keepdims=True)
    p = jnp.exp(s)
    p = p * pl.reciprocal(jnp.sum(p, axis=-1, keepdims=True), approx=True)

    # attened[n, c] = sum_{c'} p[c, c'] * v[n, c']  (== (attn @ v) in PyTorch layout)
    out = jnp.einsum('nd,cd->nc', v.astype(jnp.bfloat16), p.astype(jnp.bfloat16),
                     preferred_element_type=f32)                          # (N, C)
    att_ref[...] = out.astype(att_ref.dtype)
    # AdaptiveAvgPool2d(1) of the attended branch, fused here (feeds channel gate)
    pooled_ref[...] = jnp.mean(out, axis=0, keepdims=True).astype(pooled_ref.dtype)


def qkv_channel_attention_pallas(x, wq, wk, wv, bq, bk, bv, temp_vec, head_mask):
    """x: (B, N, C) -> (attened (B,N,C), pooled (B,1,C), v (B,N,C))."""
    B, N, C = x.shape
    tok = lambda b: (b, 0, 0)
    w2d = lambda b: (0, 0)
    # TODO(synk): for very large N the (N, C) per-batch block should be tiled over N
    # with a two-pass norm/Gram accumulation; not needed at these sizes.
    return pl.pallas_call(
        _qkv_channel_attn_kernel,
        out_shape=(jax.ShapeDtypeStruct((B, N, C), x.dtype),      # attened_x
                   jax.ShapeDtypeStruct((B, 1, C), jnp.float32),  # spatial mean of attened_x
                   jax.ShapeDtypeStruct((B, N, C), x.dtype)),     # v (conv branch)
        grid_spec=pltpu.PrefetchScalarGridSpec(
            num_scalar_prefetch=0,
            grid=(B,),
            in_specs=[
                pl.BlockSpec((pl.Squeezed(), N, C), tok),
                pl.BlockSpec((C, C), w2d), pl.BlockSpec((C, C), w2d), pl.BlockSpec((C, C), w2d),
                pl.BlockSpec((1, C), w2d), pl.BlockSpec((1, C), w2d), pl.BlockSpec((1, C), w2d),
                pl.BlockSpec((1, C), w2d),
                pl.BlockSpec((C, C), w2d),
            ],
            out_specs=(pl.BlockSpec((pl.Squeezed(), N, C), tok),
                       pl.BlockSpec((pl.Squeezed(), 1, C), tok),
                       pl.BlockSpec((pl.Squeezed(), N, C), tok)),
        ),
        compiler_params=pltpu.CompilerParams(
            dimension_semantics=("parallel",),
            vmem_limit_bytes=32 * 1024 * 1024),
    )(x, wq, wk, wv, bq, bk, bv, temp_vec, head_mask)


# ---------------------------------------------------------------------------
# Kernel 2: depthwise 3x3 conv + folded eval-mode BN + exact GELU (NHWC)
# ---------------------------------------------------------------------------
def _dwconv_bn_gelu_kernel(xp_ref, w_ref, b_ref, o_ref):
    Ho, Wo, C = o_ref.shape
    w = w_ref[...].astype(jnp.float32)                      # (3, 3, C)
    acc = jnp.zeros((Ho, Wo, C), jnp.float32)
    for ky in range(3):                                     # 3 row-band loads (major-dim offset)
        band = xp_ref[ky:ky + Ho, :, :].astype(jnp.float32)  # (Ho, Wo+2, C)
        for kx in range(3):                                 # kx shift = static sublane slice
            acc = acc + band[:, kx:kx + Wo, :] * w[ky, kx, :]
    y = acc + b_ref[...].astype(jnp.float32)                # folded BN bias
    o_ref[...] = _gelu(y).astype(o_ref.dtype)


def dwconv_bn_gelu_pallas(v_img, w, b):
    """v_img: (B, H, W, C); w: (3,3,C) depthwise weight (BN folded); b: (1,1,C)."""
    B, H, W, C = v_img.shape
    xp = jnp.pad(v_img, ((0, 0), (1, 1), (1, 1), (0, 0)))
    return pl.pallas_call(
        _dwconv_bn_gelu_kernel,
        out_shape=jax.ShapeDtypeStruct((B, H, W, C), v_img.dtype),
        grid_spec=pltpu.PrefetchScalarGridSpec(
            num_scalar_prefetch=0,
            grid=(B,),
            in_specs=[
                pl.BlockSpec((pl.Squeezed(), H + 2, W + 2, C), lambda b_: (b_, 0, 0, 0)),
                pl.BlockSpec((3, 3, C), lambda b_: (0, 0, 0)),
                pl.BlockSpec((1, 1, C), lambda b_: (0, 0, 0)),
            ],
            out_specs=pl.BlockSpec((pl.Squeezed(), H, W, C), lambda b_: (b_, 0, 0, 0)),
        ),
        compiler_params=pltpu.CompilerParams(dimension_semantics=("parallel",)),
    )(xp, w, b)


# ---------------------------------------------------------------------------
# Kernel 3: channel/spatial interaction gates + cross-gated fusion + projection
# ---------------------------------------------------------------------------
def _combine_proj_kernel(a_ref, cv_ref, pooled_ref,
                         ci_w1_ref, ci_b1_ref, ci_w2_ref, ci_b2_ref,
                         si_w1_ref, si_b1_ref, si_w2r_ref, si_b2_ref,
                         pw_ref, pb_ref, o_ref):
    f32 = jnp.float32
    a = a_ref[...].astype(f32)                 # (tl, C) channel-attention branch
    cv = cv_ref[...].astype(f32)               # (tl, C) dwconv branch (post BN+GELU)

    # channel_interaction(avgpool(attened_x)): 1x1 -> BN(folded) -> GELU -> 1x1 -> sigmoid
    h = _gelu(_mxu(pooled_ref[...], ci_w1_ref[...]) + ci_b1_ref[...].astype(f32))
    cm = jax.nn.sigmoid(_mxu(h, ci_w2_ref[...]) + ci_b2_ref[...].astype(f32))       # (1, C)

    # spatial_interaction(conv_x): 1x1 -> BN(folded) -> GELU -> 1x1 -> sigmoid
    hs = _gelu(_mxu(cv, si_w1_ref[...]) + si_b1_ref[...].astype(f32))               # (tl, C/16)
    sm = jnp.sum(hs * si_w2r_ref[...].astype(f32), axis=-1, keepdims=True)          # (tl, 1)
    sm = jax.nn.sigmoid(sm + si_b2_ref[...].astype(f32))

    # cross-gated fusion (attn branch gated spatially, conv branch gated channel-wise) + proj
    y = a * sm + cv * cm
    o_ref[...] = (_mxu(y, pw_ref[...]) + pb_ref[...].astype(f32)).astype(o_ref.dtype)


def combine_proj_pallas(attened_x, conv_x, pooled_att, params, tile_l=128):
    B, L, C = attened_x.shape
    tl = tile_l if (L % tile_l == 0) else L
    C8 = params['ci_w1'].shape[1]
    C16 = params['si_w1'].shape[1]
    row = lambda b, i: (b, i, 0)
    bat = lambda b, i: (b, 0, 0)
    cst = lambda b, i: (0, 0)
    return pl.pallas_call(
        _combine_proj_kernel,
        out_shape=jax.ShapeDtypeStruct((B, L, C), attened_x.dtype),
        grid_spec=pltpu.PrefetchScalarGridSpec(
            num_scalar_prefetch=0,
            grid=(B, L // tl),
            in_specs=[
                pl.BlockSpec((pl.Squeezed(), tl, C), row),
                pl.BlockSpec((pl.Squeezed(), tl, C), row),
                pl.BlockSpec((pl.Squeezed(), 1, C), bat),
                pl.BlockSpec((C, C8), cst), pl.BlockSpec((1, C8), cst),
                pl.BlockSpec((C8, C), cst), pl.BlockSpec((1, C), cst),
                pl.BlockSpec((C, C16), cst), pl.BlockSpec((1, C16), cst),
                pl.BlockSpec((1, C16), cst), pl.BlockSpec((1, 1), cst),
                pl.BlockSpec((C, C), cst), pl.BlockSpec((1, C), cst),
            ],
            out_specs=pl.BlockSpec((pl.Squeezed(), tl, C), row),
        ),
        compiler_params=pltpu.CompilerParams(
            dimension_semantics=("parallel", "parallel"),
            vmem_limit_bytes=32 * 1024 * 1024),
    )(attened_x, conv_x, pooled_att,
      params['ci_w1'], params['ci_b1'], params['ci_w2'], params['ci_b2'],
      params['si_w1'], params['si_b1'], params['si_w2_row'], params['si_b2'],
      params['w_proj'], params['b_proj'])


# ---------------------------------------------------------------------------
# Parameters (eval-mode: BatchNorm running stats folded into the conv weights)
# ---------------------------------------------------------------------------
def _w(key, shape, scale=0.02):
    return scale * jax.random.normal(key, shape, dtype=jnp.float32)


def fold_bn(w, b, gamma, beta, mean, var, eps=1e-5):
    """Fold eval-mode BatchNorm (over the last / output-channel axis of w) into (w, b)."""
    s = gamma / jnp.sqrt(var + eps)
    return w * s, b * s + beta - mean * s


def init_params(key, C, num_heads, qkv_bias=True):
    assert C % num_heads == 0
    hd = C // num_heads
    ks = iter(jax.random.split(key, 40))

    def bn_stats(n):
        return (1.0 + 0.1 * jax.random.normal(next(ks), (n,)),          # gamma
                0.05 * jax.random.normal(next(ks), (n,)),                # beta
                0.05 * jax.random.normal(next(ks), (n,)),                # running_mean
                1.0 + 0.1 * jnp.abs(jax.random.normal(next(ks), (n,))))  # running_var

    p = {}
    # qkv (columns [q | k | v] of nn.Linear(dim, 3*dim)) and output projection
    p['wq'] = _w(next(ks), (C, C)); p['wk'] = _w(next(ks), (C, C)); p['wv'] = _w(next(ks), (C, C))
    if qkv_bias:
        p['bq'] = _w(next(ks), (1, C)); p['bk'] = _w(next(ks), (1, C)); p['bv'] = _w(next(ks), (1, C))
    else:
        p['bq'] = jnp.zeros((1, C), jnp.float32)
        p['bk'] = jnp.zeros((1, C), jnp.float32)
        p['bv'] = jnp.zeros((1, C), jnp.float32)
    p['w_proj'] = _w(next(ks), (C, C))
    p['b_proj'] = _w(next(ks), (1, C))

    # learnable per-head temperature (torch init = ones; small noise to exercise the path)
    temp_heads = 1.0 + 0.1 * jax.random.normal(next(ks), (num_heads,))
    p['temp_vec'] = jnp.repeat(temp_heads, hd).reshape(1, C).astype(jnp.float32)

    # block-diagonal per-head mask for the (C x C) channel-Gram softmax
    head_id = np.repeat(np.arange(num_heads), hd)
    p['head_mask'] = jnp.asarray(
        np.where(head_id[:, None] == head_id[None, :], 0.0, MASK_NEG), dtype=jnp.float32)

    # depthwise 3x3 conv + folded eval-mode BN
    dw_w = 0.1 * jax.random.normal(next(ks), (3, 3, C))
    dw_b = 0.02 * jax.random.normal(next(ks), (C,))
    g, b_, m, v = bn_stats(C)
    dw_w, dw_b = fold_bn(dw_w, dw_b, g, b_, m, v)
    p['dw_w'] = dw_w
    p['dw_b'] = dw_b.reshape(1, 1, C)

    # channel interaction: C -> C/8 (BN folded, GELU) -> C
    w1 = _w(next(ks), (C, C // 8)); b1 = 0.02 * jax.random.normal(next(ks), (C // 8,))
    g, b_, m, v = bn_stats(C // 8)
    w1, b1 = fold_bn(w1, b1, g, b_, m, v)
    p['ci_w1'] = w1; p['ci_b1'] = b1.reshape(1, C // 8)
    p['ci_w2'] = _w(next(ks), (C // 8, C)); p['ci_b2'] = _w(next(ks), (1, C))

    # spatial interaction: C -> C/16 (BN folded, GELU) -> 1
    w1 = _w(next(ks), (C, C // 16)); b1 = 0.02 * jax.random.normal(next(ks), (C // 16,))
    g, b_, m, v = bn_stats(C // 16)
    w1, b1 = fold_bn(w1, b1, g, b_, m, v)
    p['si_w1'] = w1; p['si_b1'] = b1.reshape(1, C // 16)
    p['si_w2_row'] = _w(next(ks), (1, C // 16))   # (C/16 -> 1) conv stored as a row vector
    p['si_b2'] = _w(next(ks), (1, 1))
    return p


# ---------------------------------------------------------------------------
# Full forward pass
# ---------------------------------------------------------------------------
def adaptive_channel_attention_forward(params, x, H, W):
    """x: (B, H*W, C) -> (B, H*W, C).  Eval mode (folded BN); dropouts are rate 0."""
    # TODO(synk): training-mode BatchNorm (batch statistics) is not implemented;
    # eval-mode running stats are folded into the preceding conv weights.
    B, L, C = x.shape
    assert L == H * W

    # fused qkv projection + per-head channel attention (+ pooled attended, + value tensor)
    attened_x, pooled_att, v_seq = qkv_channel_attention_pallas(
        x, params['wq'], params['wk'], params['wv'],
        params['bq'], params['bk'], params['bv'],
        params['temp_vec'], params['head_mask'])

    # conv branch: depthwise 3x3 + folded BN + GELU on the value image (NHWC)
    conv_x = dwconv_bn_gelu_pallas(v_seq.reshape(B, H, W, C), params['dw_w'], params['dw_b'])

    # fused interaction gates + cross-gated sum + output projection
    return combine_proj_pallas(attened_x, conv_x.reshape(B, L, C), pooled_att, params)


if __name__ == "__main__":
    B, H, W, C = 2, 16, 16, 64
    num_heads = 4

    key = jax.random.PRNGKey(0)
    k_param, k_x = jax.random.split(key)
    params = init_params(k_param, C, num_heads, qkv_bias=True)
    x = jax.random.normal(k_x, (B, H * W, C), dtype=jnp.float32)

    fwd = jax.jit(adaptive_channel_attention_forward, static_argnames=("H", "W"))
    out = fwd(params, x, H=H, W=W)
    out = jax.block_until_ready(out)

    assert out.shape == (B, H * W, C)
    assert bool(jnp.all(jnp.isfinite(out)))
    print("KERNEL_OK")
</pallas_src>

<mosaic_0001>
module attributes {stable_mosaic.version = 11 : i64} {
  func.func @_dwconv_bn_gelu_kernel(%arg0: i32, %arg1: memref<1x18x18x64xf32, #tpu.memory_space<vmem>>, %arg2: memref<3x3x64xf32, #tpu.memory_space<vmem>>, %arg3: memref<1x1x64xf32, #tpu.memory_space<vmem>>, %arg4: memref<1x16x16x64xf32, #tpu.memory_space<vmem>>) attributes {dimension_semantics = [#tpu.dimension_semantics<parallel>], iteration_bounds = array<i64: 2>, scalar_prefetch = 0 : i64, scratch_operands = 0 : i64, tpu.core_type = #tpu.core_type<tc>, window_params = [{transform_indices = @transform_0, window_bounds = array<i64: 1, 18, 18, 64>}, {pipeline_mode = #tpu.pipeline_mode<synchronous>, transform_indices = @transform_1, window_bounds = array<i64: 3, 3, 64>}, {pipeline_mode = #tpu.pipeline_mode<synchronous>, transform_indices = @transform_2, window_bounds = array<i64: 1, 1, 64>}, {transform_indices = @transform_3, window_bounds = array<i64: 1, 16, 16, 64>}]} {
    %c0 = arith.constant 0 : index
    %c0_0 = arith.constant 0 : index
    %c0_1 = arith.constant 0 : index
    %0 = vector.load %arg2[%c0, %c0_0, %c0_1] : memref<3x3x64xf32, #tpu.memory_space<vmem>>, vector<3x3x64xf32>
    %cst = arith.constant 0.000000e+00 : f32
    %1 = vector.broadcast %cst : f32 to vector<16x16x64xf32>
    %c0_2 = arith.constant 0 : index
    %c0_3 = arith.constant 0 : index
    %c0_4 = arith.constant 0 : index
    %c0_5 = arith.constant 0 : index
    %2 = vector.load %arg1[%c0_2, %c0_3, %c0_4, %c0_5] : memref<1x18x18x64xf32, #tpu.memory_space<vmem>>, vector<1x16x18x64xf32>
    %3 = vector.shape_cast %2 : vector<1x16x18x64xf32> to vector<16x18x64xf32>
    %4 = vector.extract_strided_slice %3 {offsets = [0, 0, 0], sizes = [16, 16, 64], strides = [1, 1, 1]} : vector<16x18x64xf32> to vector<16x16x64xf32>
    %5 = vector.extract_strided_slice %0 {offsets = [0, 0, 0], sizes = [1, 1, 64], strides = [1, 1, 1]} : vector<3x3x64xf32> to vector<1x1x64xf32>
    %6 = vector.shape_cast %5 : vector<1x1x64xf32> to vector<64xf32>
    %7 = vector.shape_cast %6 : vector<64xf32> to vector<1x1x64xf32>
    %8 = vector.broadcast %7 : vector<1x1x64xf32> to vector<16x16x64xf32>
    %9 = arith.mulf %4, %8 : vector<16x16x64xf32>
    %10 = arith.addf %1, %9 : vector<16x16x64xf32>
    %11 = vector.extract_strided_slice %3 {offsets = [0, 1, 0], sizes = [16, 16, 64], strides = [1, 1, 1]} : vector<16x18x64xf32> to vector<16x16x64xf32>
    %12 = vector.extract_strided_slice %0 {offsets = [0, 1, 0], sizes = [1, 1, 64], strides = [1, 1, 1]} : vector<3x3x64xf32> to vector<1x1x64xf32>
    %13 = vector.shape_cast %12 : vector<1x1x64xf32> to vector<64xf32>
    %14 = vector.shape_cast %13 : vector<64xf32> to vector<1x1x64xf32>
    %15 = vector.broadcast %14 : vector<1x1x64xf32> to vector<16x16x64xf32>
    %16 = arith.mulf %11, %15 : vector<16x16x64xf32>
    %17 = arith.addf %10, %16 : vector<16x16x64xf32>
    %18 = vector.extract_strided_slice %3 {offsets = [0, 2, 0], sizes = [16, 16, 64], strides = [1, 1, 1]} : vector<16x18x64xf32> to vector<16x16x64xf32>
    %19 = vector.extract_strided_slice %0 {offsets = [0, 2, 0], sizes = [1, 1, 64], strides = [1, 1, 1]} : vector<3x3x64xf32> to vector<1x1x64xf32>
    %20 = vector.shape_cast %19 : vector<1x1x64xf32> to vector<64xf32>
    %21 = vector.shape_cast %20 : vector<64xf32> to vector<1x1x64xf32>
    %22 = vector.broadcast %21 : vector<1x1x64xf32> to vector<16x16x64xf32>
    %23 = arith.mulf %18, %22 : vector<16x16x64xf32>
    %24 = arith.addf %17, %23 : vector<16x16x64xf32>
    %c0_6 = arith.constant 0 : index
    %c1 = arith.constant 1 : index
    %c0_7 = arith.constant 0 : index
    %c0_8 = arith.constant 0 : index
    %25 = vector.load %arg1[%c0_6, %c1, %c0_7, %c0_8] : memref<1x18x18x64xf32, #tpu.memory_space<vmem>>, vector<1x16x18x64xf32>
    %26 = vector.shape_cast %25 : vector<1x16x18x64xf32> to vector<16x18x64xf32>
    %27 = vector.extract_strided_slice %26 {offsets = [0, 0, 0], sizes = [16, 16, 64], strides = [1, 1, 1]} : vector<16x18x64xf32> to vector<16x16x64xf32>
    %28 = vector.extract_strided_slice %0 {offsets = [1, 0, 0], sizes = [1, 1, 64], strides = [1, 1, 1]} : vector<3x3x64xf32> to vector<1x1x64xf32>
    %29 = vector.shape_cast %28 : vector<1x1x64xf32> to vector<64xf32>
    %30 = vector.shape_cast %29 : vector<64xf32> to vector<1x1x64xf32>
    %31 = vector.broadcast %30 : vector<1x1x64xf32> to vector<16x16x64xf32>
    %32 = arith.mulf %27, %31 : vector<16x16x64xf32>
    %33 = arith.addf %24, %32 : vector<16x16x64xf32>
    %34 = vector.extract_strided_slice %26 {offsets = [0, 1, 0], sizes = [16, 16, 64], strides = [1, 1, 1]} : vector<16x18x64xf32> to vector<16x16x64xf32>
    %35 = vector.extract_strided_slice %0 {offsets = [1, 1, 0], sizes = [1, 1, 64], strides = [1, 1, 1]} : vector<3x3x64xf32> to vector<1x1x64xf32>
    %36 = vector.shape_cast %35 : vector<1x1x64xf32> to vector<64xf32>
    %37 = vector.shape_cast %36 : vector<64xf32> to vector<1x1x64xf32>
    %38 = vector.broadcast %37 : vector<1x1x64xf32> to vector<16x16x64xf32>
    %39 = arith.mulf %34, %38 : vector<16x16x64xf32>
    %40 = arith.addf %33, %39 : vector<16x16x64xf32>
    %41 = vector.extract_strided_slice %26 {offsets = [0, 2, 0], sizes = [16, 16, 64], strides = [1, 1, 1]} : vector<16x18x64xf32> to vector<16x16x64xf32>
    %42 = vector.extract_strided_slice %0 {offsets = [1, 2, 0], sizes = [1, 1, 64], strides = [1, 1, 1]} : vector<3x3x64xf32> to vector<1x1x64xf32>
    %43 = vector.shape_cast %42 : vector<1x1x64xf32> to vector<64xf32>
    %44 = vector.shape_cast %43 : vector<64xf32> to vector<1x1x64xf32>
    %45 = vector.broadcast %44 : vector<1x1x64xf32> to vector<16x16x64xf32>
    %46 = arith.mulf %41, %45 : vector<16x16x64xf32>
    %47 = arith.addf %40, %46 : vector<16x16x64xf32>
    %c0_9 = arith.constant 0 : index
    %c2 = arith.constant 2 : index
    %c0_10 = arith.constant 0 : index
    %c0_11 = arith.constant 0 : index
    %48 = vector.load %arg1[%c0_9, %c2, %c0_10, %c0_11] : memref<1x18x18x64xf32, #tpu.memory_space<vmem>>, vector<1x16x18x64xf32>
    %49 = vector.shape_cast %48 : vector<1x16x18x64xf32> to vector<16x18x64xf32>
    %50 = vector.extract_strided_slice %49 {offsets = [0, 0, 0], sizes = [16, 16, 64], strides = [1, 1, 1]} : vector<16x18x64xf32> to vector<16x16x64xf32>
    %51 = vector.extract_strided_slice %0 {offsets = [2, 0, 0], sizes = [1, 1, 64], strides = [1, 1, 1]} : vector<3x3x64xf32> to vector<1x1x64xf32>
    %52 = vector.shape_cast %51 : vector<1x1x64xf32> to vector<64xf32>
    %53 = vector.shape_cast %52 : vector<64xf32> to vector<1x1x64xf32>
    %54 = vector.broadcast %53 : vector<1x1x64xf32> to vector<16x16x64xf32>
    %55 = arith.mulf %50, %54 : vector<16x16x64xf32>
    %56 = arith.addf %47, %55 : vector<16x16x64xf32>
    %57 = vector.extract_strided_slice %49 {offsets = [0, 1, 0], sizes = [16, 16, 64], strides = [1, 1, 1]} : vector<16x18x64xf32> to vector<16x16x64xf32>
    %58 = vector.extract_strided_slice %0 {offsets = [2, 1, 0], sizes = [1, 1, 64], strides = [1, 1, 1]} : vector<3x3x64xf32> to vector<1x1x64xf32>
    %59 = vector.shape_cast %58 : vector<1x1x64xf32> to vector<64xf32>
    %60 = vector.shape_cast %59 : vector<64xf32> to vector<1x1x64xf32>
    %61 = vector.broadcast %60 : vector<1x1x64xf32> to vector<16x16x64xf32>
    %62 = arith.mulf %57, %61 : vector<16x16x64xf32>
    %63 = arith.addf %56, %62 : vector<16x16x64xf32>
    %64 = vector.extract_strided_slice %49 {offsets = [0, 2, 0], sizes = [16, 16, 64], strides = [1, 1, 1]} : vector<16x18x64xf32> to vector<16x16x64xf32>
    %65 = vector.extract_strided_slice %0 {offsets = [2, 2, 0], sizes = [1, 1, 64], strides = [1, 1, 1]} : vector<3x3x64xf32> to vector<1x1x64xf32>
    %66 = vector.shape_cast %65 : vector<1x1x64xf32> to vector<64xf32>
    %67 = vector.shape_cast %66 : vector<64xf32> to vector<1x1x64xf32>
    %68 = vector.broadcast %67 : vector<1x1x64xf32> to vector<16x16x64xf32>
    %69 = arith.mulf %64, %68 : vector<16x16x64xf32>
    %70 = arith.addf %63, %69 : vector<16x16x64xf32>
    %c0_12 = arith.constant 0 : index
    %c0_13 = arith.constant 0 : index
    %c0_14 = arith.constant 0 : index
    %71 = vector.load %arg3[%c0_12, %c0_13, %c0_14] : memref<1x1x64xf32, #tpu.memory_space<vmem>>, vector<1x1x64xf32>
    %72 = vector.broadcast %71 : vector<1x1x64xf32> to vector<16x16x64xf32>
    %73 = arith.addf %70, %72 : vector<16x16x64xf32>
    %cst_15 = arith.constant 5.000000e-01 : f32
    %74 = vector.broadcast %cst_15 : f32 to vector<16x16x64xf32>
    %75 = arith.mulf %74, %73 : vector<16x16x64xf32>
    %cst_16 = arith.constant 0.707106769 : f32
    %76 = vector.broadcast %cst_16 : f32 to vector<16x16x64xf32>
    %77 = arith.mulf %73, %76 : vector<16x16x64xf32>
    %78 = math.erf %77 : vector<16x16x64xf32>
    %cst_17 = arith.constant 1.000000e+00 : f32
    %79 = vector.broadcast %cst_17 : f32 to vector<16x16x64xf32>
    %80 = arith.addf %79, %78 : vector<16x16x64xf32>
    %81 = arith.mulf %75, %80 : vector<16x16x64xf32>
    %c0_18 = arith.constant 0 : index
    %c0_19 = arith.constant 0 : index
    %c0_20 = arith.constant 0 : index
    %c0_21 = arith.constant 0 : index
    %82 = vector.load %arg4[%c0_18, %c0_19, %c0_20, %c0_21] : memref<1x16x16x64xf32, #tpu.memory_space<vmem>>, vector<1x16x16x64xf32>
    %83 = vector.shape_cast %82 : vector<1x16x16x64xf32> to vector<16x16x64xf32>
    %84 = vector.shape_cast %81 : vector<16x16x64xf32> to vector<1x16x16x64xf32>
    tpu.vector_store %arg4[%c0_18, %c0_19, %c0_20, %c0_21], %84 {strides = array<i32>} : memref<1x16x16x64xf32, #tpu.memory_space<vmem>>, vector<1x16x16x64xf32>,
    return
  }
  func.func @transform_0(%arg0: i32) -> (i32, i32, i32, i32) {
    %c0_i32 = arith.constant 0 : i32
    %c0_i32_0 = arith.constant 0 : i32
    %c0_i32_1 = arith.constant 0 : i32
    %c0_i32_2 = arith.constant 0 : i32
    return %arg0, %c0_i32, %c0_i32_0, %c0_i32_1 : i32, i32, i32, i32
  }
  func.func @transform_1(%arg0: i32) -> (i32, i32, i32) {
    %c0_i32 = arith.constant 0 : i32
    %c0_i32_0 = arith.constant 0 : i32
    %c0_i32_1 = arith.constant 0 : i32
    %c0_i32_2 = arith.constant 0 : i32
    return %c0_i32, %c0_i32_0, %c0_i32_1 : i32, i32, i32
  }
  func.func @transform_2(%arg0: i32) -> (i32, i32, i32) {
    %c0_i32 = arith.constant 0 : i32
    %c0_i32_0 = arith.constant 0 : i32
    %c0_i32_1 = arith.constant 0 : i32
    %c0_i32_2 = arith.constant 0 : i32
    return %c0_i32, %c0_i32_0, %c0_i32_1 : i32, i32, i32
  }
  func.func @transform_3(%arg0: i32) -> (i32, i32, i32, i32) {
    %c0_i32 = arith.constant 0 : i32
    %c0_i32_0 = arith.constant 0 : i32
    %c0_i32_1 = arith.constant 0 : i32
    %c0_i32_2 = arith.constant 0 : i32
    return %arg0, %c0_i32, %c0_i32_0, %c0_i32_1 : i32, i32, i32, i32
  }
}

module attributes {stable_mosaic.version = 11 : i64} {
  func.func @_qkv_channel_attn_kernel(%arg0: i32, %arg1: memref<1x256x64xf32, #tpu.memory_space<vmem>>, %arg2: memref<64x64xf32, #tpu.memory_space<vmem>>, %arg3: memref<64x64xf32, #tpu.memory_space<vmem>>, %arg4: memref<64x64xf32, #tpu.memory_space<vmem>>, %arg5: memref<1x64xf32, #tpu.memory_space<vmem>>, %arg6: memref<1x64xf32, #tpu.memory_space<vmem>>, %arg7: memref<1x64xf32, #tpu.memory_space<vmem>>, %arg8: memref<1x64xf32, #tpu.memory_space<vmem>>, %arg9: memref<64x64xf32, #tpu.memory_space<vmem>>, %arg10: memref<1x256x64xf32, #tpu.memory_space<vmem>>, %arg11: memref<1x1x64xf32, #tpu.memory_space<vmem>>, %arg12: memref<1x256x64xf32, #tpu.memory_space<vmem>>) attributes {dimension_semantics = [#tpu.dimension_semantics<parallel>], iteration_bounds = array<i64: 2>, scalar_prefetch = 0 : i64, scratch_operands = 0 : i64, tpu.core_type = #tpu.core_type<tc>, window_params = [{transform_indices = @transform_0, window_bounds = array<i64: 1, 256, 64>}, {pipeline_mode = #tpu.pipeline_mode<synchronous>, transform_indices = @transform_1, window_bounds = array<i64: 64, 64>}, {pipeline_mode = #tpu.pipeline_mode<synchronous>, transform_indices = @transform_2, window_bounds = array<i64: 64, 64>}, {pipeline_mode = #tpu.pipeline_mode<synchronous>, transform_indices = @transform_3, window_bounds = array<i64: 64, 64>}, {pipeline_mode = #tpu.pipeline_mode<synchronous>, transform_indices = @transform_4, window_bounds = array<i64: 1, 64>}, {pipeline_mode = #tpu.pipeline_mode<synchronous>, transform_indices = @transform_5, window_bounds = array<i64: 1, 64>}, {pipeline_mode = #tpu.pipeline_mode<synchronous>, transform_indices = @transform_6, window_bounds = array<i64: 1, 64>}, {pipeline_mode = #tpu.pipeline_mode<synchronous>, transform_indices = @transform_7, window_bounds = array<i64: 1, 64>}, {pipeline_mode = #tpu.pipeline_mode<synchronous>, transform_indices = @transform_8, window_bounds = array<i64: 64, 64>}, {transform_indices = @transform_9, window_bounds = array<i64: 1, 256, 64>}, {transform_indices = @transform_10, window_bounds = array<i64: 1, 1, 64>}, {transform_indices = @transform_11, window_bounds = array<i64: 1, 256, 64>}]} {
    %c0 = arith.constant 0 : index
    %c0_0 = arith.constant 0 : index
    %c0_1 = arith.constant 0 : index
    %0 = vector.load %arg1[%c0, %c0_0, %c0_1] : memref<1x256x64xf32, #tpu.memory_space<vmem>>, vector<1x256x64xf32>
    %1 = vector.shape_cast %0 : vector<1x256x64xf32> to vector<256x64xf32>
    %2 = arith.truncf %1 : vector<256x64xf32> to vector<256x64xbf16>
    %c0_2 = arith.constant 0 : index
    %c0_3 = arith.constant 0 : index
    %3 = vector.load %arg2[%c0_2, %c0_3] : memref<64x64xf32, #tpu.memory_space<vmem>>, vector<64x64xf32>
    %4 = arith.truncf %3 : vector<64x64xf32> to vector<64x64xbf16>
    %cst = arith.constant dense<0.000000e+00> : vector<256x64xf32>
    %5 = tpu.matmul %2, %4, %cst {dimension_numbers = #tpu.dot_dimension_numbers<[1], [0], [0], [1], [0, 0, 1, 1], [], []>} : vector<256x64xbf16>, vector<64x64xbf16>, vector<256x64xf32> -> vector<256x64xf32>
    %c0_4 = arith.constant 0 : index
    %c0_5 = arith.constant 0 : index
    %6 = vector.load %arg5[%c0_4, %c0_5] : memref<1x64xf32, #tpu.memory_space<vmem>>, vector<1x64xf32>
    %7 = vector.broadcast %6 : vector<1x64xf32> to vector<256x64xf32>
    %8 = arith.addf %5, %7 : vector<256x64xf32>
    %c0_6 = arith.constant 0 : index
    %c0_7 = arith.constant 0 : index
    %9 = vector.load %arg3[%c0_6, %c0_7] : memref<64x64xf32, #tpu.memory_space<vmem>>, vector<64x64xf32>
    %10 = arith.truncf %9 : vector<64x64xf32> to vector<64x64xbf16>
    %cst_8 = arith.constant dense<0.000000e+00> : vector<256x64xf32>
    %11 = tpu.matmul %2, %10, %cst_8 {dimension_numbers = #tpu.dot_dimension_numbers<[1], [0], [0], [1], [0, 0, 1, 1], [], []>} : vector<256x64xbf16>, vector<64x64xbf16>, vector<256x64xf32> -> vector<256x64xf32>
    %c0_9 = arith.constant 0 : index
    %c0_10 = arith.constant 0 : index
    %12 = vector.load %arg6[%c0_9, %c0_10] : memref<1x64xf32, #tpu.memory_space<vmem>>, vector<1x64xf32>
    %13 = vector.broadcast %12 : vector<1x64xf32> to vector<256x64xf32>
    %14 = arith.addf %11, %13 : vector<256x64xf32>
    %c0_11 = arith.constant 0 : index
    %c0_12 = arith.constant 0 : index
    %15 = vector.load %arg4[%c0_11, %c0_12] : memref<64x64xf32, #tpu.memory_space<vmem>>, vector<64x64xf32>
    %16 = arith.truncf %15 : vector<64x64xf32> to vector<64x64xbf16>
    %cst_13 = arith.constant dense<0.000000e+00> : vector<256x64xf32>
    %17 = tpu.matmul %2, %16, %cst_13 {dimension_numbers = #tpu.dot_dimension_numbers<[1], [0], [0], [1], [0, 0, 1, 1], [], []>} : vector<256x64xbf16>, vector<64x64xbf16>, vector<256x64xf32> -> vector<256x64xf32>
    %c0_14 = arith.constant 0 : index
    %c0_15 = arith.constant 0 : index
    %18 = vector.load %arg7[%c0_14, %c0_15] : memref<1x64xf32, #tpu.memory_space<vmem>>, vector<1x64xf32>
    %19 = vector.broadcast %18 : vector<1x64xf32> to vector<256x64xf32>
    %20 = arith.addf %17, %19 : vector<256x64xf32>
    %c0_16 = arith.constant 0 : index
    %c0_17 = arith.constant 0 : index
    %c0_18 = arith.constant 0 : index
    %21 = vector.load %arg12[%c0_16, %c0_17, %c0_18] : memref<1x256x64xf32, #tpu.memory_space<vmem>>, vector<1x256x64xf32>
    %22 = vector.shape_cast %21 : vector<1x256x64xf32> to vector<256x64xf32>
    %23 = vector.shape_cast %20 : vector<256x64xf32> to vector<1x256x64xf32>
    tpu.vector_store %arg12[%c0_16, %c0_17, %c0_18], %23 {strides = array<i32>} : memref<1x256x64xf32, #tpu.memory_space<vmem>>, vector<1x256x64xf32>,
    %24 = arith.mulf %8, %8 : vector<256x64xf32>
    %cst_19 = arith.constant dense<0.000000e+00> : vector<64xf32>
    %25 = vector.multi_reduction <add>, %24, %cst_19 [0] : vector<256x64xf32> to vector<64xf32>
    %26 = vector.shape_cast %25 : vector<64xf32> to vector<1x64xf32>
    %27 = math.sqrt %26 : vector<1x64xf32>
    %cst_20 = arith.constant 9.99999996E-13 : f32
    %28 = vector.broadcast %cst_20 : f32 to vector<1x64xf32>
    %29 = arith.maximumf %27, %28 : vector<1x64xf32>
    %30 = vector.broadcast %29 : vector<1x64xf32> to vector<256x64xf32>
    %31 = arith.divf %8, %30 : vector<256x64xf32>
    %32 = arith.mulf %14, %14 : vector<256x64xf32>
    %cst_21 = arith.constant dense<0.000000e+00> : vector<64xf32>
    %33 = vector.multi_reduction <add>, %32, %cst_21 [0] : vector<256x64xf32> to vector<64xf32>
    %34 = vector.shape_cast %33 : vector<64xf32> to vector<1x64xf32>
    %35 = math.sqrt %34 : vector<1x64xf32>
    %cst_22 = arith.constant 9.99999996E-13 : f32
    %36 = vector.broadcast %cst_22 : f32 to vector<1x64xf32>
    %37 = arith.maximumf %35, %36 : vector<1x64xf32>
    %38 = vector.broadcast %37 : vector<1x64xf32> to vector<256x64xf32>
    %39 = arith.divf %14, %38 : vector<256x64xf32>
    %c0_23 = arith.constant 0 : index
    %c0_24 = arith.constant 0 : index
    %40 = vector.load %arg8[%c0_23, %c0_24] : memref<1x64xf32, #tpu.memory_space<vmem>>, vector<1x64xf32>
    %41 = vector.broadcast %40 : vector<1x64xf32> to vector<256x64xf32>
    %42 = arith.mulf %31, %41 : vector<256x64xf32>
    %43 = arith.truncf %42 : vector<256x64xf32> to vector<256x64xbf16>
    %44 = arith.truncf %39 : vector<256x64xf32> to vector<256x64xbf16>
    "tpu.trace_start"() <{level = 10 : i32, message = "nc,nd->cd"}> : () -> ()
    %cst_25 = arith.constant dense<0.000000e+00> : vector<64x64xf32>
    %45 = tpu.matmul %43, %44, %cst_25 {dimension_numbers = #tpu.dot_dimension_numbers<[0], [0], [1], [1], [0, 1, 1, 1], [], []>} : vector<256x64xbf16>, vector<256x64xbf16>, vector<64x64xf32> -> vector<64x64xf32>
    "tpu.trace_stop"() : () -> ()
    %c0_26 = arith.constant 0 : index
    %c0_27 = arith.constant 0 : index
    %46 = vector.load %arg9[%c0_26, %c0_27] : memref<64x64xf32, #tpu.memory_space<vmem>>, vector<64x64xf32>
    %47 = arith.addf %45, %46 : vector<64x64xf32>
    %cst_28 = arith.constant dense<0xFF800000> : vector<64xf32>
    %48 = vector.multi_reduction <maximumf>, %47, %cst_28 [1] : vector<64x64xf32> to vector<64xf32>
    %49 = vector.shape_cast %48 : vector<64xf32> to vector<64x1xf32>
    %50 = vector.broadcast %49 : vector<64x1xf32> to vector<64x64xf32>
    %51 = arith.subf %47, %50 : vector<64x64xf32>
    %52 = math.exp %51 : vector<64x64xf32>
    %cst_29 = arith.constant dense<0.000000e+00> : vector<64xf32>
    %53 = vector.multi_reduction <add>, %52, %cst_29 [1] : vector<64x64xf32> to vector<64xf32>
    %54 = vector.shape_cast %53 : vector<64xf32> to vector<64x1xf32>
    %55 = tpu.reciprocal %54 {approx = true} : vector<64x1xf32> -> vector<64x1xf32>
    %56 = vector.broadcast %55 : vector<64x1xf32> to vector<64x64xf32>
    %57 = arith.mulf %52, %56 : vector<64x64xf32>
    %58 = arith.truncf %20 : vector<256x64xf32> to vector<256x64xbf16>
    %59 = arith.truncf %57 : vector<64x64xf32> to vector<64x64xbf16>
    "tpu.trace_start"() <{level = 10 : i32, message = "nd,cd->nc"}> : () -> ()
    %cst_30 = arith.constant dense<0.000000e+00> : vector<256x64xf32>
    %60 = tpu.matmul %58, %59, %cst_30 {dimension_numbers = #tpu.dot_dimension_numbers<[1], [1], [0], [0], [0, 0, 1, 0], [], []>} : vector<256x64xbf16>, vector<64x64xbf16>, vector<256x64xf32> -> vector<256x64xf32>
    "tpu.trace_stop"() : () -> ()
    %c0_31 = arith.constant 0 : index
    %c0_32 = arith.constant 0 : index
    %c0_33 = arith.constant 0 : index
    %61 = vector.load %arg10[%c0_31, %c0_32, %c0_33] : memref<1x256x64xf32, #tpu.memory_space<vmem>>, vector<1x256x64xf32>
    %62 = vector.shape_cast %61 : vector<1x256x64xf32> to vector<256x64xf32>
    %63 = vector.shape_cast %60 : vector<256x64xf32> to vector<1x256x64xf32>
    tpu.vector_store %arg10[%c0_31, %c0_32, %c0_33], %63 {strides = array<i32>} : memref<1x256x64xf32, #tpu.memory_space<vmem>>, vector<1x256x64xf32>,
    %cst_34 = arith.constant dense<0.000000e+00> : vector<64xf32>
    %64 = vector.multi_reduction <add>, %60, %cst_34 [0] : vector<256x64xf32> to vector<64xf32>
    %65 = vector.shape_cast %64 : vector<64xf32> to vector<1x64xf32>
    %cst_35 = arith.constant 2.560000e+02 : f32
    %66 = vector.broadcast %cst_35 : f32 to vector<1x64xf32>
    %67 = arith.divf %65, %66 : vector<1x64xf32>
    %c0_36 = arith.constant 0 : index
    %c0_37 = arith.constant 0 : index
    %c0_38 = arith.constant 0 : index
    %68 = vector.load %arg11[%c0_36, %c0_37, %c0_38] : memref<1x1x64xf32, #tpu.memory_space<vmem>>, vector<1x1x64xf32>
    %69 = vector.shape_cast %68 : vector<1x1x64xf32> to vector<1x64xf32>
    %70 = vector.shape_cast %67 : vector<1x64xf32> to vector<1x1x64xf32>
    tpu.vector_store %arg11[%c0_36, %c0_37, %c0_38], %70 {strides = array<i32>} : memref<1x1x64xf32, #tpu.memory_space<vmem>>, vector<1x1x64xf32>,
    return
  }
  func.func @transform_0(%arg0: i32) -> (i32, i32, i32) {
    %c0_i32 = arith.constant 0 : i32
    %c0_i32_0 = arith.constant 0 : i32
    %c0_i32_1 = arith.constant 0 : i32
    return %arg0, %c0_i32, %c0_i32_0 : i32, i32, i32
  }
  func.func @transform_1(%arg0: i32) -> (i32, i32) {
    %c0_i32 = arith.constant 0 : i32
    %c0_i32_0 = arith.constant 0 : i32
    %c0_i32_1 = arith.constant 0 : i32
    return %c0_i32, %c0_i32_0 : i32, i32
  }
  func.func @transform_2(%arg0: i32) -> (i32, i32) {
    %c0_i32 = arith.constant 0 : i32
    %c0_i32_0 = arith.constant 0 : i32
    %c0_i32_1 = arith.constant 0 : i32
    return %c0_i32, %c0_i32_0 : i32, i32
  }
  func.func @transform_3(%arg0: i32) -> (i32, i32) {
    %c0_i32 = arith.constant 0 : i32
    %c0_i32_0 = arith.constant 0 : i32
    %c0_i32_1 = arith.constant 0 : i32
    return %c0_i32, %c0_i32_0 : i32, i32
  }
  func.func @transform_4(%arg0: i32) -> (i32, i32) {
    %c0_i32 = arith.constant 0 : i32
    %c0_i32_0 = arith.constant 0 : i32
    %c0_i32_1 = arith.constant 0 : i32
    return %c0_i32, %c0_i32_0 : i32, i32
  }
  func.func @transform_5(%arg0: i32) -> (i32, i32) {
    %c0_i32 = arith.constant 0 : i32
    %c0_i32_0 = arith.constant 0 : i32
    %c0_i32_1 = arith.constant 0 : i32
    return %c0_i32, %c0_i32_0 : i32, i32
  }
  func.func @transform_6(%arg0: i32) -> (i32, i32) {
    %c0_i32 = arith.constant 0 : i32
    %c0_i32_0 = arith.constant 0 : i32
    %c0_i32_1 = arith.constant 0 : i32
    return %c0_i32, %c0_i32_0 : i32, i32
  }
  func.func @transform_7(%arg0: i32) -> (i32, i32) {
    %c0_i32 = arith.constant 0 : i32
    %c0_i32_0 = arith.constant 0 : i32
    %c0_i32_1 = arith.constant 0 : i32
    return %c0_i32, %c0_i32_0 : i32, i32
  }
  func.func @transform_8(%arg0: i32) -> (i32, i32) {
    %c0_i32 = arith.constant 0 : i32
    %c0_i32_0 = arith.constant 0 : i32
    %c0_i32_1 = arith.constant 0 : i32
    return %c0_i32, %c0_i32_0 : i32, i32
  }
  func.func @transform_9(%arg0: i32) -> (i32, i32, i32) {
    %c0_i32 = arith.constant 0 : i32
    %c0_i32_0 = arith.constant 0 : i32
    %c0_i32_1 = arith.constant 0 : i32
    return %arg0, %c0_i32, %c0_i32_0 : i32, i32, i32
  }
  func.func @transform_10(%arg0: i32) -> (i32, i32, i32) {
    %c0_i32 = arith.constant 0 : i32
    %c0_i32_0 = arith.constant 0 : i32
    %c0_i32_1 = arith.constant 0 : i32
    return %arg0, %c0_i32, %c0_i32_0 : i32, i32, i32
  }
  func.func @transform_11(%arg0: i32) -> (i32, i32, i32) {
    %c0_i32 = arith.constant 0 : i32
    %c0_i32_0 = arith.constant 0 : i32
    %c0_i32_1 = arith.constant 0 : i32
    return %arg0, %c0_i32, %c0_i32_0 : i32, i32, i32
  }
}

module attributes {stable_mosaic.version = 11 : i64} {
  func.func @_combine_proj_kernel(%arg0: i32, %arg1: i32, %arg2: memref<1x128x64xf32, #tpu.memory_space<vmem>>, %arg3: memref<1x128x64xf32, #tpu.memory_space<vmem>>, %arg4: memref<1x1x64xf32, #tpu.memory_space<vmem>>, %arg5: memref<64x8xf32, #tpu.memory_space<vmem>>, %arg6: memref<1x8xf32, #tpu.memory_space<vmem>>, %arg7: memref<8x64xf32, #tpu.memory_space<vmem>>, %arg8: memref<1x64xf32, #tpu.memory_space<vmem>>, %arg9: memref<64x4xf32, #tpu.memory_space<vmem>>, %arg10: memref<1x4xf32, #tpu.memory_space<vmem>>, %arg11: memref<1x4xf32, #tpu.memory_space<vmem>>, %arg12: memref<1x1xf32, #tpu.memory_space<vmem>>, %arg13: memref<64x64xf32, #tpu.memory_space<vmem>>, %arg14: memref<1x64xf32, #tpu.memory_space<vmem>>, %arg15: memref<1x128x64xf32, #tpu.memory_space<vmem>>) attributes {dimension_semantics = [#tpu.dimension_semantics<parallel>, #tpu.dimension_semantics<parallel>], iteration_bounds = array<i64: 2, 2>, scalar_prefetch = 0 : i64, scratch_operands = 0 : i64, tpu.core_type = #tpu.core_type<tc>, window_params = [{transform_indices = @transform_0, window_bounds = array<i64: 1, 128, 64>}, {transform_indices = @transform_1, window_bounds = array<i64: 1, 128, 64>}, {transform_indices = @transform_2, window_bounds = array<i64: 1, 1, 64>}, {pipeline_mode = #tpu.pipeline_mode<synchronous>, transform_indices = @transform_3, window_bounds = array<i64: 64, 8>}, {pipeline_mode = #tpu.pipeline_mode<synchronous>, transform_indices = @transform_4, window_bounds = array<i64: 1, 8>}, {pipeline_mode = #tpu.pipeline_mode<synchronous>, transform_indices = @transform_5, window_bounds = array<i64: 8, 64>}, {pipeline_mode = #tpu.pipeline_mode<synchronous>, transform_indices = @transform_6, window_bounds = array<i64: 1, 64>}, {pipeline_mode = #tpu.pipeline_mode<synchronous>, transform_indices = @transform_7, window_bounds = array<i64: 64, 4>}, {pipeline_mode = #tpu.pipeline_mode<synchronous>, transform_indices = @transform_8, window_bounds = array<i64: 1, 4>}, {pipeline_mode = #tpu.pipeline_mode<synchronous>, transform_indices = @transform_9, window_bounds = array<i64: 1, 4>}, {pipeline_mode = #tpu.pipeline_mode<synchronous>, transform_indices = @transform_10, window_bounds = array<i64: 1, 1>}, {pipeline_mode = #tpu.pipeline_mode<synchronous>, transform_indices = @transform_11, window_bounds = array<i64: 64, 64>}, {pipeline_mode = #tpu.pipeline_mode<synchronous>, transform_indices = @transform_12, window_bounds = array<i64: 1, 64>}, {transform_indices = @transform_13, window_bounds = array<i64: 1, 128, 64>}]} {
    %c0 = arith.constant 0 : index
    %c0_0 = arith.constant 0 : index
    %c0_1 = arith.constant 0 : index
    %0 = vector.load %arg2[%c0, %c0_0, %c0_1] : memref<1x128x64xf32, #tpu.memory_space<vmem>>, vector<1x128x64xf32>
    %1 = vector.shape_cast %0 : vector<1x128x64xf32> to vector<128x64xf32>
    %c0_2 = arith.constant 0 : index
    %c0_3 = arith.constant 0 : index
    %c0_4 = arith.constant 0 : index
    %2 = vector.load %arg3[%c0_2, %c0_3, %c0_4] : memref<1x128x64xf32, #tpu.memory_space<vmem>>, vector<1x128x64xf32>
    %3 = vector.shape_cast %2 : vector<1x128x64xf32> to vector<128x64xf32>
    %c0_5 = arith.constant 0 : index
    %c0_6 = arith.constant 0 : index
    %c0_7 = arith.constant 0 : index
    %4 = vector.load %arg4[%c0_5, %c0_6, %c0_7] : memref<1x1x64xf32, #tpu.memory_space<vmem>>, vector<1x1x64xf32>
    %5 = vector.shape_cast %4 : vector<1x1x64xf32> to vector<1x64xf32>
    %c0_8 = arith.constant 0 : index
    %c0_9 = arith.constant 0 : index
    %6 = vector.load %arg5[%c0_8, %c0_9] : memref<64x8xf32, #tpu.memory_space<vmem>>, vector<64x8xf32>
    %7 = arith.truncf %5 : vector<1x64xf32> to vector<1x64xbf16>
    %8 = arith.truncf %6 : vector<64x8xf32> to vector<64x8xbf16>
    %cst = arith.constant dense<0.000000e+00> : vector<1x8xf32>
    %9 = tpu.matmul %7, %8, %cst {dimension_numbers = #tpu.dot_dimension_numbers<[1], [0], [0], [1], [0, 0, 1, 1], [], []>} : vector<1x64xbf16>, vector<64x8xbf16>, vector<1x8xf32> -> vector<1x8xf32>
    %c0_10 = arith.constant 0 : index
    %c0_11 = arith.constant 0 : index
    %10 = vector.load %arg6[%c0_10, %c0_11] : memref<1x8xf32, #tpu.memory_space<vmem>>, vector<1x8xf32>
    %11 = arith.addf %9, %10 : vector<1x8xf32>
    %cst_12 = arith.constant 5.000000e-01 : f32
    %12 = vector.broadcast %cst_12 : f32 to vector<1x8xf32>
    %13 = arith.mulf %12, %11 : vector<1x8xf32>
    %cst_13 = arith.constant 0.707106769 : f32
    %14 = vector.broadcast %cst_13 : f32 to vector<1x8xf32>
    %15 = arith.mulf %11, %14 : vector<1x8xf32>
    %16 = math.erf %15 : vector<1x8xf32>
    %cst_14 = arith.constant 1.000000e+00 : f32
    %17 = vector.broadcast %cst_14 : f32 to vector<1x8xf32>
    %18 = arith.addf %17, %16 : vector<1x8xf32>
    %19 = arith.mulf %13, %18 : vector<1x8xf32>
    %c0_15 = arith.constant 0 : index
    %c0_16 = arith.constant 0 : index
    %20 = vector.load %arg7[%c0_15, %c0_16] : memref<8x64xf32, #tpu.memory_space<vmem>>, vector<8x64xf32>
    %21 = arith.truncf %19 : vector<1x8xf32> to vector<1x8xbf16>
    %22 = arith.truncf %20 : vector<8x64xf32> to vector<8x64xbf16>
    %cst_17 = arith.constant dense<0.000000e+00> : vector<1x64xf32>
    %23 = tpu.matmul %21, %22, %cst_17 {dimension_numbers = #tpu.dot_dimension_numbers<[1], [0], [0], [1], [0, 0, 1, 1], [], []>} : vector<1x8xbf16>, vector<8x64xbf16>, vector<1x64xf32> -> vector<1x64xf32>
    %c0_18 = arith.constant 0 : index
    %c0_19 = arith.constant 0 : index
    %24 = vector.load %arg8[%c0_18, %c0_19] : memref<1x64xf32, #tpu.memory_space<vmem>>, vector<1x64xf32>
    %25 = arith.addf %23, %24 : vector<1x64xf32>
    %26 = arith.negf %25 : vector<1x64xf32>
    %27 = math.exp %26 : vector<1x64xf32>
    %cst_20 = arith.constant 1.000000e+00 : f32
    %28 = vector.broadcast %cst_20 : f32 to vector<1x64xf32>
    %29 = arith.addf %28, %27 : vector<1x64xf32>
    %30 = arith.divf %28, %29 : vector<1x64xf32>
    %c0_21 = arith.constant 0 : index
    %c0_22 = arith.constant 0 : index
    %31 = vector.load %arg9[%c0_21, %c0_22] : memref<64x4xf32, #tpu.memory_space<vmem>>, vector<64x4xf32>
    %32 = arith.truncf %3 : vector<128x64xf32> to vector<128x64xbf16>
    %33 = arith.truncf %31 : vector<64x4xf32> to vector<64x4xbf16>
    %cst_23 = arith.constant dense<0.000000e+00> : vector<128x4xf32>
    %34 = tpu.matmul %32, %33, %cst_23 {dimension_numbers = #tpu.dot_dimension_numbers<[1], [0], [0], [1], [0, 0, 1, 1], [], []>} : vector<128x64xbf16>, vector<64x4xbf16>, vector<128x4xf32> -> vector<128x4xf32>
    %c0_24 = arith.constant 0 : index
    %c0_25 = arith.constant 0 : index
    %35 = vector.load %arg10[%c0_24, %c0_25] : memref<1x4xf32, #tpu.memory_space<vmem>>, vector<1x4xf32>
    %36 = vector.broadcast %35 : vector<1x4xf32> to vector<128x4xf32>
    %37 = arith.addf %34, %36 : vector<128x4xf32>
    %cst_26 = arith.constant 5.000000e-01 : f32
    %38 = vector.broadcast %cst_26 : f32 to vector<128x4xf32>
    %39 = arith.mulf %38, %37 : vector<128x4xf32>
    %cst_27 = arith.constant 0.707106769 : f32
    %40 = vector.broadcast %cst_27 : f32 to vector<128x4xf32>
    %41 = arith.mulf %37, %40 : vector<128x4xf32>
    %42 = math.erf %41 : vector<128x4xf32>
    %cst_28 = arith.constant 1.000000e+00 : f32
    %43 = vector.broadcast %cst_28 : f32 to vector<128x4xf32>
    %44 = arith.addf %43, %42 : vector<128x4xf32>
    %45 = arith.mulf %39, %44 : vector<128x4xf32>
    %c0_29 = arith.constant 0 : index
    %c0_30 = arith.constant 0 : index
    %46 = vector.load %arg11[%c0_29, %c0_30] : memref<1x4xf32, #tpu.memory_space<vmem>>, vector<1x4xf32>
    %47 = vector.broadcast %46 : vector<1x4xf32> to vector<128x4xf32>
    %48 = arith.mulf %45, %47 : vector<128x4xf32>
    %cst_31 = arith.constant dense<0.000000e+00> : vector<128xf32>
    %49 = vector.multi_reduction <add>, %48, %cst_31 [1] : vector<128x4xf32> to vector<128xf32>
    %50 = vector.shape_cast %49 : vector<128xf32> to vector<128x1xf32>
    %c0_32 = arith.constant 0 : index
    %c0_33 = arith.constant 0 : index
    %51 = vector.load %arg12[%c0_32, %c0_33] : memref<1x1xf32, #tpu.memory_space<vmem>>, vector<1x1xf32>
    %52 = vector.broadcast %51 : vector<1x1xf32> to vector<128x1xf32>
    %53 = arith.addf %50, %52 : vector<128x1xf32>
    %54 = arith.negf %53 : vector<128x1xf32>
    %55 = math.exp %54 : vector<128x1xf32>
    %cst_34 = arith.constant 1.000000e+00 : f32
    %56 = vector.broadcast %cst_34 : f32 to vector<128x1xf32>
    %57 = arith.addf %56, %55 : vector<128x1xf32>
    %58 = arith.divf %56, %57 : vector<128x1xf32>
    %59 = vector.broadcast %58 : vector<128x1xf32> to vector<128x64xf32>
    %60 = arith.mulf %1, %59 : vector<128x64xf32>
    %61 = vector.broadcast %30 : vector<1x64xf32> to vector<128x64xf32>
    %62 = arith.mulf %3, %61 : vector<128x64xf32>
    %63 = arith.addf %60, %62 : vector<128x64xf32>
    %c0_35 = arith.constant 0 : index
    %c0_36 = arith.constant 0 : index
    %64 = vector.load %arg13[%c0_35, %c0_36] : memref<64x64xf32, #tpu.memory_space<vmem>>, vector<64x64xf32>
    %65 = arith.truncf %63 : vector<128x64xf32> to vector<128x64xbf16>
    %66 = arith.truncf %64 : vector<64x64xf32> to vector<64x64xbf16>
    %cst_37 = arith.constant dense<0.000000e+00> : vector<128x64xf32>
    %67 = tpu.matmul %65, %66, %cst_37 {dimension_numbers = #tpu.dot_dimension_numbers<[1], [0], [0], [1], [0, 0, 1, 1], [], []>} : vector<128x64xbf16>, vector<64x64xbf16>, vector<128x64xf32> -> vector<128x64xf32>
    %c0_38 = arith.constant 0 : index
    %c0_39 = arith.constant 0 : index
    %68 = vector.load %arg14[%c0_38, %c0_39] : memref<1x64xf32, #tpu.memory_space<vmem>>, vector<1x64xf32>
    %69 = vector.broadcast %68 : vector<1x64xf32> to vector<128x64xf32>
    %70 = arith.addf %67, %69 : vector<128x64xf32>
    %c0_40 = arith.constant 0 : index
    %c0_41 = arith.constant 0 : index
    %c0_42 = arith.constant 0 : index
    %71 = vector.load %arg15[%c0_40, %c0_41, %c0_42] : memref<1x128x64xf32, #tpu.memory_space<vmem>>, vector<1x128x64xf32>
    %72 = vector.shape_cast %71 : vector<1x128x64xf32> to vector<128x64xf32>
    %73 = vector.shape_cast %70 : vector<128x64xf32> to vector<1x128x64xf32>
    tpu.vector_store %arg15[%c0_40, %c0_41, %c0_42], %73 {strides = array<i32>} : memref<1x128x64xf32, #tpu.memory_space<vmem>>, vector<1x128x64xf32>,
    return
  }
  func.func @transform_0(%arg0: i32, %arg1: i32) -> (i32, i32, i32) {
    %c0_i32 = arith.constant 0 : i32
    %c0_i32_0 = arith.constant 0 : i32
    return %arg0, %arg1, %c0_i32 : i32, i32, i32
  }
  func.func @transform_1(%arg0: i32, %arg1: i32) -> (i32, i32, i32) {
    %c0_i32 = arith.constant 0 : i32
    %c0_i32_0 = arith.constant 0 : i32
    return %arg0, %arg1, %c0_i32 : i32, i32, i32
  }
  func.func @transform_2(%arg0: i32, %arg1: i32) -> (i32, i32, i32) {
    %c0_i32 = arith.constant 0 : i32
    %c0_i32_0 = arith.constant 0 : i32
    %c0_i32_1 = arith.constant 0 : i32
    return %arg0, %c0_i32, %c0_i32_0 : i32, i32, i32
  }
  func.func @transform_3(%arg0: i32, %arg1: i32) -> (i32, i32) {
    %c0_i32 = arith.constant 0 : i32
    %c0_i32_0 = arith.constant 0 : i32
    %c0_i32_1 = arith.constant 0 : i32
    return %c0_i32, %c0_i32_0 : i32, i32
  }
  func.func @transform_4(%arg0: i32, %arg1: i32) -> (i32, i32) {
    %c0_i32 = arith.constant 0 : i32
    %c0_i32_0 = arith.constant 0 : i32
    %c0_i32_1 = arith.constant 0 : i32
    return %c0_i32, %c0_i32_0 : i32, i32
  }
  func.func @transform_5(%arg0: i32, %arg1: i32) -> (i32, i32) {
    %c0_i32 = arith.constant 0 : i32
    %c0_i32_0 = arith.constant 0 : i32
    %c0_i32_1 = arith.constant 0 : i32
    return %c0_i32, %c0_i32_0 : i32, i32
  }
  func.func @transform_6(%arg0: i32, %arg1: i32) -> (i32, i32) {
    %c0_i32 = arith.constant 0 : i32
    %c0_i32_0 = arith.constant 0 : i32
    %c0_i32_1 = arith.constant 0 : i32
    return %c0_i32, %c0_i32_0 : i32, i32
  }
  func.func @transform_7(%arg0: i32, %arg1: i32) -> (i32, i32) {
    %c0_i32 = arith.constant 0 : i32
    %c0_i32_0 = arith.constant 0 : i32
    %c0_i32_1 = arith.constant 0 : i32
    return %c0_i32, %c0_i32_0 : i32, i32
  }
  func.func @transform_8(%arg0: i32, %arg1: i32) -> (i32, i32) {
    %c0_i32 = arith.constant 0 : i32
    %c0_i32_0 = arith.constant 0 : i32
    %c0_i32_1 = arith.constant 0 : i32
    return %c0_i32, %c0_i32_0 : i32, i32
  }
  func.func @transform_9(%arg0: i32, %arg1: i32) -> (i32, i32) {
    %c0_i32 = arith.constant 0 : i32
    %c0_i32_0 = arith.constant 0 : i32
    %c0_i32_1 = arith.constant 0 : i32
    return %c0_i32, %c0_i32_0 : i32, i32
  }
  func.func @transform_10(%arg0: i32, %arg1: i32) -> (i32, i32) {
    %c0_i32 = arith.constant 0 : i32
    %c0_i32_0 = arith.constant 0 : i32
    %c0_i32_1 = arith.constant 0 : i32
    return %c0_i32, %c0_i32_0 : i32, i32
  }
  func.func @transform_11(%arg0: i32, %arg1: i32) -> (i32, i32) {
    %c0_i32 = arith.constant 0 : i32
    %c0_i32_0 = arith.constant 0 : i32
    %c0_i32_1 = arith.constant 0 : i32
    return %c0_i32, %c0_i32_0 : i32, i32
  }
  func.func @transform_12(%arg0: i32, %arg1: i32) -> (i32, i32) {
    %c0_i32 = arith.constant 0 : i32
    %c0_i32_0 = arith.constant 0 : i32
    %c0_i32_1 = arith.constant 0 : i32
    return %c0_i32, %c0_i32_0 : i32, i32
  }
  func.func @transform_13(%arg0: i32, %arg1: i32) -> (i32, i32, i32) {
    %c0_i32 = arith.constant 0 : i32
    %c0_i32_0 = arith.constant 0 : i32
    return %arg0, %arg1, %c0_i32 : i32, i32, i32
  }
}

</mosaic_0001>

<llo_original>
// kernel: adaptive_channel_attention_forward.5
$region0: #{adaptive_channel_attention_forward.5}
  #allocation0 [shape = 'u32[]', space=smem, size = 0x4, offset = 0x4, fixed_abs, tag = 'smem constant byte address 0x4 - core index']
  #allocation1 [shape = 'u32[144,128]{1,0:T(1,128)}', space=vmem, size = 0x12000, scoped, tag = 'internal scratch']
  #allocation2 [shape = 'f32[1,1]{1,0:T(1,128)S(1)}', space=vmem, size = 0x200, scoped, tag = 'scoped memory for adaptive_channel_attention_forward.5']
  %s0 = inlined_call_operand.vmem [shape: f32[2,256,64], index: 0, kind: input, shape index: {}]
  %s1 = inlined_call_operand.vmem [shape: f32[2,256,64], index: 1, kind: input, shape index: {}]
  %s2 = inlined_call_operand.vmem [shape: f32[2,1,64], index: 2, kind: input, shape index: {}]
  %s3 = inlined_call_operand.vmem [shape: f32[64,8], index: 3, kind: input, shape index: {}]
  %s4 = inlined_call_operand.vmem [shape: f32[1,8], index: 4, kind: input, shape index: {}]
  %s5 = inlined_call_operand.vmem [shape: f32[8,64], index: 5, kind: input, shape index: {}]
  %s6 = inlined_call_operand.vmem [shape: f32[1,64], index: 6, kind: input, shape index: {}]
  %s7 = inlined_call_operand.vmem [shape: f32[64,4], index: 7, kind: input, shape index: {}]
  %s8 = inlined_call_operand.vmem [shape: f32[1,4], index: 8, kind: input, shape index: {}]
  %s9 = inlined_call_operand.vmem [shape: f32[1,4], index: 9, kind: input, shape index: {}]
  %s10 = inlined_call_operand.<no memory space> [shape: f32[1,1], index: 10, kind: input, shape index: {}]
  %s11 = inlined_call_operand.vmem [shape: f32[64,64], index: 11, kind: input, shape index: {}]
  %s12 = inlined_call_operand.vmem [shape: f32[1,64], index: 12, kind: input, shape index: {}]
  %s13 = inlined_call_operand.vmem [shape: f32[2,256,64], index: 13, kind: output, shape index: {}]
  %s14 = sld [smem:[#allocation0]]
  $region85: #{adaptive_channel_attention_forward.5} parent=0
    _
  %s16 = ssub.s32 1, %s14
  %s17 = scalar_select 0, %s16, %s14
  %v18 = vstv %s10
  %19 = vst [vmem:[#allocation2] sm:$0x1] %v18
  loop: start=0, step=1, limit=6
  $region2: #{adaptive_channel_attention_forward.5} parent=0 // loop_pre_header
    _
  $region3: #{adaptive_channel_attention_forward.5} parent=0 // loop_header
    %s21 = sphi 0, %s25
    %p22 = scmp.ge.s32.totalorder %s21, 6
    %s28 = sphi 0, %s40
    %s29 = sphi 0, %s36
    %s30 = sphi 0, %s28
    %s31 = sphi 0, %s29
    %s32 = sphi 0, %s30
    %s33 = sphi 0, %s31
    %s45 = sphi 0, %s47
    %s48 = sphi 0, %s45
    %s49 = sphi 0, %s48
    %s65 = sphi 0, %s49
    %s73 = sphi 0, %s75
    %s76 = sphi 0, %s73
    %s77 = sphi 0, %s76
    %s93 = sphi 0, %s77
    %s99 = sphi 0, %s101
    %s102 = sphi 0, %s99
    %s103 = sphi 0, %s102
    %s119 = sphi 0, %s103
    %s123 = sphi 0, %s123
    %s125 = sphi 0, %s123
    %s126 = sphi 0, %s125
    %s140 = sphi 0, %s126
    %s144 = sphi 0, %s144
    %s146 = sphi 0, %s144
    %s147 = sphi 0, %s146
    %s161 = sphi 0, %s147
    %s165 = sphi 0, %s165
    %s167 = sphi 0, %s165
    %s168 = sphi 0, %s167
    %s182 = sphi 0, %s168
    %s186 = sphi 0, %s186
    %s188 = sphi 0, %s186
    %s189 = sphi 0, %s188
    %s203 = sphi 0, %s189
    %s207 = sphi 0, %s207
    %s209 = sphi 0, %s207
    %s210 = sphi 0, %s209
    %s224 = sphi 0, %s210
    %s228 = sphi 0, %s228
    %s230 = sphi 0, %s228
    %s231 = sphi 0, %s230
    %s245 = sphi 0, %s231
    %s249 = sphi 0, %s249
    %s251 = sphi 0, %s249
    %s252 = sphi 0, %s251
    %s266 = sphi 0, %s252
    %s270 = sphi 0, %s270
    %s272 = sphi 0, %s270
    %s273 = sphi 0, %s272
    %s287 = sphi 0, %s273
    %s291 = sphi 0, %s291
    %s293 = sphi 0, %s291
    %s294 = sphi 0, %s293
    %s308 = sphi 0, %s294
    %s312 = sphi 0, %s312
    %s314 = sphi 0, %s312
    %s315 = sphi 0, %s314
    %s329 = sphi 0, %s315
    %s337 = sphi 0, %s339
    %s340 = sphi 0, %s337
    %s341 = sphi 0, %s340
    %s357 = sphi 0, %s341
  $region4: #{adaptive_channel_attention_forward.5} parent=0 // loop_header_branch
    %24 = sbr.rel (%p22) target = $region8
  $region5: #{adaptive_channel_attention_forward.5} parent=0 // loop_body
    %s26 = ssub.s32 %s21, 1
    %s27 = ssub.s32 %s21, 2
    %s34 = sadd.s32 1, %s29
    %p35 = scmp.ge.s32.totalorder %s34, 2
    %s36 = scalar_select %p35, 0, %s34
    %s37 = sadd.s32 1, %s28
    %s38 = scalar_select %p35, %s37, %s28
    %p39 = scmp.ge.s32.totalorder %s38, 2
    %s40 = scalar_select %p39, 0, %s38
    %s41 = ssub.s32 %s28, %s40
    %s42 = ssub.s32 %s29, %s36
    %s43 = sor.u32 %s41, %s42
    %p44 = scmp.eq.s32.totalorder %s43, 0
    %s46 = sadd.s32 %s45, 1
    %s47 = scalar_select %p44, %s45, %s46
    %p50 = pneg %p44
    %p51 = scmp.eq.s32.totalorder %s21, 3
    %p52 = por %p50, %p51
    %p53 = scmp.ne.s32.totalorder %s45, %s48
    %p54 = scmp.eq.s32.totalorder %s21, 0
    %p55 = por %p53, %p54
    %p56 = scmp.ne.s32.totalorder %s45, %s48
    %p57 = scmp.eq.s32.totalorder %s26, 3
    %p58 = por %p56, %p57
    %p59 = scmp.ne.s32.totalorder %s48, %s49
    %p60 = scmp.eq.s32.totalorder %s26, 0
    %p61 = por %p59, %p60
    %p62 = scmp.ne.s32.totalorder %s48, %s49
    %p63 = scmp.eq.s32.totalorder %s27, 3
    %p64 = por %p62, %p63
    %p66 = scmp.ne.s32.totalorder %s49, %s65
    %p67 = scmp.eq.s32.totalorder %s27, 0
    %p68 = por %p66, %p67
    %s69 = ssub.s32 %s28, %s40
    %s70 = ssub.s32 %s29, %s36
    %s71 = sor.u32 %s69, %s70
    %p72 = scmp.eq.s32.totalorder %s71, 0
    %s74 = sadd.s32 %s73, 1
    %s75 = scalar_select %p72, %s73, %s74
    %p78 = pneg %p72
    %p79 = scmp.eq.s32.totalorder %s21, 3
    %p80 = por %p78, %p79
    %p81 = scmp.ne.s32.totalorder %s73, %s76
    %p82 = scmp.eq.s32.totalorder %s21, 0
    %p83 = por %p81, %p82
    %p84 = scmp.ne.s32.totalorder %s73, %s76
    %p85 = scmp.eq.s32.totalorder %s26, 3
    %p86 = por %p84, %p85
    %p87 = scmp.ne.s32.totalorder %s76, %s77
    %p88 = scmp.eq.s32.totalorder %s26, 0
    %p89 = por %p87, %p88
    %p90 = scmp.ne.s32.totalorder %s76, %s77
    %p91 = scmp.eq.s32.totalorder %s27, 3
    %p92 = por %p90, %p91
    %p94 = scmp.ne.s32.totalorder %s77, %s93
    %p95 = scmp.eq.s32.totalorder %s27, 0
    %p96 = por %p94, %p95
    %s97 = ssub.s32 %s28, %s40
    %p98 = scmp.eq.s32.totalorder %s97, 0
    %s100 = sadd.s32 %s99, 1
    %s101 = scalar_select %p98, %s99, %s100
    %p104 = pneg %p98
    %p105 = scmp.eq.s32.totalorder %s21, 3
    %p106 = por %p104, %p105
    %p107 = scmp.ne.s32.totalorder %s99, %s102
    %p108 = scmp.eq.s32.totalorder %s21, 0
    %p109 = por %p107, %p108
    %p110 = scmp.ne.s32.totalorder %s99, %s102
    %p111 = scmp.eq.s32.totalorder %s26, 3
    %p112 = por %p110, %p111
    %p113 = scmp.ne.s32.totalorder %s102, %s103
    %p114 = scmp.eq.s32.totalorder %s26, 0
    %p115 = por %p113, %p114
    %p116 = scmp.ne.s32.totalorder %s102, %s103
    %p117 = scmp.eq.s32.totalorder %s27, 3
    %p118 = por %p116, %p117
    %p120 = scmp.ne.s32.totalorder %s103, %s119
    %p121 = scmp.eq.s32.totalorder %s27, 0
    %p122 = por %p120, %p121
    %s124 = sadd.s32 %s123, 1
    %p127 = scmp.eq.s32.totalorder %s21, 3
    %p128 = scmp.ne.s32.totalorder %s123, %s125
    %p129 = scmp.eq.s32.totalorder %s21, 0
    %p130 = por %p128, %p129
    %p131 = scmp.ne.s32.totalorder %s123, %s125
    %p132 = scmp.eq.s32.totalorder %s26, 3
    %p133 = por %p131, %p132
    %p134 = scmp.ne.s32.totalorder %s125, %s126
    %p135 = scmp.eq.s32.totalorder %s26, 0
    %p136 = por %p134, %p135
    %p137 = scmp.ne.s32.totalorder %s125, %s126
    %p138 = scmp.eq.s32.totalorder %s27, 3
    %p139 = por %p137, %p138
    %p141 = scmp.ne.s32.totalorder %s126, %s140
    %p142 = scmp.eq.s32.totalorder %s27, 0
    %p143 = por %p141, %p142
    %s145 = sadd.s32 %s144, 1
    %p148 = scmp.eq.s32.totalorder %s21, 3
    %p149 = scmp.ne.s32.totalorder %s144, %s146
    %p150 = scmp.eq.s32.totalorder %s21, 0
    %p151 = por %p149, %p150
    %p152 = scmp.ne.s32.totalorder %s144, %s146
    %p153 = scmp.eq.s32.totalorder %s26, 3
    %p154 = por %p152, %p153
    %p155 = scmp.ne.s32.totalorder %s146, %s147
    %p156 = scmp.eq.s32.totalorder %s26, 0
    %p157 = por %p155, %p156
    %p158 = scmp.ne.s32.totalorder %s146, %s147
    %p159 = scmp.eq.s32.totalorder %s27, 3
    %p160 = por %p158, %p159
    %p162 = scmp.ne.s32.totalorder %s147, %s161
    %p163 = scmp.eq.s32.totalorder %s27, 0
    %p164 = por %p162, %p163
    %s166 = sadd.s32 %s165, 1
    %p169 = scmp.eq.s32.totalorder %s21, 3
    %p170 = scmp.ne.s32.totalorder %s165, %s167
    %p171 = scmp.eq.s32.totalorder %s21, 0
    %p172 = por %p170, %p171
    %p173 = scmp.ne.s32.totalorder %s165, %s167
    %p174 = scmp.eq.s32.totalorder %s26, 3
    %p175 = por %p173, %p174
    %p176 = scmp.ne.s32.totalorder %s167, %s168
    %p177 = scmp.eq.s32.totalorder %s26, 0
    %p178 = por %p176, %p177
    %p179 = scmp.ne.s32.totalorder %s167, %s168
    %p180 = scmp.eq.s32.totalorder %s27, 3
    %p181 = por %p179, %p180
    %p183 = scmp.ne.s32.totalorder %s168, %s182
    %p184 = scmp.eq.s32.totalorder %s27, 0
    %p185 = por %p183, %p184
    %s187 = sadd.s32 %s186, 1
    %p190 = scmp.eq.s32.totalorder %s21, 3
    %p191 = scmp.ne.s32.totalorder %s186, %s188
    %p192 = scmp.eq.s32.totalorder %s21, 0
    %p193 = por %p191, %p192
    %p194 = scmp.ne.s32.totalorder %s186, %s188
    %p195 = scmp.eq.s32.totalorder %s26, 3
    %p196 = por %p194, %p195
    %p197 = scmp.ne.s32.totalorder %s188, %s189
    %p198 = scmp.eq.s32.totalorder %s26, 0
    %p199 = por %p197, %p198
    %p200 = scmp.ne.s32.totalorder %s188, %s189
    %p201 = scmp.eq.s32.totalorder %s27, 3
    %p202 = por %p200, %p201
    %p204 = scmp.ne.s32.totalorder %s189, %s203
    %p205 = scmp.eq.s32.totalorder %s27, 0
    %p206 = por %p204, %p205
    %s208 = sadd.s32 %s207, 1
    %p211 = scmp.eq.s32.totalorder %s21, 3
    %p212 = scmp.ne.s32.totalorder %s207, %s209
    %p213 = scmp.eq.s32.totalorder %s21, 0
    %p214 = por %p212, %p213
    %p215 = scmp.ne.s32.totalorder %s207, %s209
    %p216 = scmp.eq.s32.totalorder %s26, 3
    %p217 = por %p215, %p216
    %p218 = scmp.ne.s32.totalorder %s209, %s210
    %p219 = scmp.eq.s32.totalorder %s26, 0
    %p220 = por %p218, %p219
    %p221 = scmp.ne.s32.totalorder %s209, %s210
    %p222 = scmp.eq.s32.totalorder %s27, 3
    %p223 = por %p221, %p222
    %p225 = scmp.ne.s32.totalorder %s210, %s224
    %p226 = scmp.eq.s32.totalorder %s27, 0
    %p227 = por %p225, %p226
    %s229 = sadd.s32 %s228, 1
    %p232 = scmp.eq.s32.totalorder %s21, 3
    %p233 = scmp.ne.s32.totalorder %s228, %s230
    %p234 = scmp.eq.s32.totalorder %s21, 0
    %p235 = por %p233, %p234
    %p236 = scmp.ne.s32.totalorder %s228, %s230
    %p237 = scmp.eq.s32.totalorder %s26, 3
    %p238 = por %p236, %p237
    %p239 = scmp.ne.s32.totalorder %s230, %s231
    %p240 = scmp.eq.s32.totalorder %s26, 0
    %p241 = por %p239, %p240
    %p242 = scmp.ne.s32.totalorder %s230, %s231
    %p243 = scmp.eq.s32.totalorder %s27, 3
    %p244 = por %p242, %p243
    %p246 = scmp.ne.s32.totalorder %s231, %s245
    %p247 = scmp.eq.s32.totalorder %s27, 0
    %p248 = por %p246, %p247
    %s250 = sadd.s32 %s249, 1
    %p253 = scmp.eq.s32.totalorder %s21, 3
    %p254 = scmp.ne.s32.totalorder %s249, %s251
    %p255 = scmp.eq.s32.totalorder %s21, 0
    %p256 = por %p254, %p255
    %p257 = scmp.ne.s32.totalorder %s249, %s251
    %p258 = scmp.eq.s32.totalorder %s26, 3
    %p259 = por %p257, %p258
    %p260 = scmp.ne.s32.totalorder %s251, %s252
    %p261 = scmp.eq.s32.totalorder %s26, 0
    %p262 = por %p260, %p261
    %p263 = scmp.ne.s32.totalorder %s251, %s252
    %p264 = scmp.eq.s32.totalorder %s27, 3
    %p265 = por %p263, %p264
    %p267 = scmp.ne.s32.totalorder %s252, %s266
    %p268 = scmp.eq.s32.totalorder %s27, 0
    %p269 = por %p267, %p268
    %s271 = sadd.s32 %s270, 1
    %p274 = scmp.eq.s32.totalorder %s21, 3
    %p275 = scmp.ne.s32.totalorder %s270, %s272
    %p276 = scmp.eq.s32.totalorder %s21, 0
    %p277 = por %p275, %p276
    %p278 = scmp.ne.s32.totalorder %s270, %s272
    %p279 = scmp.eq.s32.totalorder %s26, 3
    %p280 = por %p278, %p279
    %p281 = scmp.ne.s32.totalorder %s272, %s273
    %p282 = scmp.eq.s32.totalorder %s26, 0
    %p283 = por %p281, %p282
    %p284 = scmp.ne.s32.totalorder %s272, %s273
    %p285 = scmp.eq.s32.totalorder %s27, 3
    %p286 = por %p284, %p285
    %p288 = scmp.ne.s32.totalorder %s273, %s287
    %p289 = scmp.eq.s32.totalorder %s27, 0
    %p290 = por %p288, %p289
    %s292 = sadd.s32 %s291, 1
    %p295 = scmp.eq.s32.totalorder %s21, 3
    %p296 = scmp.ne.s32.totalorder %s291, %s293
    %p297 = scmp.eq.s32.totalorder %s21, 0
    %p298 = por %p296, %p297
    %p299 = scmp.ne.s32.totalorder %s291, %s293
    %p300 = scmp.eq.s32.totalorder %s26, 3
    %p301 = por %p299, %p300
    %p302 = scmp.ne.s32.totalorder %s293, %s294
    %p303 = scmp.eq.s32.totalorder %s26, 0
    %p304 = por %p302, %p303
    %p305 = scmp.ne.s32.totalorder %s293, %s294
    %p306 = scmp.eq.s32.totalorder %s27, 3
    %p307 = por %p305, %p306
    %p309 = scmp.ne.s32.totalorder %s294, %s308
    %p310 = scmp.eq.s32.totalorder %s27, 0
    %p311 = por %p309, %p310
    %s313 = sadd.s32 %s312, 1
    %p316 = scmp.eq.s32.totalorder %s21, 3
    %p317 = scmp.ne.s32.totalorder %s312, %s314
    %p318 = scmp.eq.s32.totalorder %s21, 0
    %p319 = por %p317, %p318
    %p320 = scmp.ne.s32.totalorder %s312, %s314
    %p321 = scmp.eq.s32.totalorder %s26, 3
    %p322 = por %p320, %p321
    %p323 = scmp.ne.s32.totalorder %s314, %s315
    %p324 = scmp.eq.s32.totalorder %s26, 0
    %p325 = por %p323, %p324
    %p326 = scmp.ne.s32.totalorder %s314, %s315
    %p327 = scmp.eq.s32.totalorder %s27, 3
    %p328 = por %p326, %p327
    %p330 = scmp.ne.s32.totalorder %s315, %s329
    %p331 = scmp.eq.s32.totalorder %s27, 0
    %p332 = por %p330, %p331
    %s333 = ssub.s32 %s28, %s40
    %s334 = ssub.s32 %s29, %s36
    %s335 = sor.u32 %s333, %s334
    %p336 = scmp.eq.s32.totalorder %s335, 0
    %s338 = sadd.s32 %s337, 1
    %s339 = scalar_select %p336, %s337, %s338
    %p342 = pneg %p336
    %p343 = scmp.eq.s32.totalorder %s21, 3
    %p344 = por %p342, %p343
    %p345 = scmp.ne.s32.totalorder %s337, %s340
    %p346 = scmp.eq.s32.totalorder %s21, 0
    %p347 = por %p345, %p346
    %p348 = scmp.ne.s32.totalorder %s337, %s340
    %p349 = scmp.eq.s32.totalorder %s26, 3
    %p350 = por %p348, %p349
    %p351 = scmp.ne.s32.totalorder %s340, %s341
    %p352 = scmp.eq.s32.totalorder %s26, 0
    %p353 = por %p351, %p352
    %p354 = scmp.ne.s32.totalorder %s340, %s341
    %p355 = scmp.eq.s32.totalorder %s27, 3
    %p356 = por %p354, %p355
    %p358 = scmp.ne.s32.totalorder %s341, %s357
    %p359 = scmp.eq.s32.totalorder %s27, 0
    %p360 = por %p358, %p359
    %p361 = scmp.le.s32.totalorder 1, %s21
    %p362 = scmp.lt.s32.totalorder %s21, 5
    %p363 = pnand %p361, %p362
    %p364 = pneg %p363
    // Predicated region
    $region9: #{adaptive_channel_attention_forward.5} parent=5 // pred_check
      _
    $region10: #{adaptive_channel_attention_forward.5} parent=5 // pred_check_branch
      %366 = sbr.rel (%p363) target = $region12
    $region11: #{adaptive_channel_attention_forward.5} parent=5 // pred_region
      %s367 = ssub.s32 %s21, 1
      // Predicated region
      $region13: #{adaptive_channel_attention_forward.5} parent=11 // pred_check
        %p368 = pneg %p136
      $region14: #{adaptive_channel_attention_forward.5} parent=11 // pred_check_branch
        %370 = sbr.rel (%p368) target = $region16
      $region15: #{adaptive_channel_attention_forward.5} parent=11 // pred_region
        _
      $region16: #{adaptive_channel_attention_forward.5} parent=11 // pred_fallthru
        _
      // Predicated region
      $region17: #{adaptive_channel_attention_forward.5} parent=11 // pred_check
        %p371 = pneg %p157
      $region18: #{adaptive_channel_attention_forward.5} parent=11 // pred_check_branch
        %373 = sbr.rel (%p371) target = $region20
      $region19: #{adaptive_channel_attention_forward.5} parent=11 // pred_region
        _
      $region20: #{adaptive_channel_attention_forward.5} parent=11 // pred_fallthru
        _
      // Predicated region
      $region21: #{adaptive_channel_attention_forward.5} parent=11 // pred_check
        %p374 = pneg %p178
      $region22: #{adaptive_channel_attention_forward.5} parent=11 // pred_check_branch
        %376 = sbr.rel (%p374) target = $region24
      $region23: #{adaptive_channel_attention_forward.5} parent=11 // pred_region
        _
      $region24: #{adaptive_channel_attention_forward.5} parent=11 // pred_fallthru
        _
      // Predicated region
      $region25: #{adaptive_channel_attention_forward.5} parent=11 // pred_check
        %p377 = pneg %p199
      $region26: #{adaptive_channel_attention_forward.5} parent=11 // pred_check_branch
        %379 = sbr.rel (%p377) target = $region28
      $region27: #{adaptive_channel_attention_forward.5} parent=11 // pred_region
        _
      $region28: #{adaptive_channel_attention_forward.5} parent=11 // pred_fallthru
        _
      // Predicated region
      $region29: #{adaptive_channel_attention_forward.5} parent=11 // pred_check
        %p380 = pneg %p220
      $region30: #{adaptive_channel_attention_forward.5} parent=11 // pred_check_branch
        %382 = sbr.rel (%p380) target = $region32
      $region31: #{adaptive_channel_attention_forward.5} parent=11 // pred_region
        _
      $region32: #{adaptive_channel_attention_forward.5} parent=11 // pred_fallthru
        _
      // Predicated region
      $region33: #{adaptive_channel_attention_forward.5} parent=11 // pred_check
        %p383 = pneg %p241
      $region34: #{adaptive_channel_attention_forward.5} parent=11 // pred_check_branch
        %385 = sbr.rel (%p383) target = $region36
      $region35: #{adaptive_channel_attention_forward.5} parent=11 // pred_region
        _
      $region36: #{adaptive_channel_attention_forward.5} parent=11 // pred_fallthru
        _
      // Predicated region
      $region37: #{adaptive_channel_attention_forward.5} parent=11 // pred_check
        %p386 = pneg %p262
      $region38: #{adaptive_channel_attention_forward.5} parent=11 // pred_check_branch
        %388 = sbr.rel (%p386) target = $region40
      $region39: #{adaptive_channel_attention_forward.5} parent=11 // pred_region
        _
      $region40: #{adaptive_channel_attention_forward.5} parent=11 // pred_fallthru
        _
      // Predicated region
      $region41: #{adaptive_channel_attention_forward.5} parent=11 // pred_check
        %p389 = pneg %p283
      $region42: #{adaptive_channel_attention_forward.5} parent=11 // pred_check_branch
        %391 = sbr.rel (%p389) target = $region44
      $region43: #{adaptive_channel_attention_forward.5} parent=11 // pred_region
        _
      $region44: #{adaptive_channel_attention_forward.5} parent=11 // pred_fallthru
        _
      // Predicated region
      $region45: #{adaptive_channel_attention_forward.5} parent=11 // pred_check
        %p392 = pneg %p304
      $region46: #{adaptive_channel_attention_forward.5} parent=11 // pred_check_branch
        %394 = sbr.rel (%p392) target = $region48
      $region47: #{adaptive_channel_attention_forward.5} parent=11 // pred_region
        _
      $region48: #{adaptive_channel_attention_forward.5} parent=11 // pred_fallthru
        _
      // Predicated region
      $region49: #{adaptive_channel_attention_forward.5} parent=11 // pred_check
        %p395 = pneg %p325
      $region50: #{adaptive_channel_attention_forward.5} parent=11 // pred_check_branch
        %397 = sbr.rel (%p395) target = $region52
      $region51: #{adaptive_channel_attention_forward.5} parent=11 // pred_region
        _
      $region52: #{adaptive_channel_attention_forward.5} parent=11 // pred_fallthru
        _
    $region12: #{adaptive_channel_attention_forward.5} parent=5 // pred_fallthru
      _
    %p398 = scmp.lt.s32.totalorder %s21, 4
    // Predicated region
    $region53: #{adaptive_channel_attention_forward.5} parent=5 // pred_check
      %p399 = pneg %p398
    $region54: #{adaptive_channel_attention_forward.5} parent=5 // pred_check_branch
      %401 = sbr.rel (%p399) target = $region56
    $region55: #{adaptive_channel_attention_forward.5} parent=5 // pred_region
      // Predicated region
      $region57: #{adaptive_channel_attention_forward.5} parent=55 // pred_check
        %p402 = pneg %p55
      $region58: #{adaptive_channel_attention_forward.5} parent=55 // pred_check_branch
        %404 = sbr.rel (%p402) target = $region60
      $region59: #{adaptive_channel_attention_forward.5} parent=55 // pred_region
        %s405 = smul.u32 16, %s29
        %p406 = scmp.lt.s32.totalorder %s28, 1
        %s407 = scalar_select %p406, %s28, 1
        %p408 = scmp.lt.s32.totalorder %s405, 31
        %s409 = scalar_select %p408, %s405, 31
        %s410 = smul.addr %s407, 32
        %s411 = sadd.s32 %s409, %s410
        %s412 = smul.addr %s411, 8
        %s413 = scalar_lea.vmem %s0, %s412
        %s414 = smul.u32 16, %s29
      $region60: #{adaptive_channel_attention_forward.5} parent=55 // pred_fallthru
        _
      // Predicated region
      $region61: #{adaptive_channel_attention_forward.5} parent=55 // pred_check
        %p415 = pneg %p83
      $region62: #{adaptive_channel_attention_forward.5} parent=55 // pred_check_branch
        %417 = sbr.rel (%p415) target = $region64
      $region63: #{adaptive_channel_attention_forward.5} parent=55 // pred_region
        %s418 = smul.u32 16, %s29
        %p419 = scmp.lt.s32.totalorder %s28, 1
        %s420 = scalar_select %p419, %s28, 1
        %p421 = scmp.lt.s32.totalorder %s418, 31
        %s422 = scalar_select %p421, %s418, 31
        %s423 = smul.addr %s420, 32
        %s424 = sadd.s32 %s422, %s423
        %s425 = smul.addr %s424, 8
        %s426 = scalar_lea.vmem %s1, %s425
        %s427 = smul.u32 16, %s29
      $region64: #{adaptive_channel_attention_forward.5} parent=55 // pred_fallthru
        _
      // Predicated region
      $region65: #{adaptive_channel_attention_forward.5} parent=55 // pred_check
        %p428 = pneg %p109
      $region66: #{adaptive_channel_attention_forward.5} parent=55 // pred_check_branch
        %430 = sbr.rel (%p428) target = $region68
      $region67: #{adaptive_channel_attention_forward.5} parent=55 // pred_region
        %p431 = scmp.lt.s32.totalorder %s28, 1
        %s432 = scalar_select %p431, %s28, 1
        %s433 = scalar_lea.vmem %s2, %s432
      $region68: #{adaptive_channel_attention_forward.5} parent=55 // pred_fallthru
        _
    $region56: #{adaptive_channel_attention_forward.5} parent=5 // pred_fallthru
      _
    %p434 = scmp.le.s32.totalorder 1, %s21
    %p435 = scmp.lt.s32.totalorder %s21, 5
    %p436 = pnand %p434, %p435
    %p437 = pneg %p436
    // Predicated region
    $region69: #{adaptive_channel_attention_forward.5} parent=5 // pred_check
      _
    $region70: #{adaptive_channel_attention_forward.5} parent=5 // pred_check_branch
      %439 = sbr.rel (%p436) target = $region72
    $region71: #{adaptive_channel_attention_forward.5} parent=5 // pred_region
      %s440 = ssub.s32 %s21, 1
      %s441 = smul.u32 16, %s31
      %p442 = scmp.lt.s32.totalorder %s30, 1
      %s443 = scalar_select %p442, %s30, 1
      %p444 = scmp.lt.s32.totalorder %s441, 31
      %s445 = scalar_select %p444, %s441, 31
      %s446 = smul.addr %s443, 32
      %s447 = sadd.s32 %s445, %s446
      %s448 = smul.addr %s447, 8
      %s449 = scalar_lea.vmem %s0, %s448
      %p450 = pneg %p61
      %p451 = pneg %p58
      %s452 = smul.u32 16, %s31
      %p453 = scmp.lt.s32.totalorder %s30, 1
      %s454 = scalar_select %p453, %s30, 1
      %p455 = scmp.lt.s32.totalorder %s452, 31
      %s456 = scalar_select %p455, %s452, 31
      %s457 = smul.addr %s454, 32
      %s458 = sadd.s32 %s456, %s457
      %s459 = smul.addr %s458, 8
      %s460 = scalar_lea.vmem %s1, %s459
      %p461 = pneg %p89
      %p462 = pneg %p86
      %p463 = scmp.lt.s32.totalorder %s30, 1
      %s464 = scalar_select %p463, %s30, 1
      %s465 = scalar_lea.vmem %s2, %s464
      %p466 = pneg %p115
      %p467 = pneg %p112
      %p468 = pneg %p136
      %p469 = pneg %p133
      %p470 = pneg %p157
      %p471 = pneg %p154
      %p472 = pneg %p178
      %p473 = pneg %p175
      %p474 = pneg %p199
      %p475 = pneg %p196
      %p476 = pneg %p220
      %p477 = pneg %p217
      %p478 = pneg %p241
      %p479 = pneg %p238
      %p480 = pneg %p262
      %p481 = pneg %p259
      %p482 = pneg %p283
      %p483 = pneg %p280
      %p484 = pneg %p304
      %p485 = pneg %p301
      %p486 = pneg %p325
      %p487 = pneg %p322
      %p488 = pneg %p353
      %p489 = pneg %p350
      %s490 = smul.u32 16, %s31
      %p491 = scmp.lt.s32.totalorder %s30, 1
      %s492 = scalar_select %p491, %s30, 1
      %p493 = scmp.lt.s32.totalorder %s490, 31
      %s494 = scalar_select %p493, %s490, 31
      %s495 = smul.addr %s492, 32
      %s496 = sadd.s32 %s494, %s495
      %s497 = smul.addr %s496, 8
      %s498 = scalar_lea.vmem %s13, %s497
      %s499 = smul.u32 16, %s31
      %p500 = scmp.lt.s32.totalorder %s30, 1
      %s501 = scalar_select %p500, %s30, 1
      %p502 = scmp.lt.s32.totalorder %s499, 31
      %s503 = scalar_select %p502, %s499, 31
      %s504 = smul.addr %s501, 32
      %s505 = sadd.s32 %s503, %s504
      %s506 = smul.addr %s505, 8
      %s507 = scalar_lea.vmem %s0, %s506
      %s508 = smul.u32 16, %s31
      %s509 = smul.u32 16, %s31
      %p510 = scmp.lt.s32.totalorder %s30, 1
      %s511 = scalar_select %p510, %s30, 1
      %p512 = scmp.lt.s32.totalorder %s509, 31
      %s513 = scalar_select %p512, %s509, 31
      %s514 = smul.addr %s511, 32
      %s515 = sadd.s32 %s513, %s514
      %s516 = smul.addr %s515, 8
      %s517 = scalar_lea.vmem %s1, %s516
      %s518 = smul.u32 16, %s31
      %p519 = scmp.lt.s32.totalorder %s30, 1
      %s520 = scalar_select %p519, %s30, 1
      %s521 = scalar_lea.vmem %s2, %s520
      %s522 = smul.u32 16, %s31
      %p523 = scmp.lt.s32.totalorder %s30, 1
      %s524 = scalar_select %p523, %s30, 1
      %p525 = scmp.lt.s32.totalorder %s522, 31
      %s526 = scalar_select %p525, %s522, 31
      %s527 = smul.addr %s524, 32
      %s528 = sadd.s32 %s526, %s527
      %s529 = smul.addr %s528, 8
      %s530 = scalar_lea.vmem %s13, %s529
      %s531 = smul.u32 16, %s31
      %v533 = vld [vmem:[%s507] sm:$0xff]
      %v534 = vld [vmem:[%s507 + $0x8] sm:$0xff]
      %v535 = vld [vmem:[%s507 + $0x10] sm:$0xff]
      %v536 = vld [vmem:[%s507 + $0x18] sm:$0xff]
      %v537 = vld [vmem:[%s507 + $0x20] sm:$0xff]
      %v538 = vld [vmem:[%s507 + $0x28] sm:$0xff]
      %v539 = vld [vmem:[%s507 + $0x30] sm:$0xff]
      %v540 = vld [vmem:[%s507 + $0x38] sm:$0xff]
      %v541 = vld [vmem:[%s507 + $0x40] sm:$0xff]
      %v542 = vld [vmem:[%s507 + $0x48] sm:$0xff]
      %v543 = vld [vmem:[%s507 + $0x50] sm:$0xff]
      %v544 = vld [vmem:[%s507 + $0x58] sm:$0xff]
      %v545 = vld [vmem:[%s507 + $0x60] sm:$0xff]
      %v546 = vld [vmem:[%s507 + $0x68] sm:$0xff]
      %v547 = vld [vmem:[%s507 + $0x70] sm:$0xff]
      %v548 = vld [vmem:[%s507 + $0x78] sm:$0xff]
      %v549 = vld [vmem:[%s517] sm:$0xff]
      %v550 = vld [vmem:[%s517 + $0x8] sm:$0xff]
      %v551 = vld [vmem:[%s517 + $0x10] sm:$0xff]
      %v552 = vld [vmem:[%s517 + $0x18] sm:$0xff]
      %v553 = vld [vmem:[%s517 + $0x20] sm:$0xff]
      %v554 = vld [vmem:[%s517 + $0x28] sm:$0xff]
      %v555 = vld [vmem:[%s517 + $0x30] sm:$0xff]
      %v556 = vld [vmem:[%s517 + $0x38] sm:$0xff]
      %v557 = vld [vmem:[%s517 + $0x40] sm:$0xff]
      %v558 = vld [vmem:[%s517 + $0x48] sm:$0xff]
      %v559 = vld [vmem:[%s517 + $0x50] sm:$0xff]
      %v560 = vld [vmem:[%s517 + $0x58] sm:$0xff]
      %v561 = vld [vmem:[%s517 + $0x60] sm:$0xff]
      %v562 = vld [vmem:[%s517 + $0x68] sm:$0xff]
      %v563 = vld [vmem:[%s517 + $0x70] sm:$0xff]
      %v564 = vld [vmem:[%s517 + $0x78] sm:$0xff]
      %v565 = vld [vmem:[%s521] sm:$0x1]
      %v566 = vld [vmem:[%s3] sm:$0xff]
      %v567 = vld [vmem:[%s3 + $0x8] sm:$0xff]
      %v568 = vld [vmem:[%s3 + $0x10] sm:$0xff]
      %v569 = vld [vmem:[%s3 + $0x18] sm:$0xff]
      %v570 = vld [vmem:[%s3 + $0x20] sm:$0xff]
      %v571 = vld [vmem:[%s3 + $0x28] sm:$0xff]
      %v572 = vld [vmem:[%s3 + $0x30] sm:$0xff]
      %v573 = vld [vmem:[%s3 + $0x38] sm:$0xff]
      %v574 = vpack.c.bf16 %v565, %v565
      %v575 = vpack.c.bf16 %v567, %v566
      %v576 = vpack.c.bf16 %v569, %v568
      %v577 = vpack.c.bf16 %v571, %v570
      %v578 = vpack.c.bf16 %v573, %v572
      %v579 = vld [vmem:[%s4] sm:$0x1]
      %vm580 = vcmask 523264
      %v582 = vsel %vm580, %v574, 0
      %584 = vmatprep.subr.bf16.mxu0 0
      %585 = vmatpush1.bf16.msra.mxu0 0
      %586 = vmatprep.subr.bf16.mxu0 0
      %587 = vmatpush1.bf16.msra.mxu0 0
      %588 = vmatprep.subr.bf16.mxu0 0
      %589 = vmatpush1.bf16.msra.mxu0 0
      %590 = vmatprep.subr.bf16.mxu0 0
      %591 = vmatpush1.bf16.msra.mxu0 0
      %592 = vmatprep.subr.bf16.mxu0 0
      %593 = vmatpush1.bf16.msra.mxu0 %v578
      %594 = vmatprep.subr.bf16.mxu0 0
      %595 = vmatpush1.bf16.msra.mxu0 %v577
      %596 = vmatprep.subr.bf16.mxu0 0
      %597 = vmatpush1.bf16.msra.mxu0 %v576
      %598 = vmatprep.subr.bf16.mxu0 0
      %599 = vmatpush1.bf16.msra.mxu0 %v575
      %600 = vmatprep.subr.bf16.mxu0 0
      %601 = vmatpush2.bf16.msra.mxu0 0
      %602 = vmatprep.subr.bf16.mxu0 0
      %603 = vmatpush2.bf16.msra.mxu0 0
      %604 = vmatprep.subr.bf16.mxu0 0
      %605 = vmatpush2.bf16.msra.mxu0 0
      %606 = vmatprep.subr.bf16.mxu0 0
      %607 = vmatpush2.bf16.msra.mxu0 0
      %608 = vmatprep.subr.bf16.mxu0 0
      %609 = vmatpush2.bf16.msra.mxu0 0
      %610 = vmatprep.subr.bf16.mxu0 0
      %611 = vmatpush2.bf16.msra.mxu0 0
      %612 = vmatprep.subr.bf16.mxu0 0
      %613 = vmatpush2.bf16.msra.mxu0 0
      %614 = vmatprep.subr.bf16.mxu0 0
      %615 = vmatpush2.bf16.msra.mxu0 0
      %616 = vmatprep.mubr.bf16.mxu0 0
      %617 = vmatmul.mubr.bf16.gmra.mxu0 %v582
      %v618 = vpop.f32.mrf.mxu0
      %v619 = vadd.f32 %v579, %v618
      %v620 = vpop.f32.mrf.mxu0
      %v621 = vpop.f32.mrf.mxu0
      %v622 = vpop.f32.mrf.mxu0
      %623 = vdwg.mxu0
      %v624 = vmul.f32 %v619, 0.5
      %v625 = vmul.f32 %v619, 0.70710677
      %v626 = verf.f32.pop %v625
      %v627 = vadd.f32 %v626, 1.0
      %v628 = vmul.f32 %v624, %v627
      %v629 = vld [vmem:[%s5] sm:$0xff]
      %v630 = vpack.c.bf16 %v628, %v628
      %v631 = vpack.c.bf16 %v629, %v629
      %v632 = vld [vmem:[%s6] sm:$0x1]
      %vm633 = vcmask 64512
      %v635 = vsel %vm633, %v630, 0
      %vm637 = vcmask 1043456
      %v639 = vsel %vm637, %v631, 0
      %641 = vmatprep.subr.bf16.mxu0 0
      %642 = vmatpush1.bf16.msra.mxu0 0
      %643 = vmatprep.subr.bf16.mxu0 0
      %644 = vmatpush1.bf16.msra.mxu0 0
      %645 = vmatprep.subr.bf16.mxu0 0
      %646 = vmatpush1.bf16.msra.mxu0 0
      %647 = vmatprep.subr.bf16.mxu0 0
      %648 = vmatpush1.bf16.msra.mxu0 0
      %649 = vmatprep.subr.bf16.mxu0 0
      %650 = vmatpush1.bf16.msra.mxu0 0
      %651 = vmatprep.subr.bf16.mxu0 0
      %652 = vmatpush1.bf16.msra.mxu0 0
      %653 = vmatprep.subr.bf16.mxu0 0
      %654 = vmatpush1.bf16.msra.mxu0 0
      %655 = vmatprep.subr.bf16.mxu0 0
      %656 = vmatpush1.bf16.msra.mxu0 %v639
      %657 = vmatprep.subr.bf16.mxu0 0
      %658 = vmatpush2.bf16.msra.mxu0 0
      %659 = vmatprep.subr.bf16.mxu0 0
      %660 = vmatpush2.bf16.msra.mxu0 0
      %661 = vmatprep.subr.bf16.mxu0 0
      %662 = vmatpush2.bf16.msra.mxu0 0
      %663 = vmatprep.subr.bf16.mxu0 0
      %664 = vmatpush2.bf16.msra.mxu0 0
      %665 = vmatprep.subr.bf16.mxu0 0
      %666 = vmatpush2.bf16.msra.mxu0 0
      %667 = vmatprep.subr.bf16.mxu0 0
      %668 = vmatpush2.bf16.msra.mxu0 0
      %669 = vmatprep.subr.bf16.mxu0 0
      %670 = vmatpush2.bf16.msra.mxu0 0
      %671 = vmatprep.subr.bf16.mxu0 0
      %672 = vmatpush2.bf16.msra.mxu0 0
      %673 = vmatprep.mubr.bf16.mxu0 0
      %674 = vmatmul.mubr.bf16.gmra.mxu0 %v635
      %v675 = vpop.f32.mrf.mxu0
      %v676 = vadd.f32 %v632, %v675
      %v677 = vpop.f32.mrf.mxu0
      %v678 = vpop.f32.mrf.mxu0
      %v679 = vpop.f32.mrf.mxu0
      %680 = vdwg.mxu0
      %v681 = vxor.u32 %v676, 2147483648
      %v682 = vmul.f32 %v681, 1.442695
      %v683 = vpow.pop %v682
      %v684 = vadd.f32 %v683, 1.0
      %v685 = vrcp.pop %v684
      %v686 = vmul.f32 1.0, %v685
      %v687 = vld [vmem:[%s7] sm:$0xff]
      %v688 = vld [vmem:[%s7 + $0x8] sm:$0xff]
      %v689 = vld [vmem:[%s7 + $0x10] sm:$0xff]
      %v690 = vld [vmem:[%s7 + $0x18] sm:$0xff]
      %v691 = vld [vmem:[%s7 + $0x20] sm:$0xff]
      %v692 = vld [vmem:[%s7 + $0x28] sm:$0xff]
      %v693 = vld [vmem:[%s7 + $0x30] sm:$0xff]
      %v694 = vld [vmem:[%s7 + $0x38] sm:$0xff]
      %v695 = vpack.c.bf16 %v550, %v549
      %v696 = vpack.c.bf16 %v552, %v551
      %v697 = vpack.c.bf16 %v554, %v553
      %v698 = vpack.c.bf16 %v556, %v555
      %v699 = vpack.c.bf16 %v558, %v557
      %v700 = vpack.c.bf16 %v560, %v559
      %v701 = vpack.c.bf16 %v562, %v561
      %v702 = vpack.c.bf16 %v564, %v563
      %v703 = vpack.c.bf16 %v688, %v687
      %v704 = vpack.c.bf16 %v690, %v689
      %v705 = vpack.c.bf16 %v692, %v691
      %v706 = vpack.c.bf16 %v694, %v693
      %v707 = vld [vmem:[%s8] sm:$0x1]
      %v709 = vlaneseq
      %v710 = vshrl.u32 %v709, 7
      %v711 = vsub.s32 0, %v710
      %v712 = vrot.slane %v707, %v711
      %v715 = vsel %vm580, %v695, 0
      %v718 = vsel %vm580, %v696, 0
      %v721 = vsel %vm580, %v697, 0
      %v724 = vsel %vm580, %v698, 0
      %v727 = vsel %vm580, %v699, 0
      %v730 = vsel %vm580, %v700, 0
      %v733 = vsel %vm580, %v701, 0
      %v736 = vsel %vm580, %v702, 0
      %738 = vmatprep.subr.bf16.mxu0 0
      %739 = vmatpush1.bf16.msra.mxu0 0
      %740 = vmatprep.subr.bf16.mxu0 0
      %741 = vmatpush1.bf16.msra.mxu0 0
      %742 = vmatprep.subr.bf16.mxu0 0
      %743 = vmatpush1.bf16.msra.mxu0 0
      %744 = vmatprep.subr.bf16.mxu0 0
      %745 = vmatpush1.bf16.msra.mxu0 0
      %746 = vmatprep.subr.bf16.mxu0 0
      %747 = vmatpush1.bf16.msra.mxu0 %v706
      %748 = vmatprep.subr.bf16.mxu0 0
      %749 = vmatpush1.bf16.msra.mxu0 %v705
      %750 = vmatprep.subr.bf16.mxu0 0
      %751 = vmatpush1.bf16.msra.mxu0 %v704
      %752 = vmatprep.subr.bf16.mxu0 0
      %753 = vmatpush1.bf16.msra.mxu0 %v703
      %754 = vmatprep.subr.bf16.mxu0 0
      %755 = vmatpush2.bf16.msra.mxu0 0
      %756 = vmatprep.subr.bf16.mxu0 0
      %757 = vmatpush2.bf16.msra.mxu0 0
      %758 = vmatprep.subr.bf16.mxu0 0
      %759 = vmatpush2.bf16.msra.mxu0 0
      %760 = vmatprep.subr.bf16.mxu0 0
      %761 = vmatpush2.bf16.msra.mxu0 0
      %762 = vmatprep.subr.bf16.mxu0 0
      %763 = vmatpush2.bf16.msra.mxu0 0
      %764 = vmatprep.subr.bf16.mxu0 0
      %765 = vmatpush2.bf16.msra.mxu0 0
      %766 = vmatprep.subr.bf16.mxu0 0
      %767 = vmatpush2.bf16.msra.mxu0 0
      %768 = vmatprep.subr.bf16.mxu0 0
      %769 = vmatpush2.bf16.msra.mxu0 0
      %770 = vmatprep.mubr.bf16.mxu0 0
      %771 = vmatmul.mubr.bf16.gmra.mxu0 %v715
      %v772 = vpop.f32.mrf.mxu0
      %v773 = vadd.f32 %v712, %v772
      %v774 = vpop.f32.mrf.mxu0
      %v775 = vpop.f32.mrf.mxu0
      %v776 = vadd.f32 %v712, %v775
      %v777 = vpop.f32.mrf.mxu0
      %778 = vmatprep.mubr.bf16.mxu0 0
      %779 = vmatmul.mubr.bf16.gmra.mxu0 %v718
      %v780 = vpop.f32.mrf.mxu0
      %v781 = vadd.f32 %v712, %v780
      %v782 = vpop.f32.mrf.mxu0
      %v783 = vpop.f32.mrf.mxu0
      %v784 = vadd.f32 %v712, %v783
      %v785 = vpop.f32.mrf.mxu0
      %786 = vmatprep.mubr.bf16.mxu0 0
      %787 = vmatmul.mubr.bf16.gmra.mxu0 %v721
      %v788 = vpop.f32.mrf.mxu0
      %v789 = vadd.f32 %v712, %v788
      %v790 = vpop.f32.mrf.mxu0
      %v791 = vpop.f32.mrf.mxu0
      %v792 = vadd.f32 %v712, %v791
      %v793 = vpop.f32.mrf.mxu0
      %794 = vmatprep.mubr.bf16.mxu0 0
      %795 = vmatmul.mubr.bf16.gmra.mxu0 %v724
      %v796 = vpop.f32.mrf.mxu0
      %v797 = vadd.f32 %v712, %v796
      %v798 = vpop.f32.mrf.mxu0
      %v799 = vpop.f32.mrf.mxu0
      %v800 = vadd.f32 %v712, %v799
      %v801 = vpop.f32.mrf.mxu0
      %802 = vmatprep.mubr.bf16.mxu0 0
      %803 = vmatmul.mubr.bf16.gmra.mxu0 %v727
      %v804 = vpop.f32.mrf.mxu0
      %v805 = vadd.f32 %v712, %v804
      %v806 = vpop.f32.mrf.mxu0
      %v807 = vpop.f32.mrf.mxu0
      %v808 = vadd.f32 %v712, %v807
      %v809 = vpop.f32.mrf.mxu0
      %810 = vmatprep.mubr.bf16.mxu0 0
      %811 = vmatmul.mubr.bf16.gmra.mxu0 %v730
      %v812 = vpop.f32.mrf.mxu0
      %v813 = vadd.f32 %v712, %v812
      %v814 = vpop.f32.mrf.mxu0
      %v815 = vpop.f32.mrf.mxu0
      %v816 = vadd.f32 %v712, %v815
      %v817 = vpop.f32.mrf.mxu0
      %818 = vmatprep.mubr.bf16.mxu0 0
      %819 = vmatmul.mubr.bf16.gmra.mxu0 %v733
      %v820 = vpop.f32.mrf.mxu0
      %v821 = vadd.f32 %v712, %v820
      %v822 = vpop.f32.mrf.mxu0
      %v823 = vpop.f32.mrf.mxu0
      %v824 = vadd.f32 %v712, %v823
      %v825 = vpop.f32.mrf.mxu0
      %826 = vmatprep.mubr.bf16.mxu0 0
      %827 = vmatmul.mubr.bf16.gmra.mxu0 %v736
      %v828 = vpop.f32.mrf.mxu0
      %v829 = vadd.f32 %v712, %v828
      %v830 = vpop.f32.mrf.mxu0
      %v831 = vpop.f32.mrf.mxu0
      %v832 = vadd.f32 %v712, %v831
      %v833 = vpop.f32.mrf.mxu0
      %834 = vdwg.mxu0
      %v835 = vmul.f32 %v773, 0.5
      %v836 = vmul.f32 %v776, 0.5
      %v837 = vmul.f32 %v781, 0.5
      %v838 = vmul.f32 %v784, 0.5
      %v839 = vmul.f32 %v789, 0.5
      %v840 = vmul.f32 %v792, 0.5
      %v841 = vmul.f32 %v797, 0.5
      %v842 = vmul.f32 %v800, 0.5
      %v843 = vmul.f32 %v805, 0.5
      %v844 = vmul.f32 %v808, 0.5
      %v845 = vmul.f32 %v813, 0.5
      %v846 = vmul.f32 %v816, 0.5
      %v847 = vmul.f32 %v821, 0.5
      %v848 = vmul.f32 %v824, 0.5
      %v849 = vmul.f32 %v829, 0.5
      %v850 = vmul.f32 %v832, 0.5
      %v851 = vmul.f32 %v773, 0.70710677
      %v852 = vmul.f32 %v776, 0.70710677
      %v853 = vmul.f32 %v781, 0.70710677
      %v854 = vmul.f32 %v784, 0.70710677
      %v855 = vmul.f32 %v789, 0.70710677
      %v856 = vmul.f32 %v792, 0.70710677
      %v857 = vmul.f32 %v797, 0.70710677
      %v858 = vmul.f32 %v800, 0.70710677
      %v859 = vmul.f32 %v805, 0.70710677
      %v860 = vmul.f32 %v808, 0.70710677
      %v861 = vmul.f32 %v813, 0.70710677
      %v862 = vmul.f32 %v816, 0.70710677
      %v863 = vmul.f32 %v821, 0.70710677
      %v864 = vmul.f32 %v824, 0.70710677
      %v865 = vmul.f32 %v829, 0.70710677
      %v866 = vmul.f32 %v832, 0.70710677
      %v867 = verf.f32.pop %v851
      %v868 = verf.f32.pop %v852
      %v869 = verf.f32.pop %v853
      %v870 = verf.f32.pop %v854
      %v871 = verf.f32.pop %v855
      %v872 = verf.f32.pop %v856
      %v873 = verf.f32.pop %v857
      %v874 = verf.f32.pop %v858
      %v875 = verf.f32.pop %v859
      %v876 = verf.f32.pop %v860
      %v877 = verf.f32.pop %v861
      %v878 = verf.f32.pop %v862
      %v879 = verf.f32.pop %v863
      %v880 = verf.f32.pop %v864
      %v881 = verf.f32.pop %v865
      %v882 = verf.f32.pop %v866
      %v883 = vadd.f32 %v867, 1.0
      %v884 = vadd.f32 %v868, 1.0
      %v885 = vadd.f32 %v869, 1.0
      %v886 = vadd.f32 %v870, 1.0
      %v887 = vadd.f32 %v871, 1.0
      %v888 = vadd.f32 %v872, 1.0
      %v889 = vadd.f32 %v873, 1.0
      %v890 = vadd.f32 %v874, 1.0
      %v891 = vadd.f32 %v875, 1.0
      %v892 = vadd.f32 %v876, 1.0
      %v893 = vadd.f32 %v877, 1.0
      %v894 = vadd.f32 %v878, 1.0
      %v895 = vadd.f32 %v879, 1.0
      %v896 = vadd.f32 %v880, 1.0
      %v897 = vadd.f32 %v881, 1.0
      %v898 = vadd.f32 %v882, 1.0
      %v899 = vmul.f32 %v835, %v883
      %v900 = vmul.f32 %v836, %v884
      %v901 = vmul.f32 %v837, %v885
      %v902 = vmul.f32 %v838, %v886
      %v903 = vmul.f32 %v839, %v887
      %v904 = vmul.f32 %v840, %v888
      %v905 = vmul.f32 %v841, %v889
      %v906 = vmul.f32 %v842, %v890
      %v907 = vmul.f32 %v843, %v891
      %v908 = vmul.f32 %v844, %v892
      %v909 = vmul.f32 %v845, %v893
      %v910 = vmul.f32 %v846, %v894
      %v911 = vmul.f32 %v847, %v895
      %v912 = vmul.f32 %v848, %v896
      %v913 = vmul.f32 %v849, %v897
      %v914 = vmul.f32 %v850, %v898
      %v915 = vld [vmem:[%s9] sm:$0x1]
      %v917 = vlaneseq
      %v918 = vshrl.u32 %v917, 7
      %v919 = vsub.s32 0, %v918
      %v920 = vrot.slane %v915, %v919
      %v922 = vmul.f32 %v899, %v920
      %v923 = vmul.f32 %v900, %v920
      %v924 = vmul.f32 %v901, %v920
      %v925 = vmul.f32 %v902, %v920
      %v926 = vmul.f32 %v903, %v920
      %v927 = vmul.f32 %v904, %v920
      %v928 = vmul.f32 %v905, %v920
      %v929 = vmul.f32 %v906, %v920
      %v930 = vmul.f32 %v907, %v920
      %v931 = vmul.f32 %v908, %v920
      %v932 = vmul.f32 %v909, %v920
      %v933 = vmul.f32 %v910, %v920
      %v934 = vmul.f32 %v911, %v920
      %v935 = vmul.f32 %v912, %v920
      %v936 = vmul.f32 %v913, %v920
      %v937 = vmul.f32 %v914, %v920
      %vm938 = vcmask 31744
      %v939 = vsel %vm938, %v922, 0.0
      %940 = vadd.xlane.f32.xlu0 %v939
      %v941 = vpop.xlane.xlu0 %940
      %v942 = vsel %vm938, %v923, 0.0
      %943 = vadd.xlane.f32.xlu0 %v942
      %v944 = vpop.xlane.xlu0 %943
      %v945 = vsel %vm938, %v924, 0.0
      %946 = vadd.xlane.f32.xlu0 %v945
      %v947 = vpop.xlane.xlu0 %946
      %v948 = vsel %vm938, %v925, 0.0
      %949 = vadd.xlane.f32.xlu0 %v948
      %v950 = vpop.xlane.xlu0 %949
      %v951 = vsel %vm938, %v926, 0.0
      %952 = vadd.xlane.f32.xlu0 %v951
      %v953 = vpop.xlane.xlu0 %952
      %v954 = vsel %vm938, %v927, 0.0
      %955 = vadd.xlane.f32.xlu0 %v954
      %v956 = vpop.xlane.xlu0 %955
      %v957 = vsel %vm938, %v928, 0.0
      %958 = vadd.xlane.f32.xlu0 %v957
      %v959 = vpop.xlane.xlu0 %958
      %v960 = vsel %vm938, %v929, 0.0
      %961 = vadd.xlane.f32.xlu0 %v960
      %v962 = vpop.xlane.xlu0 %961
      %v963 = vsel %vm938, %v930, 0.0
      %964 = vadd.xlane.f32.xlu0 %v963
      %v965 = vpop.xlane.xlu0 %964
      %v966 = vsel %vm938, %v931, 0.0
      %967 = vadd.xlane.f32.xlu0 %v966
      %v968 = vpop.xlane.xlu0 %967
      %v969 = vsel %vm938, %v932, 0.0
      %970 = vadd.xlane.f32.xlu0 %v969
      %v971 = vpop.xlane.xlu0 %970
      %v972 = vsel %vm938, %v933, 0.0
      %973 = vadd.xlane.f32.xlu0 %v972
      %v974 = vpop.xlane.xlu0 %973
      %v975 = vsel %vm938, %v934, 0.0
      %976 = vadd.xlane.f32.xlu0 %v975
      %v977 = vpop.xlane.xlu0 %976
      %v978 = vsel %vm938, %v935, 0.0
      %979 = vadd.xlane.f32.xlu0 %v978
      %v980 = vpop.xlane.xlu0 %979
      %v981 = vsel %vm938, %v936, 0.0
      %982 = vadd.xlane.f32.xlu0 %v981
      %v983 = vpop.xlane.xlu0 %982
      %v984 = vsel %vm938, %v937, 0.0
      %985 = vadd.xlane.f32.xlu0 %v984
      %v986 = vpop.xlane.xlu0 %985
      %v987 = vld [vmem:[#allocation2] sm:$0x1]
      %v989 = vlaneseq
      %v990 = vshrl.u32 %v989, 7
      %v991 = vsub.s32 0, %v990
      %v992 = vrot.slane %v987, %v991
      %v994 = vadd.f32 %v941, %v992
      %v995 = vadd.f32 %v944, %v992
      %v996 = vadd.f32 %v947, %v992
      %v997 = vadd.f32 %v950, %v992
      %v998 = vadd.f32 %v953, %v992
      %v999 = vadd.f32 %v956, %v992
      %v1000 = vadd.f32 %v959, %v992
      %v1001 = vadd.f32 %v962, %v992
      %v1002 = vadd.f32 %v965, %v992
      %v1003 = vadd.f32 %v968, %v992
      %v1004 = vadd.f32 %v971, %v992
      %v1005 = vadd.f32 %v974, %v992
      %v1006 = vadd.f32 %v977, %v992
      %v1007 = vadd.f32 %v980, %v992
      %v1008 = vadd.f32 %v983, %v992
      %v1009 = vadd.f32 %v986, %v992
      %v1010 = vxor.u32 %v994, 2147483648
      %v1011 = vxor.u32 %v995, 2147483648
      %v1012 = vxor.u32 %v996, 2147483648
      %v1013 = vxor.u32 %v997, 2147483648
      %v1014 = vxor.u32 %v998, 2147483648
      %v1015 = vxor.u32 %v999, 2147483648
      %v1016 = vxor.u32 %v1000, 2147483648
      %v1017 = vxor.u32 %v1001, 2147483648
      %v1018 = vxor.u32 %v1002, 2147483648
      %v1019 = vxor.u32 %v1003, 2147483648
      %v1020 = vxor.u32 %v1004, 2147483648
      %v1021 = vxor.u32 %v1005, 2147483648
      %v1022 = vxor.u32 %v1006, 2147483648
      %v1023 = vxor.u32 %v1007, 2147483648
      %v1024 = vxor.u32 %v1008, 2147483648
      %v1025 = vxor.u32 %v1009, 2147483648
      %v1026 = vmul.f32 %v1010, 1.442695
      %v1027 = vpow.pop %v1026
      %v1028 = vmul.f32 %v1011, 1.442695
      %v1029 = vpow.pop %v1028
      %v1030 = vmul.f32 %v1012, 1.442695
      %v1031 = vpow.pop %v1030
      %v1032 = vmul.f32 %v1013, 1.442695
      %v1033 = vpow.pop %v1032
      %v1034 = vmul.f32 %v1014, 1.442695
      %v1035 = vpow.pop %v1034
      %v1036 = vmul.f32 %v1015, 1.442695
      %v1037 = vpow.pop %v1036
      %v1038 = vmul.f32 %v1016, 1.442695
      %v1039 = vpow.pop %v1038
      %v1040 = vmul.f32 %v1017, 1.442695
      %v1041 = vpow.pop %v1040
      %v1042 = vmul.f32 %v1018, 1.442695
      %v1043 = vpow.pop %v1042
      %v1044 = vmul.f32 %v1019, 1.442695
      %v1045 = vpow.pop %v1044
      %v1046 = vmul.f32 %v1020, 1.442695
      %v1047 = vpow.pop %v1046
      %v1048 = vmul.f32 %v1021, 1.442695
      %v1049 = vpow.pop %v1048
      %v1050 = vmul.f32 %v1022, 1.442695
      %v1051 = vpow.pop %v1050
      %v1052 = vmul.f32 %v1023, 1.442695
      %v1053 = vpow.pop %v1052
      %v1054 = vmul.f32 %v1024, 1.442695
      %v1055 = vpow.pop %v1054
      %v1056 = vmul.f32 %v1025, 1.442695
      %v1057 = vpow.pop %v1056
      %v1058 = vadd.f32 %v1027, 1.0
      %v1059 = vadd.f32 %v1029, 1.0
      %v1060 = vadd.f32 %v1031, 1.0
      %v1061 = vadd.f32 %v1033, 1.0
      %v1062 = vadd.f32 %v1035, 1.0
      %v1063 = vadd.f32 %v1037, 1.0
      %v1064 = vadd.f32 %v1039, 1.0
      %v1065 = vadd.f32 %v1041, 1.0
      %v1066 = vadd.f32 %v1043, 1.0
      %v1067 = vadd.f32 %v1045, 1.0
      %v1068 = vadd.f32 %v1047, 1.0
      %v1069 = vadd.f32 %v1049, 1.0
      %v1070 = vadd.f32 %v1051, 1.0
      %v1071 = vadd.f32 %v1053, 1.0
      %v1072 = vadd.f32 %v1055, 1.0
      %v1073 = vadd.f32 %v1057, 1.0
      %v1074 = vrcp.pop %v1058
      %v1075 = vmul.f32 1.0, %v1074
      %v1076 = vrcp.pop %v1059
      %v1077 = vmul.f32 1.0, %v1076
      %v1078 = vrcp.pop %v1060
      %v1079 = vmul.f32 1.0, %v1078
      %v1080 = vrcp.pop %v1061
      %v1081 = vmul.f32 1.0, %v1080
      %v1082 = vrcp.pop %v1062
      %v1083 = vmul.f32 1.0, %v1082
      %v1084 = vrcp.pop %v1063
      %v1085 = vmul.f32 1.0, %v1084
      %v1086 = vrcp.pop %v1064
      %v1087 = vmul.f32 1.0, %v1086
      %v1088 = vrcp.pop %v1065
      %v1089 = vmul.f32 1.0, %v1088
      %v1090 = vrcp.pop %v1066
      %v1091 = vmul.f32 1.0, %v1090
      %v1092 = vrcp.pop %v1067
      %v1093 = vmul.f32 1.0, %v1092
      %v1094 = vrcp.pop %v1068
      %v1095 = vmul.f32 1.0, %v1094
      %v1096 = vrcp.pop %v1069
      %v1097 = vmul.f32 1.0, %v1096
      %v1098 = vrcp.pop %v1070
      %v1099 = vmul.f32 1.0, %v1098
      %v1100 = vrcp.pop %v1071
      %v1101 = vmul.f32 1.0, %v1100
      %v1102 = vrcp.pop %v1072
      %v1103 = vmul.f32 1.0, %v1102
      %v1104 = vrcp.pop %v1073
      %v1105 = vmul.f32 1.0, %v1104
      %1107 = vset.pattern.permute.xlu0 0
      %1108 = vperm.xlu0 %1107, %v1075
      %v1109 = vpop.permute.xlu0 %1108
      %1112 = vset.pattern.permute.xlu0 0
      %1113 = vperm.xlu0 %1112, %v1077
      %v1114 = vpop.permute.xlu0 %1113
      %1117 = vset.pattern.permute.xlu0 0
      %1118 = vperm.xlu0 %1117, %v1079
      %v1119 = vpop.permute.xlu0 %1118
      %1122 = vset.pattern.permute.xlu0 0
      %1123 = vperm.xlu0 %1122, %v1081
      %v1124 = vpop.permute.xlu0 %1123
      %1127 = vset.pattern.permute.xlu0 0
      %1128 = vperm.xlu0 %1127, %v1083
      %v1129 = vpop.permute.xlu0 %1128
      %1132 = vset.pattern.permute.xlu0 0
      %1133 = vperm.xlu0 %1132, %v1085
      %v1134 = vpop.permute.xlu0 %1133
      %1137 = vset.pattern.permute.xlu0 0
      %1138 = vperm.xlu0 %1137, %v1087
      %v1139 = vpop.permute.xlu0 %1138
      %1142 = vset.pattern.permute.xlu0 0
      %1143 = vperm.xlu0 %1142, %v1089
      %v1144 = vpop.permute.xlu0 %1143
      %1147 = vset.pattern.permute.xlu0 0
      %1148 = vperm.xlu0 %1147, %v1091
      %v1149 = vpop.permute.xlu0 %1148
      %1152 = vset.pattern.permute.xlu0 0
      %1153 = vperm.xlu0 %1152, %v1093
      %v1154 = vpop.permute.xlu0 %1153
      %1157 = vset.pattern.permute.xlu0 0
      %1158 = vperm.xlu0 %1157, %v1095
      %v1159 = vpop.permute.xlu0 %1158
      %1162 = vset.pattern.permute.xlu0 0
      %1163 = vperm.xlu0 %1162, %v1097
      %v1164 = vpop.permute.xlu0 %1163
      %1167 = vset.pattern.permute.xlu0 0
      %1168 = vperm.xlu0 %1167, %v1099
      %v1169 = vpop.permute.xlu0 %1168
      %1172 = vset.pattern.permute.xlu0 0
      %1173 = vperm.xlu0 %1172, %v1101
      %v1174 = vpop.permute.xlu0 %1173
      %1177 = vset.pattern.permute.xlu0 0
      %1178 = vperm.xlu0 %1177, %v1103
      %v1179 = vpop.permute.xlu0 %1178
      %1182 = vset.pattern.permute.xlu0 0
      %1183 = vperm.xlu0 %1182, %v1105
      %v1184 = vpop.permute.xlu0 %1183
      %v1186 = vmul.f32 %v533, %v1109
      %v1187 = vmul.f32 %v534, %v1114
      %v1188 = vmul.f32 %v535, %v1119
      %v1189 = vmul.f32 %v536, %v1124
      %v1190 = vmul.f32 %v537, %v1129
      %v1191 = vmul.f32 %v538, %v1134
      %v1192 = vmul.f32 %v539, %v1139
      %v1193 = vmul.f32 %v540, %v1144
      %v1194 = vmul.f32 %v541, %v1149
      %v1195 = vmul.f32 %v542, %v1154
      %v1196 = vmul.f32 %v543, %v1159
      %v1197 = vmul.f32 %v544, %v1164
      %v1198 = vmul.f32 %v545, %v1169
      %v1199 = vmul.f32 %v546, %v1174
      %v1200 = vmul.f32 %v547, %v1179
      %v1201 = vmul.f32 %v548, %v1184
      %v1202 = vlaneseq
      %v1203 = vshrl.u32 %v1202, 7
      %v1204 = vsub.s32 0, %v1203
      %v1205 = vrot.slane %v686, %v1204
      %v1206 = vmul.f32 %v549, %v1205
      %v1207 = vmul.f32 %v550, %v1205
      %v1208 = vmul.f32 %v551, %v1205
      %v1209 = vmul.f32 %v552, %v1205
      %v1210 = vmul.f32 %v553, %v1205
      %v1211 = vmul.f32 %v554, %v1205
      %v1212 = vmul.f32 %v555, %v1205
      %v1213 = vmul.f32 %v556, %v1205
      %v1214 = vmul.f32 %v557, %v1205
      %v1215 = vmul.f32 %v558, %v1205
      %v1216 = vmul.f32 %v559, %v1205
      %v1217 = vmul.f32 %v560, %v1205
      %v1218 = vmul.f32 %v561, %v1205
      %v1219 = vmul.f32 %v562, %v1205
      %v1220 = vmul.f32 %v563, %v1205
      %v1221 = vmul.f32 %v564, %v1205
      %v1222 = vadd.f32 %v1186, %v1206
      %v1223 = vadd.f32 %v1187, %v1207
      %v1224 = vadd.f32 %v1188, %v1208
      %v1225 = vadd.f32 %v1189, %v1209
      %v1226 = vadd.f32 %v1190, %v1210
      %v1227 = vadd.f32 %v1191, %v1211
      %v1228 = vadd.f32 %v1192, %v1212
      %v1229 = vadd.f32 %v1193, %v1213
      %v1230 = vadd.f32 %v1194, %v1214
      %v1231 = vadd.f32 %v1195, %v1215
      %v1232 = vadd.f32 %v1196, %v1216
      %v1233 = vadd.f32 %v1197, %v1217
      %v1234 = vadd.f32 %v1198, %v1218
      %v1235 = vadd.f32 %v1199, %v1219
      %v1236 = vadd.f32 %v1200, %v1220
      %v1237 = vadd.f32 %v1201, %v1221
      %v1238 = vld [vmem:[%s11] sm:$0xff]
      %v1239 = vld [vmem:[%s11 + $0x8] sm:$0xff]
      %v1240 = vld [vmem:[%s11 + $0x10] sm:$0xff]
      %v1241 = vld [vmem:[%s11 + $0x18] sm:$0xff]
      %v1242 = vld [vmem:[%s11 + $0x20] sm:$0xff]
      %v1243 = vld [vmem:[%s11 + $0x28] sm:$0xff]
      %v1244 = vld [vmem:[%s11 + $0x30] sm:$0xff]
      %v1245 = vld [vmem:[%s11 + $0x38] sm:$0xff]
      %v1246 = vpack.c.bf16 %v1223, %v1222
      %v1247 = vpack.c.bf16 %v1225, %v1224
      %v1248 = vpack.c.bf16 %v1227, %v1226
      %v1249 = vpack.c.bf16 %v1229, %v1228
      %v1250 = vpack.c.bf16 %v1231, %v1230
      %v1251 = vpack.c.bf16 %v1233, %v1232
      %v1252 = vpack.c.bf16 %v1235, %v1234
      %v1253 = vpack.c.bf16 %v1237, %v1236
      %v1254 = vpack.c.bf16 %v1239, %v1238
      %v1255 = vpack.c.bf16 %v1241, %v1240
      %v1256 = vpack.c.bf16 %v1243, %v1242
      %v1257 = vpack.c.bf16 %v1245, %v1244
      %v1258 = vld [vmem:[%s12] sm:$0x1]
      %v1260 = vlaneseq
      %v1261 = vshrl.u32 %v1260, 7
      %v1262 = vsub.s32 0, %v1261
      %v1263 = vrot.slane %v1258, %v1262
      %v1266 = vsel %vm580, %v1246, 0
      %v1269 = vsel %vm580, %v1247, 0
      %v1272 = vsel %vm580, %v1248, 0
      %v1275 = vsel %vm580, %v1249, 0
      %v1278 = vsel %vm580, %v1250, 0
      %v1281 = vsel %vm580, %v1251, 0
      %v1284 = vsel %vm580, %v1252, 0
      %v1287 = vsel %vm580, %v1253, 0
      %1289 = vmatprep.subr.bf16.mxu0 0
      %1290 = vmatpush1.bf16.msra.mxu0 0
      %1291 = vmatprep.subr.bf16.mxu0 0
      %1292 = vmatpush1.bf16.msra.mxu0 0
      %1293 = vmatprep.subr.bf16.mxu0 0
      %1294 = vmatpush1.bf16.msra.mxu0 0
      %1295 = vmatprep.subr.bf16.mxu0 0
      %1296 = vmatpush1.bf16.msra.mxu0 0
      %1297 = vmatprep.subr.bf16.mxu0 0
      %1298 = vmatpush1.bf16.msra.mxu0 %v1257
      %1299 = vmatprep.subr.bf16.mxu0 0
      %1300 = vmatpush1.bf16.msra.mxu0 %v1256
      %1301 = vmatprep.subr.bf16.mxu0 0
      %1302 = vmatpush1.bf16.msra.mxu0 %v1255
      %1303 = vmatprep.subr.bf16.mxu0 0
      %1304 = vmatpush1.bf16.msra.mxu0 %v1254
      %1305 = vmatprep.subr.bf16.mxu0 0
      %1306 = vmatpush2.bf16.msra.mxu0 0
      %1307 = vmatprep.subr.bf16.mxu0 0
      %1308 = vmatpush2.bf16.msra.mxu0 0
      %1309 = vmatprep.subr.bf16.mxu0 0
      %1310 = vmatpush2.bf16.msra.mxu0 0
      %1311 = vmatprep.subr.bf16.mxu0 0
      %1312 = vmatpush2.bf16.msra.mxu0 0
      %1313 = vmatprep.subr.bf16.mxu0 0
      %1314 = vmatpush2.bf16.msra.mxu0 0
      %1315 = vmatprep.subr.bf16.mxu0 0
      %1316 = vmatpush2.bf16.msra.mxu0 0
      %1317 = vmatprep.subr.bf16.mxu0 0
      %1318 = vmatpush2.bf16.msra.mxu0 0
      %1319 = vmatprep.subr.bf16.mxu0 0
      %1320 = vmatpush2.bf16.msra.mxu0 0
      %1321 = vmatprep.mubr.bf16.mxu0 0
      %1322 = vmatmul.mubr.bf16.gmra.mxu0 %v1266
      %v1323 = vpop.f32.mrf.mxu0
      %v1324 = vadd.f32 %v1263, %v1323
      %v1325 = vpop.f32.mrf.mxu0
      %v1326 = vpop.f32.mrf.mxu0
      %v1327 = vadd.f32 %v1263, %v1326
      %v1328 = vpop.f32.mrf.mxu0
      %1329 = vmatprep.mubr.bf16.mxu0 0
      %1330 = vmatmul.mubr.bf16.gmra.mxu0 %v1269
      %v1331 = vpop.f32.mrf.mxu0
      %v1332 = vadd.f32 %v1263, %v1331
      %v1333 = vpop.f32.mrf.mxu0
      %v1334 = vpop.f32.mrf.mxu0
      %v1335 = vadd.f32 %v1263, %v1334
      %v1336 = vpop.f32.mrf.mxu0
      %1337 = vmatprep.mubr.bf16.mxu0 0
      %1338 = vmatmul.mubr.bf16.gmra.mxu0 %v1272
      %v1339 = vpop.f32.mrf.mxu0
      %v1340 = vadd.f32 %v1263, %v1339
      %v1341 = vpop.f32.mrf.mxu0
      %v1342 = vpop.f32.mrf.mxu0
      %v1343 = vadd.f32 %v1263, %v1342
      %v1344 = vpop.f32.mrf.mxu0
      %1345 = vmatprep.mubr.bf16.mxu0 0
      %1346 = vmatmul.mubr.bf16.gmra.mxu0 %v1275
      %v1347 = vpop.f32.mrf.mxu0
      %v1348 = vadd.f32 %v1263, %v1347
      %v1349 = vpop.f32.mrf.mxu0
      %v1350 = vpop.f32.mrf.mxu0
      %v1351 = vadd.f32 %v1263, %v1350
      %v1352 = vpop.f32.mrf.mxu0
      %1353 = vmatprep.mubr.bf16.mxu0 0
      %1354 = vmatmul.mubr.bf16.gmra.mxu0 %v1278
      %v1355 = vpop.f32.mrf.mxu0
      %v1356 = vadd.f32 %v1263, %v1355
      %v1357 = vpop.f32.mrf.mxu0
      %v1358 = vpop.f32.mrf.mxu0
      %v1359 = vadd.f32 %v1263, %v1358
      %v1360 = vpop.f32.mrf.mxu0
      %1361 = vmatprep.mubr.bf16.mxu0 0
      %1362 = vmatmul.mubr.bf16.gmra.mxu0 %v1281
      %v1363 = vpop.f32.mrf.mxu0
      %v1364 = vadd.f32 %v1263, %v1363
      %v1365 = vpop.f32.mrf.mxu0
      %v1366 = vpop.f32.mrf.mxu0
      %v1367 = vadd.f32 %v1263, %v1366
      %v1368 = vpop.f32.mrf.mxu0
      %1369 = vmatprep.mubr.bf16.mxu0 0
      %1370 = vmatmul.mubr.bf16.gmra.mxu0 %v1284
      %v1371 = vpop.f32.mrf.mxu0
      %v1372 = vadd.f32 %v1263, %v1371
      %v1373 = vpop.f32.mrf.mxu0
      %v1374 = vpop.f32.mrf.mxu0
      %v1375 = vadd.f32 %v1263, %v1374
      %v1376 = vpop.f32.mrf.mxu0
      %1377 = vmatprep.mubr.bf16.mxu0 0
      %1378 = vmatmul.mubr.bf16.gmra.mxu0 %v1287
      %v1379 = vpop.f32.mrf.mxu0
      %v1380 = vadd.f32 %v1263, %v1379
      %v1381 = vpop.f32.mrf.mxu0
      %v1382 = vpop.f32.mrf.mxu0
      %v1383 = vadd.f32 %v1263, %v1382
      %v1384 = vpop.f32.mrf.mxu0
      %1385 = vdwg.mxu0
      %1386 = vst.msk [vmem:[%s530] sm:$0xff] %vm580, %v1324
      %1387 = vst.msk [vmem:[%s530 + $0x8] sm:$0xff] %vm580, %v1327
      %1388 = vst.msk [vmem:[%s530 + $0x10] sm:$0xff] %vm580, %v1332
      %1389 = vst.msk [vmem:[%s530 + $0x18] sm:$0xff] %vm580, %v1335
      %1390 = vst.msk [vmem:[%s530 + $0x20] sm:$0xff] %vm580, %v1340
      %1391 = vst.msk [vmem:[%s530 + $0x28] sm:$0xff] %vm580, %v1343
      %1392 = vst.msk [vmem:[%s530 + $0x30] sm:$0xff] %vm580, %v1348
      %1393 = vst.msk [vmem:[%s530 + $0x38] sm:$0xff] %vm580, %v1351
      %1394 = vst.msk [vmem:[%s530 + $0x40] sm:$0xff] %vm580, %v1356
      %1395 = vst.msk [vmem:[%s530 + $0x48] sm:$0xff] %vm580, %v1359
      %1396 = vst.msk [vmem:[%s530 + $0x50] sm:$0xff] %vm580, %v1364
      %1397 = vst.msk [vmem:[%s530 + $0x58] sm:$0xff] %vm580, %v1367
      %1398 = vst.msk [vmem:[%s530 + $0x60] sm:$0xff] %vm580, %v1372
      %1399 = vst.msk [vmem:[%s530 + $0x68] sm:$0xff] %vm580, %v1375
      %1400 = vst.msk [vmem:[%s530 + $0x70] sm:$0xff] %vm580, %v1380
      %1401 = vst.msk [vmem:[%s530 + $0x78] sm:$0xff] %vm580, %v1383
      %s1402 = smul.u32 16, %s31
      %p1403 = scmp.lt.s32.totalorder %s30, 1
      %s1404 = scalar_select %p1403, %s30, 1
      %p1405 = scmp.lt.s32.totalorder %s1402, 31
      %s1406 = scalar_select %p1405, %s1402, 31
      %s1407 = smul.addr %s1404, 32
      %s1408 = sadd.s32 %s1406, %s1407
      %s1409 = smul.addr %s1408, 8
      %s1410 = scalar_lea.vmem %s13, %s1409
      // Predicated region
      $region73: #{adaptive_channel_attention_forward.5} parent=71 // pred_check
        %p1411 = pneg %p350
      $region74: #{adaptive_channel_attention_forward.5} parent=71 // pred_check_branch
        %1413 = sbr.rel (%p1411) target = $region76
      $region75: #{adaptive_channel_attention_forward.5} parent=71 // pred_region
        %s1414 = smul.u32 16, %s31
      $region76: #{adaptive_channel_attention_forward.5} parent=71 // pred_fallthru
        _
    $region72: #{adaptive_channel_attention_forward.5} parent=5 // pred_fallthru
      _
    %p1415 = scmp.le.s32.totalorder 2, %s21
    // Predicated region
    $region77: #{adaptive_channel_attention_forward.5} parent=5 // pred_check
      %p1416 = pneg %p1415
    $region78: #{adaptive_channel_attention_forward.5} parent=5 // pred_check_branch
      %1418 = sbr.rel (%p1416) target = $region80
    $region79: #{adaptive_channel_attention_forward.5} parent=5 // pred_region
      %s1419 = ssub.s32 %s21, 2
      // Predicated region
      $region81: #{adaptive_channel_attention_forward.5} parent=79 // pred_check
        %p1420 = pneg %p356
      $region82: #{adaptive_channel_attention_forward.5} parent=79 // pred_check_branch
        %1422 = sbr.rel (%p1420) target = $region84
      $region83: #{adaptive_channel_attention_forward.5} parent=79 // pred_region
        %s1423 = smul.u32 16, %s33
        %p1424 = scmp.lt.s32.totalorder %s32, 1
        %s1425 = scalar_select %p1424, %s32, 1
        %p1426 = scmp.lt.s32.totalorder %s1423, 31
        %s1427 = scalar_select %p1426, %s1423, 31
        %s1428 = smul.addr %s1425, 32
        %s1429 = sadd.s32 %s1427, %s1428
        %s1430 = smul.addr %s1429, 8
        %s1431 = scalar_lea.vmem %s13, %s1430
      $region84: #{adaptive_channel_attention_forward.5} parent=79 // pred_fallthru
        _
    $region80: #{adaptive_channel_attention_forward.5} parent=5 // pred_fallthru
      _
  $region6: #{adaptive_channel_attention_forward.5} parent=0 // loop_footer
    %s25 = sadd.s32 1, %s21
  $region7: #{adaptive_channel_attention_forward.5} parent=0 // loop_footer_branch
    %20 = sbr.rel target = $region3
  $region8: #{adaptive_channel_attention_forward.5} parent=0 // loop_exit
    _

// kernel: adaptive_channel_attention_forward.3
$region0: #{adaptive_channel_attention_forward.3}
  #allocation0 [shape = 'u32[]', space=smem, size = 0x4, offset = 0x4, fixed_abs, tag = 'smem constant byte address 0x4 - core index']
  #allocation1 [shape = 'u32[144,128]{1,0:T(1,128)}', space=vmem, size = 0x12000, scoped, tag = 'internal scratch']
  %s0 = inlined_call_operand.vmem [shape: f32[2,256,64], index: 0, kind: input, shape index: {}]
  %s1 = inlined_call_operand.vmem [shape: f32[64,64], index: 1, kind: input, shape index: {}]
  %s2 = inlined_call_operand.vmem [shape: f32[64,64], index: 2, kind: input, shape index: {}]
  %s3 = inlined_call_operand.vmem [shape: f32[64,64], index: 3, kind: input, shape index: {}]
  %s4 = inlined_call_operand.vmem [shape: f32[1,64], index: 4, kind: input, shape index: {}]
  %s5 = inlined_call_operand.vmem [shape: f32[1,64], index: 5, kind: input, shape index: {}]
  %s6 = inlined_call_operand.vmem [shape: f32[1,64], index: 6, kind: input, shape index: {}]
  %s7 = inlined_call_operand.vmem [shape: f32[1,64], index: 7, kind: input, shape index: {}]
  %s8 = inlined_call_operand.vmem [shape: f32[64,64], index: 8, kind: input, shape index: {}]
  %s9 = inlined_call_operand.vmem [shape: f32[2,256,64], index: 9, kind: output, shape index: {0}]
  %s10 = inlined_call_operand.vmem [shape: f32[2,1,64], index: 10, kind: output, shape index: {1}]
  %s11 = inlined_call_operand.vmem [shape: f32[2,256,64], index: 11, kind: output, shape index: {2}]
  %12 = xla_tuple %s9, %s10, %s11
  %s13 = sld [smem:[#allocation0]]
  $region85: #{adaptive_channel_attention_forward.3} parent=0
    _
  %s15 = ssub.s32 1, %s13
  %s16 = scalar_select 0, %s15, %s13
  loop: start=0, step=1, limit=4
  $region2: #{adaptive_channel_attention_forward.3} parent=0 // loop_pre_header
    _
  $region3: #{adaptive_channel_attention_forward.3} parent=0 // loop_header
    %s18 = sphi 0, %s22
    %p19 = scmp.ge.s32.totalorder %s18, 4
    %s28 = sphi 0, %s30
    %s31 = sphi 0, %s28
    %s32 = sphi 0, %s31
    %s48 = sphi 0, %s32
    %s52 = sphi 0, %s52
    %s54 = sphi 0, %s52
    %s55 = sphi 0, %s54
    %s69 = sphi 0, %s55
    %s73 = sphi 0, %s73
    %s75 = sphi 0, %s73
    %s76 = sphi 0, %s75
    %s90 = sphi 0, %s76
    %s94 = sphi 0, %s94
    %s96 = sphi 0, %s94
    %s97 = sphi 0, %s96
    %s111 = sphi 0, %s97
    %s115 = sphi 0, %s115
    %s117 = sphi 0, %s115
    %s118 = sphi 0, %s117
    %s132 = sphi 0, %s118
    %s136 = sphi 0, %s136
    %s138 = sphi 0, %s136
    %s139 = sphi 0, %s138
    %s153 = sphi 0, %s139
    %s157 = sphi 0, %s157
    %s159 = sphi 0, %s157
    %s160 = sphi 0, %s159
    %s174 = sphi 0, %s160
    %s178 = sphi 0, %s178
    %s180 = sphi 0, %s178
    %s181 = sphi 0, %s180
    %s195 = sphi 0, %s181
    %s199 = sphi 0, %s199
    %s201 = sphi 0, %s199
    %s202 = sphi 0, %s201
    %s216 = sphi 0, %s202
    %s222 = sphi 0, %s224
    %s225 = sphi 0, %s222
    %s226 = sphi 0, %s225
    %s242 = sphi 0, %s226
    %s248 = sphi 0, %s250
    %s251 = sphi 0, %s248
    %s252 = sphi 0, %s251
    %s268 = sphi 0, %s252
    %s274 = sphi 0, %s276
    %s277 = sphi 0, %s274
    %s278 = sphi 0, %s277
    %s294 = sphi 0, %s278
  $region4: #{adaptive_channel_attention_forward.3} parent=0 // loop_header_branch
    %21 = sbr.rel (%p19) target = $region8
  $region5: #{adaptive_channel_attention_forward.3} parent=0 // loop_body
    %s23 = ssub.s32 %s18, 1
    %s24 = ssub.s32 %s18, 2
    %s25 = sadd.s32 %s18, 1
    %s26 = ssub.s32 %s18, %s25
    %p27 = scmp.eq.s32.totalorder %s26, 0
    %s29 = sadd.s32 %s28, 1
    %s30 = scalar_select %p27, %s28, %s29
    %p33 = pneg %p27
    %p34 = scmp.eq.s32.totalorder %s18, 1
    %p35 = por %p33, %p34
    %p36 = scmp.ne.s32.totalorder %s28, %s31
    %p37 = scmp.eq.s32.totalorder %s18, 0
    %p38 = por %p36, %p37
    %p39 = scmp.ne.s32.totalorder %s28, %s31
    %p40 = scmp.eq.s32.totalorder %s23, 1
    %p41 = por %p39, %p40
    %p42 = scmp.ne.s32.totalorder %s31, %s32
    %p43 = scmp.eq.s32.totalorder %s23, 0
    %p44 = por %p42, %p43
    %p45 = scmp.ne.s32.totalorder %s31, %s32
    %p46 = scmp.eq.s32.totalorder %s24, 1
    %p47 = por %p45, %p46
    %p49 = scmp.ne.s32.totalorder %s32, %s48
    %p50 = scmp.eq.s32.totalorder %s24, 0
    %p51 = por %p49, %p50
    %s53 = sadd.s32 %s52, 1
    %p56 = scmp.eq.s32.totalorder %s18, 1
    %p57 = scmp.ne.s32.totalorder %s52, %s54
    %p58 = scmp.eq.s32.totalorder %s18, 0
    %p59 = por %p57, %p58
    %p60 = scmp.ne.s32.totalorder %s52, %s54
    %p61 = scmp.eq.s32.totalorder %s23, 1
    %p62 = por %p60, %p61
    %p63 = scmp.ne.s32.totalorder %s54, %s55
    %p64 = scmp.eq.s32.totalorder %s23, 0
    %p65 = por %p63, %p64
    %p66 = scmp.ne.s32.totalorder %s54, %s55
    %p67 = scmp.eq.s32.totalorder %s24, 1
    %p68 = por %p66, %p67
    %p70 = scmp.ne.s32.totalorder %s55, %s69
    %p71 = scmp.eq.s32.totalorder %s24, 0
    %p72 = por %p70, %p71
    %s74 = sadd.s32 %s73, 1
    %p77 = scmp.eq.s32.totalorder %s18, 1
    %p78 = scmp.ne.s32.totalorder %s73, %s75
    %p79 = scmp.eq.s32.totalorder %s18, 0
    %p80 = por %p78, %p79
    %p81 = scmp.ne.s32.totalorder %s73, %s75
    %p82 = scmp.eq.s32.totalorder %s23, 1
    %p83 = por %p81, %p82
    %p84 = scmp.ne.s32.totalorder %s75, %s76
    %p85 = scmp.eq.s32.totalorder %s23, 0
    %p86 = por %p84, %p85
    %p87 = scmp.ne.s32.totalorder %s75, %s76
    %p88 = scmp.eq.s32.totalorder %s24, 1
    %p89 = por %p87, %p88
    %p91 = scmp.ne.s32.totalorder %s76, %s90
    %p92 = scmp.eq.s32.totalorder %s24, 0
    %p93 = por %p91, %p92
    %s95 = sadd.s32 %s94, 1
    %p98 = scmp.eq.s32.totalorder %s18, 1
    %p99 = scmp.ne.s32.totalorder %s94, %s96
    %p100 = scmp.eq.s32.totalorder %s18, 0
    %p101 = por %p99, %p100
    %p102 = scmp.ne.s32.totalorder %s94, %s96
    %p103 = scmp.eq.s32.totalorder %s23, 1
    %p104 = por %p102, %p103
    %p105 = scmp.ne.s32.totalorder %s96, %s97
    %p106 = scmp.eq.s32.totalorder %s23, 0
    %p107 = por %p105, %p106
    %p108 = scmp.ne.s32.totalorder %s96, %s97
    %p109 = scmp.eq.s32.totalorder %s24, 1
    %p110 = por %p108, %p109
    %p112 = scmp.ne.s32.totalorder %s97, %s111
    %p113 = scmp.eq.s32.totalorder %s24, 0
    %p114 = por %p112, %p113
    %s116 = sadd.s32 %s115, 1
    %p119 = scmp.eq.s32.totalorder %s18, 1
    %p120 = scmp.ne.s32.totalorder %s115, %s117
    %p121 = scmp.eq.s32.totalorder %s18, 0
    %p122 = por %p120, %p121
    %p123 = scmp.ne.s32.totalorder %s115, %s117
    %p124 = scmp.eq.s32.totalorder %s23, 1
    %p125 = por %p123, %p124
    %p126 = scmp.ne.s32.totalorder %s117, %s118
    %p127 = scmp.eq.s32.totalorder %s23, 0
    %p128 = por %p126, %p127
    %p129 = scmp.ne.s32.totalorder %s117, %s118
    %p130 = scmp.eq.s32.totalorder %s24, 1
    %p131 = por %p129, %p130
    %p133 = scmp.ne.s32.totalorder %s118, %s132
    %p134 = scmp.eq.s32.totalorder %s24, 0
    %p135 = por %p133, %p134
    %s137 = sadd.s32 %s136, 1
    %p140 = scmp.eq.s32.totalorder %s18, 1
    %p141 = scmp.ne.s32.totalorder %s136, %s138
    %p142 = scmp.eq.s32.totalorder %s18, 0
    %p143 = por %p141, %p142
    %p144 = scmp.ne.s32.totalorder %s136, %s138
    %p145 = scmp.eq.s32.totalorder %s23, 1
    %p146 = por %p144, %p145
    %p147 = scmp.ne.s32.totalorder %s138, %s139
    %p148 = scmp.eq.s32.totalorder %s23, 0
    %p149 = por %p147, %p148
    %p150 = scmp.ne.s32.totalorder %s138, %s139
    %p151 = scmp.eq.s32.totalorder %s24, 1
    %p152 = por %p150, %p151
    %p154 = scmp.ne.s32.totalorder %s139, %s153
    %p155 = scmp.eq.s32.totalorder %s24, 0
    %p156 = por %p154, %p155
    %s158 = sadd.s32 %s157, 1
    %p161 = scmp.eq.s32.totalorder %s18, 1
    %p162 = scmp.ne.s32.totalorder %s157, %s159
    %p163 = scmp.eq.s32.totalorder %s18, 0
    %p164 = por %p162, %p163
    %p165 = scmp.ne.s32.totalorder %s157, %s159
    %p166 = scmp.eq.s32.totalorder %s23, 1
    %p167 = por %p165, %p166
    %p168 = scmp.ne.s32.totalorder %s159, %s160
    %p169 = scmp.eq.s32.totalorder %s23, 0
    %p170 = por %p168, %p169
    %p171 = scmp.ne.s32.totalorder %s159, %s160
    %p172 = scmp.eq.s32.totalorder %s24, 1
    %p173 = por %p171, %p172
    %p175 = scmp.ne.s32.totalorder %s160, %s174
    %p176 = scmp.eq.s32.totalorder %s24, 0
    %p177 = por %p175, %p176
    %s179 = sadd.s32 %s178, 1
    %p182 = scmp.eq.s32.totalorder %s18, 1
    %p183 = scmp.ne.s32.totalorder %s178, %s180
    %p184 = scmp.eq.s32.totalorder %s18, 0
    %p185 = por %p183, %p184
    %p186 = scmp.ne.s32.totalorder %s178, %s180
    %p187 = scmp.eq.s32.totalorder %s23, 1
    %p188 = por %p186, %p187
    %p189 = scmp.ne.s32.totalorder %s180, %s181
    %p190 = scmp.eq.s32.totalorder %s23, 0
    %p191 = por %p189, %p190
    %p192 = scmp.ne.s32.totalorder %s180, %s181
    %p193 = scmp.eq.s32.totalorder %s24, 1
    %p194 = por %p192, %p193
    %p196 = scmp.ne.s32.totalorder %s181, %s195
    %p197 = scmp.eq.s32.totalorder %s24, 0
    %p198 = por %p196, %p197
    %s200 = sadd.s32 %s199, 1
    %p203 = scmp.eq.s32.totalorder %s18, 1
    %p204 = scmp.ne.s32.totalorder %s199, %s201
    %p205 = scmp.eq.s32.totalorder %s18, 0
    %p206 = por %p204, %p205
    %p207 = scmp.ne.s32.totalorder %s199, %s201
    %p208 = scmp.eq.s32.totalorder %s23, 1
    %p209 = por %p207, %p208
    %p210 = scmp.ne.s32.totalorder %s201, %s202
    %p211 = scmp.eq.s32.totalorder %s23, 0
    %p212 = por %p210, %p211
    %p213 = scmp.ne.s32.totalorder %s201, %s202
    %p214 = scmp.eq.s32.totalorder %s24, 1
    %p215 = por %p213, %p214
    %p217 = scmp.ne.s32.totalorder %s202, %s216
    %p218 = scmp.eq.s32.totalorder %s24, 0
    %p219 = por %p217, %p218
    %s220 = ssub.s32 %s18, %s25
    %p221 = scmp.eq.s32.totalorder %s220, 0
    %s223 = sadd.s32 %s222, 1
    %s224 = scalar_select %p221, %s222, %s223
    %p227 = pneg %p221
    %p228 = scmp.eq.s32.totalorder %s18, 1
    %p229 = por %p227, %p228
    %p230 = scmp.ne.s32.totalorder %s222, %s225
    %p231 = scmp.eq.s32.totalorder %s18, 0
    %p232 = por %p230, %p231
    %p233 = scmp.ne.s32.totalorder %s222, %s225
    %p234 = scmp.eq.s32.totalorder %s23, 1
    %p235 = por %p233, %p234
    %p236 = scmp.ne.s32.totalorder %s225, %s226
    %p237 = scmp.eq.s32.totalorder %s23, 0
    %p238 = por %p236, %p237
    %p239 = scmp.ne.s32.totalorder %s225, %s226
    %p240 = scmp.eq.s32.totalorder %s24, 1
    %p241 = por %p239, %p240
    %p243 = scmp.ne.s32.totalorder %s226, %s242
    %p244 = scmp.eq.s32.totalorder %s24, 0
    %p245 = por %p243, %p244
    %s246 = ssub.s32 %s18, %s25
    %p247 = scmp.eq.s32.totalorder %s246, 0
    %s249 = sadd.s32 %s248, 1
    %s250 = scalar_select %p247, %s248, %s249
    %p253 = pneg %p247
    %p254 = scmp.eq.s32.totalorder %s18, 1
    %p255 = por %p253, %p254
    %p256 = scmp.ne.s32.totalorder %s248, %s251
    %p257 = scmp.eq.s32.totalorder %s18, 0
    %p258 = por %p256, %p257
    %p259 = scmp.ne.s32.totalorder %s248, %s251
    %p260 = scmp.eq.s32.totalorder %s23, 1
    %p261 = por %p259, %p260
    %p262 = scmp.ne.s32.totalorder %s251, %s252
    %p263 = scmp.eq.s32.totalorder %s23, 0
    %p264 = por %p262, %p263
    %p265 = scmp.ne.s32.totalorder %s251, %s252
    %p266 = scmp.eq.s32.totalorder %s24, 1
    %p267 = por %p265, %p266
    %p269 = scmp.ne.s32.totalorder %s252, %s268
    %p270 = scmp.eq.s32.totalorder %s24, 0
    %p271 = por %p269, %p270
    %s272 = ssub.s32 %s18, %s25
    %p273 = scmp.eq.s32.totalorder %s272, 0
    %s275 = sadd.s32 %s274, 1
    %s276 = scalar_select %p273, %s274, %s275
    %p279 = pneg %p273
    %p280 = scmp.eq.s32.totalorder %s18, 1
    %p281 = por %p279, %p280
    %p282 = scmp.ne.s32.totalorder %s274, %s277
    %p283 = scmp.eq.s32.totalorder %s18, 0
    %p284 = por %p282, %p283
    %p285 = scmp.ne.s32.totalorder %s274, %s277
    %p286 = scmp.eq.s32.totalorder %s23, 1
    %p287 = por %p285, %p286
    %p288 = scmp.ne.s32.totalorder %s277, %s278
    %p289 = scmp.eq.s32.totalorder %s23, 0
    %p290 = por %p288, %p289
    %p291 = scmp.ne.s32.totalorder %s277, %s278
    %p292 = scmp.eq.s32.totalorder %s24, 1
    %p293 = por %p291, %p292
    %p295 = scmp.ne.s32.totalorder %s278, %s294
    %p296 = scmp.eq.s32.totalorder %s24, 0
    %p297 = por %p295, %p296
    %p298 = scmp.le.s32.totalorder 1, %s18
    %p299 = scmp.lt.s32.totalorder %s18, 3
    %p300 = pnand %p298, %p299
    %p301 = pneg %p300
    // Predicated region
    $region9: #{adaptive_channel_attention_forward.3} parent=5 // pred_check
      _
    $region10: #{adaptive_channel_attention_forward.3} parent=5 // pred_check_branch
      %303 = sbr.rel (%p300) target = $region12
    $region11: #{adaptive_channel_attention_forward.3} parent=5 // pred_region
      %s304 = ssub.s32 %s18, 1
      // Predicated region
      $region13: #{adaptive_channel_attention_forward.3} parent=11 // pred_check
        %p305 = pneg %p65
      $region14: #{adaptive_channel_attention_forward.3} parent=11 // pred_check_branch
        %307 = sbr.rel (%p305) target = $region16
      $region15: #{adaptive_channel_attention_forward.3} parent=11 // pred_region
        _
      $region16: #{adaptive_channel_attention_forward.3} parent=11 // pred_fallthru
        _
      // Predicated region
      $region17: #{adaptive_channel_attention_forward.3} parent=11 // pred_check
        %p308 = pneg %p86
      $region18: #{adaptive_channel_attention_forward.3} parent=11 // pred_check_branch
        %310 = sbr.rel (%p308) target = $region20
      $region19: #{adaptive_channel_attention_forward.3} parent=11 // pred_region
        _
      $region20: #{adaptive_channel_attention_forward.3} parent=11 // pred_fallthru
        _
      // Predicated region
      $region21: #{adaptive_channel_attention_forward.3} parent=11 // pred_check
        %p311 = pneg %p107
      $region22: #{adaptive_channel_attention_forward.3} parent=11 // pred_check_branch
        %313 = sbr.rel (%p311) target = $region24
      $region23: #{adaptive_channel_attention_forward.3} parent=11 // pred_region
        _
      $region24: #{adaptive_channel_attention_forward.3} parent=11 // pred_fallthru
        _
      // Predicated region
      $region25: #{adaptive_channel_attention_forward.3} parent=11 // pred_check
        %p314 = pneg %p128
      $region26: #{adaptive_channel_attention_forward.3} parent=11 // pred_check_branch
        %316 = sbr.rel (%p314) target = $region28
      $region27: #{adaptive_channel_attention_forward.3} parent=11 // pred_region
        _
      $region28: #{adaptive_channel_attention_forward.3} parent=11 // pred_fallthru
        _
      // Predicated region
      $region29: #{adaptive_channel_attention_forward.3} parent=11 // pred_check
        %p317 = pneg %p149
      $region30: #{adaptive_channel_attention_forward.3} parent=11 // pred_check_branch
        %319 = sbr.rel (%p317) target = $region32
      $region31: #{adaptive_channel_attention_forward.3} parent=11 // pred_region
        _
      $region32: #{adaptive_channel_attention_forward.3} parent=11 // pred_fallthru
        _
      // Predicated region
      $region33: #{adaptive_channel_attention_forward.3} parent=11 // pred_check
        %p320 = pneg %p170
      $region34: #{adaptive_channel_attention_forward.3} parent=11 // pred_check_branch
        %322 = sbr.rel (%p320) target = $region36
      $region35: #{adaptive_channel_attention_forward.3} parent=11 // pred_region
        _
      $region36: #{adaptive_channel_attention_forward.3} parent=11 // pred_fallthru
        _
      // Predicated region
      $region37: #{adaptive_channel_attention_forward.3} parent=11 // pred_check
        %p323 = pneg %p191
      $region38: #{adaptive_channel_attention_forward.3} parent=11 // pred_check_branch
        %325 = sbr.rel (%p323) target = $region40
      $region39: #{adaptive_channel_attention_forward.3} parent=11 // pred_region
        _
      $region40: #{adaptive_channel_attention_forward.3} parent=11 // pred_fallthru
        _
      // Predicated region
      $region41: #{adaptive_channel_attention_forward.3} parent=11 // pred_check
        %p326 = pneg %p212
      $region42: #{adaptive_channel_attention_forward.3} parent=11 // pred_check_branch
        %328 = sbr.rel (%p326) target = $region44
      $region43: #{adaptive_channel_attention_forward.3} parent=11 // pred_region
        _
      $region44: #{adaptive_channel_attention_forward.3} parent=11 // pred_fallthru
        _
    $region12: #{adaptive_channel_attention_forward.3} parent=5 // pred_fallthru
      _
    %p329 = scmp.lt.s32.totalorder %s18, 2
    // Predicated region
    $region45: #{adaptive_channel_attention_forward.3} parent=5 // pred_check
      %p330 = pneg %p329
    $region46: #{adaptive_channel_attention_forward.3} parent=5 // pred_check_branch
      %332 = sbr.rel (%p330) target = $region48
    $region47: #{adaptive_channel_attention_forward.3} parent=5 // pred_region
      // Predicated region
      $region49: #{adaptive_channel_attention_forward.3} parent=47 // pred_check
        %p333 = pneg %p38
      $region50: #{adaptive_channel_attention_forward.3} parent=47 // pred_check_branch
        %335 = sbr.rel (%p333) target = $region52
      $region51: #{adaptive_channel_attention_forward.3} parent=47 // pred_region
        %p336 = scmp.lt.s32.totalorder %s18, 1
        %s337 = scalar_select %p336, %s18, 1
        %s338 = smul.addr %s337, 32
        %s339 = smul.addr %s338, 8
        %s340 = scalar_lea.vmem %s0, %s339
      $region52: #{adaptive_channel_attention_forward.3} parent=47 // pred_fallthru
        _
    $region48: #{adaptive_channel_attention_forward.3} parent=5 // pred_fallthru
      _
    %p341 = scmp.le.s32.totalorder 1, %s18
    %p342 = scmp.lt.s32.totalorder %s18, 3
    %p343 = pnand %p341, %p342
    %p344 = pneg %p343
    // Predicated region
    $region53: #{adaptive_channel_attention_forward.3} parent=5 // pred_check
      _
    $region54: #{adaptive_channel_attention_forward.3} parent=5 // pred_check_branch
      %346 = sbr.rel (%p343) target = $region56
    $region55: #{adaptive_channel_attention_forward.3} parent=5 // pred_region
      %s347 = ssub.s32 %s18, 1
      %p348 = scmp.lt.s32.totalorder %s23, 1
      %s349 = scalar_select %p348, %s23, 1
      %s350 = smul.addr %s349, 32
      %s351 = smul.addr %s350, 8
      %s352 = scalar_lea.vmem %s0, %s351
      %p353 = pneg %p44
      %p354 = pneg %p41
      %p355 = pneg %p65
      %p356 = pneg %p62
      %p357 = pneg %p86
      %p358 = pneg %p83
      %p359 = pneg %p107
      %p360 = pneg %p104
      %p361 = pneg %p128
      %p362 = pneg %p125
      %p363 = pneg %p149
      %p364 = pneg %p146
      %p365 = pneg %p170
      %p366 = pneg %p167
      %p367 = pneg %p191
      %p368 = pneg %p188
      %p369 = pneg %p212
      %p370 = pneg %p209
      %p371 = pneg %p238
      %p372 = pneg %p235
      %p373 = scmp.lt.s32.totalorder %s23, 1
      %s374 = scalar_select %p373, %s23, 1
      %s375 = smul.addr %s374, 32
      %s376 = smul.addr %s375, 8
      %s377 = scalar_lea.vmem %s9, %s376
      %p378 = pneg %p264
      %p379 = pneg %p261
      %p380 = scmp.lt.s32.totalorder %s23, 1
      %s381 = scalar_select %p380, %s23, 1
      %s382 = scalar_lea.vmem %s10, %s381
      %p383 = pneg %p290
      %p384 = pneg %p287
      %p385 = scmp.lt.s32.totalorder %s23, 1
      %s386 = scalar_select %p385, %s23, 1
      %s387 = smul.addr %s386, 32
      %s388 = smul.addr %s387, 8
      %s389 = scalar_lea.vmem %s11, %s388
      %p390 = scmp.lt.s32.totalorder %s23, 1
      %s391 = scalar_select %p390, %s23, 1
      %s392 = smul.addr %s391, 32
      %s393 = smul.addr %s392, 8
      %s394 = scalar_lea.vmem %s0, %s393
      %p395 = scmp.lt.s32.totalorder %s23, 1
      %s396 = scalar_select %p395, %s23, 1
      %s397 = smul.addr %s396, 32
      %s398 = smul.addr %s397, 8
      %s399 = scalar_lea.vmem %s9, %s398
      %p400 = scmp.lt.s32.totalorder %s23, 1
      %s401 = scalar_select %p400, %s23, 1
      %s402 = scalar_lea.vmem %s10, %s401
      %p403 = scmp.lt.s32.totalorder %s23, 1
      %s404 = scalar_select %p403, %s23, 1
      %s405 = smul.addr %s404, 32
      %s406 = smul.addr %s405, 8
      %s407 = scalar_lea.vmem %s11, %s406
      %v409 = vld [vmem:[%s394] sm:$0xff]
      %v410 = vld [vmem:[%s394 + $0x8] sm:$0xff]
      %v411 = vld [vmem:[%s394 + $0x10] sm:$0xff]
      %v412 = vld [vmem:[%s394 + $0x18] sm:$0xff]
      %v413 = vld [vmem:[%s394 + $0x20] sm:$0xff]
      %v414 = vld [vmem:[%s394 + $0x28] sm:$0xff]
      %v415 = vld [vmem:[%s394 + $0x30] sm:$0xff]
      %v416 = vld [vmem:[%s394 + $0x38] sm:$0xff]
      %v417 = vld [vmem:[%s394 + $0x40] sm:$0xff]
      %v418 = vld [vmem:[%s394 + $0x48] sm:$0xff]
      %v419 = vld [vmem:[%s394 + $0x50] sm:$0xff]
      %v420 = vld [vmem:[%s394 + $0x58] sm:$0xff]
      %v421 = vld [vmem:[%s394 + $0x60] sm:$0xff]
      %v422 = vld [vmem:[%s394 + $0x68] sm:$0xff]
      %v423 = vld [vmem:[%s394 + $0x70] sm:$0xff]
      %v424 = vld [vmem:[%s394 + $0x78] sm:$0xff]
      %v425 = vld [vmem:[%s394 + $0x80] sm:$0xff]
      %v426 = vld [vmem:[%s394 + $0x88] sm:$0xff]
      %v427 = vld [vmem:[%s394 + $0x90] sm:$0xff]
      %v428 = vld [vmem:[%s394 + $0x98] sm:$0xff]
      %v429 = vld [vmem:[%s394 + $0xa0] sm:$0xff]
      %v430 = vld [vmem:[%s394 + $0xa8] sm:$0xff]
      %v431 = vld [vmem:[%s394 + $0xb0] sm:$0xff]
      %v432 = vld [vmem:[%s394 + $0xb8] sm:$0xff]
      %v433 = vld [vmem:[%s394 + $0xc0] sm:$0xff]
      %v434 = vld [vmem:[%s394 + $0xc8] sm:$0xff]
      %v435 = vld [vmem:[%s394 + $0xd0] sm:$0xff]
      %v436 = vld [vmem:[%s394 + $0xd8] sm:$0xff]
      %v437 = vld [vmem:[%s394 + $0xe0] sm:$0xff]
      %v438 = vld [vmem:[%s394 + $0xe8] sm:$0xff]
      %v439 = vld [vmem:[%s394 + $0xf0] sm:$0xff]
      %v440 = vld [vmem:[%s394 + $0xf8] sm:$0xff]
      %v441 = vpack.c.bf16 %v410, %v409
      %v442 = vpack.c.bf16 %v412, %v411
      %v443 = vpack.c.bf16 %v414, %v413
      %v444 = vpack.c.bf16 %v416, %v415
      %v445 = vpack.c.bf16 %v418, %v417
      %v446 = vpack.c.bf16 %v420, %v419
      %v447 = vpack.c.bf16 %v422, %v421
      %v448 = vpack.c.bf16 %v424, %v423
      %v449 = vpack.c.bf16 %v426, %v425
      %v450 = vpack.c.bf16 %v428, %v427
      %v451 = vpack.c.bf16 %v430, %v429
      %v452 = vpack.c.bf16 %v432, %v431
      %v453 = vpack.c.bf16 %v434, %v433
      %v454 = vpack.c.bf16 %v436, %v435
      %v455 = vpack.c.bf16 %v438, %v437
      %v456 = vpack.c.bf16 %v440, %v439
      %v457 = vld [vmem:[%s1] sm:$0xff]
      %v458 = vld [vmem:[%s1 + $0x8] sm:$0xff]
      %v459 = vld [vmem:[%s1 + $0x10] sm:$0xff]
      %v460 = vld [vmem:[%s1 + $0x18] sm:$0xff]
      %v461 = vld [vmem:[%s1 + $0x20] sm:$0xff]
      %v462 = vld [vmem:[%s1 + $0x28] sm:$0xff]
      %v463 = vld [vmem:[%s1 + $0x30] sm:$0xff]
      %v464 = vld [vmem:[%s1 + $0x38] sm:$0xff]
      %v465 = vpack.c.bf16 %v458, %v457
      %v466 = vpack.c.bf16 %v460, %v459
      %v467 = vpack.c.bf16 %v462, %v461
      %v468 = vpack.c.bf16 %v464, %v463
      %v469 = vld [vmem:[%s4] sm:$0x1]
      %v471 = vlaneseq
      %v472 = vshrl.u32 %v471, 7
      %v473 = vsub.s32 0, %v472
      %v474 = vrot.slane %v469, %v473
      %vm476 = vcmask 523264
      %v478 = vsel %vm476, %v441, 0
      %v481 = vsel %vm476, %v442, 0
      %v484 = vsel %vm476, %v443, 0
      %v487 = vsel %vm476, %v444, 0
      %v490 = vsel %vm476, %v445, 0
      %v493 = vsel %vm476, %v446, 0
      %v496 = vsel %vm476, %v447, 0
      %v499 = vsel %vm476, %v448, 0
      %v502 = vsel %vm476, %v449, 0
      %v505 = vsel %vm476, %v450, 0
      %v508 = vsel %vm476, %v451, 0
      %v511 = vsel %vm476, %v452, 0
      %v514 = vsel %vm476, %v453, 0
      %v517 = vsel %vm476, %v454, 0
      %v520 = vsel %vm476, %v455, 0
      %v523 = vsel %vm476, %v456, 0
      %525 = vmatprep.subr.bf16.mxu0 0
      %526 = vmatpush1.bf16.msra.mxu0 0
      %527 = vmatprep.subr.bf16.mxu0 0
      %528 = vmatpush1.bf16.msra.mxu0 0
      %529 = vmatprep.subr.bf16.mxu0 0
      %530 = vmatpush1.bf16.msra.mxu0 0
      %531 = vmatprep.subr.bf16.mxu0 0
      %532 = vmatpush1.bf16.msra.mxu0 0
      %533 = vmatprep.subr.bf16.mxu0 0
      %534 = vmatpush1.bf16.msra.mxu0 %v468
      %535 = vmatprep.subr.bf16.mxu0 0
      %536 = vmatpush1.bf16.msra.mxu0 %v467
      %537 = vmatprep.subr.bf16.mxu0 0
      %538 = vmatpush1.bf16.msra.mxu0 %v466
      %539 = vmatprep.subr.bf16.mxu0 0
      %540 = vmatpush1.bf16.msra.mxu0 %v465
      %541 = vmatprep.subr.bf16.mxu0 0
      %542 = vmatpush2.bf16.msra.mxu0 0
      %543 = vmatprep.subr.bf16.mxu0 0
      %544 = vmatpush2.bf16.msra.mxu0 0
      %545 = vmatprep.subr.bf16.mxu0 0
      %546 = vmatpush2.bf16.msra.mxu0 0
      %547 = vmatprep.subr.bf16.mxu0 0
      %548 = vmatpush2.bf16.msra.mxu0 0
      %549 = vmatprep.subr.bf16.mxu0 0
      %550 = vmatpush2.bf16.msra.mxu0 0
      %551 = vmatprep.subr.bf16.mxu0 0
      %552 = vmatpush2.bf16.msra.mxu0 0
      %553 = vmatprep.subr.bf16.mxu0 0
      %554 = vmatpush2.bf16.msra.mxu0 0
      %555 = vmatprep.subr.bf16.mxu0 0
      %556 = vmatpush2.bf16.msra.mxu0 0
      %557 = vmatprep.mubr.bf16.mxu0 0
      %558 = vmatmul.mubr.bf16.gmra.mxu0 %v478
      %v559 = vpop.f32.mrf.mxu0
      %v560 = vadd.f32 %v474, %v559
      %v561 = vpop.f32.mrf.mxu0
      %v562 = vpop.f32.mrf.mxu0
      %v563 = vadd.f32 %v474, %v562
      %v564 = vpop.f32.mrf.mxu0
      %565 = vmatprep.mubr.bf16.mxu0 0
      %566 = vmatmul.mubr.bf16.gmra.mxu0 %v481
      %v567 = vpop.f32.mrf.mxu0
      %v568 = vadd.f32 %v474, %v567
      %v569 = vpop.f32.mrf.mxu0
      %v570 = vpop.f32.mrf.mxu0
      %v571 = vadd.f32 %v474, %v570
      %v572 = vpop.f32.mrf.mxu0
      %573 = vmatprep.mubr.bf16.mxu0 0
      %574 = vmatmul.mubr.bf16.gmra.mxu0 %v484
      %v575 = vpop.f32.mrf.mxu0
      %v576 = vadd.f32 %v474, %v575
      %v577 = vpop.f32.mrf.mxu0
      %v578 = vpop.f32.mrf.mxu0
      %v579 = vadd.f32 %v474, %v578
      %v580 = vpop.f32.mrf.mxu0
      %581 = vmatprep.mubr.bf16.mxu0 0
      %582 = vmatmul.mubr.bf16.gmra.mxu0 %v487
      %v583 = vpop.f32.mrf.mxu0
      %v584 = vadd.f32 %v474, %v583
      %v585 = vpop.f32.mrf.mxu0
      %v586 = vpop.f32.mrf.mxu0
      %v587 = vadd.f32 %v474, %v586
      %v588 = vpop.f32.mrf.mxu0
      %589 = vmatprep.mubr.bf16.mxu0 0
      %590 = vmatmul.mubr.bf16.gmra.mxu0 %v490
      %v591 = vpop.f32.mrf.mxu0
      %v592 = vadd.f32 %v474, %v591
      %v593 = vpop.f32.mrf.mxu0
      %v594 = vpop.f32.mrf.mxu0
      %v595 = vadd.f32 %v474, %v594
      %v596 = vpop.f32.mrf.mxu0
      %597 = vmatprep.mubr.bf16.mxu0 0
      %598 = vmatmul.mubr.bf16.gmra.mxu0 %v493
      %v599 = vpop.f32.mrf.mxu0
      %v600 = vadd.f32 %v474, %v599
      %v601 = vpop.f32.mrf.mxu0
      %v602 = vpop.f32.mrf.mxu0
      %v603 = vadd.f32 %v474, %v602
      %v604 = vpop.f32.mrf.mxu0
      %605 = vmatprep.mubr.bf16.mxu0 0
      %606 = vmatmul.mubr.bf16.gmra.mxu0 %v496
      %v607 = vpop.f32.mrf.mxu0
      %v608 = vadd.f32 %v474, %v607
      %v609 = vpop.f32.mrf.mxu0
      %v610 = vpop.f32.mrf.mxu0
      %v611 = vadd.f32 %v474, %v610
      %v612 = vpop.f32.mrf.mxu0
      %613 = vmatprep.mubr.bf16.mxu0 0
      %614 = vmatmul.mubr.bf16.gmra.mxu0 %v499
      %v615 = vpop.f32.mrf.mxu0
      %v616 = vadd.f32 %v474, %v615
      %v617 = vpop.f32.mrf.mxu0
      %v618 = vpop.f32.mrf.mxu0
      %v619 = vadd.f32 %v474, %v618
      %v620 = vpop.f32.mrf.mxu0
      %621 = vmatprep.mubr.bf16.mxu0 0
      %622 = vmatmul.mubr.bf16.gmra.mxu0 %v502
      %v623 = vpop.f32.mrf.mxu0
      %v624 = vadd.f32 %v474, %v623
      %v625 = vpop.f32.mrf.mxu0
      %v626 = vpop.f32.mrf.mxu0
      %v627 = vadd.f32 %v474, %v626
      %v628 = vpop.f32.mrf.mxu0
      %629 = vmatprep.mubr.bf16.mxu0 0
      %630 = vmatmul.mubr.bf16.gmra.mxu0 %v505
      %v631 = vpop.f32.mrf.mxu0
      %v632 = vadd.f32 %v474, %v631
      %v633 = vpop.f32.mrf.mxu0
      %v634 = vpop.f32.mrf.mxu0
      %v635 = vadd.f32 %v474, %v634
      %v636 = vpop.f32.mrf.mxu0
      %637 = vmatprep.mubr.bf16.mxu0 0
      %638 = vmatmul.mubr.bf16.gmra.mxu0 %v508
      %v639 = vpop.f32.mrf.mxu0
      %v640 = vadd.f32 %v474, %v639
      %v641 = vpop.f32.mrf.mxu0
      %v642 = vpop.f32.mrf.mxu0
      %v643 = vadd.f32 %v474, %v642
      %v644 = vpop.f32.mrf.mxu0
      %645 = vmatprep.mubr.bf16.mxu0 0
      %646 = vmatmul.mubr.bf16.gmra.mxu0 %v511
      %v647 = vpop.f32.mrf.mxu0
      %v648 = vadd.f32 %v474, %v647
      %v649 = vpop.f32.mrf.mxu0
      %v650 = vpop.f32.mrf.mxu0
      %v651 = vadd.f32 %v474, %v650
      %v652 = vpop.f32.mrf.mxu0
      %653 = vmatprep.mubr.bf16.mxu0 0
      %654 = vmatmul.mubr.bf16.gmra.mxu0 %v514
      %v655 = vpop.f32.mrf.mxu0
      %v656 = vadd.f32 %v474, %v655
      %v657 = vpop.f32.mrf.mxu0
      %v658 = vpop.f32.mrf.mxu0
      %v659 = vadd.f32 %v474, %v658
      %v660 = vpop.f32.mrf.mxu0
      %661 = vmatprep.mubr.bf16.mxu0 0
      %662 = vmatmul.mubr.bf16.gmra.mxu0 %v517
      %v663 = vpop.f32.mrf.mxu0
      %v664 = vadd.f32 %v474, %v663
      %v665 = vpop.f32.mrf.mxu0
      %v666 = vpop.f32.mrf.mxu0
      %v667 = vadd.f32 %v474, %v666
      %v668 = vpop.f32.mrf.mxu0
      %669 = vmatprep.mubr.bf16.mxu0 0
      %670 = vmatmul.mubr.bf16.gmra.mxu0 %v520
      %v671 = vpop.f32.mrf.mxu0
      %v672 = vadd.f32 %v474, %v671
      %v673 = vpop.f32.mrf.mxu0
      %v674 = vpop.f32.mrf.mxu0
      %v675 = vadd.f32 %v474, %v674
      %v676 = vpop.f32.mrf.mxu0
      %677 = vmatprep.mubr.bf16.mxu0 0
      %678 = vmatmul.mubr.bf16.gmra.mxu0 %v523
      %v679 = vpop.f32.mrf.mxu0
      %v680 = vadd.f32 %v474, %v679
      %v681 = vpop.f32.mrf.mxu0
      %v682 = vpop.f32.mrf.mxu0
      %v683 = vadd.f32 %v474, %v682
      %v684 = vpop.f32.mrf.mxu0
      %685 = vdwg.mxu0
      %v686 = vld [vmem:[%s2] sm:$0xff]
      %v687 = vld [vmem:[%s2 + $0x8] sm:$0xff]
      %v688 = vld [vmem:[%s2 + $0x10] sm:$0xff]
      %v689 = vld [vmem:[%s2 + $0x18] sm:$0xff]
      %v690 = vld [vmem:[%s2 + $0x20] sm:$0xff]
      %v691 = vld [vmem:[%s2 + $0x28] sm:$0xff]
      %v692 = vld [vmem:[%s2 + $0x30] sm:$0xff]
      %v693 = vld [vmem:[%s2 + $0x38] sm:$0xff]
      %v694 = vpack.c.bf16 %v687, %v686
      %v695 = vpack.c.bf16 %v689, %v688
      %v696 = vpack.c.bf16 %v691, %v690
      %v697 = vpack.c.bf16 %v693, %v692
      %v698 = vld [vmem:[%s5] sm:$0x1]
      %v700 = vlaneseq
      %v701 = vshrl.u32 %v700, 7
      %v702 = vsub.s32 0, %v701
      %v703 = vrot.slane %v698, %v702
      %705 = vmatprep.subr.bf16.mxu0 0
      %706 = vmatpush1.bf16.msra.mxu0 0
      %707 = vmatprep.subr.bf16.mxu0 0
      %708 = vmatpush1.bf16.msra.mxu0 0
      %709 = vmatprep.subr.bf16.mxu0 0
      %710 = vmatpush1.bf16.msra.mxu0 0
      %711 = vmatprep.subr.bf16.mxu0 0
      %712 = vmatpush1.bf16.msra.mxu0 0
      %713 = vmatprep.subr.bf16.mxu0 0
      %714 = vmatpush1.bf16.msra.mxu0 %v697
      %715 = vmatprep.subr.bf16.mxu0 0
      %716 = vmatpush1.bf16.msra.mxu0 %v696
      %717 = vmatprep.subr.bf16.mxu0 0
      %718 = vmatpush1.bf16.msra.mxu0 %v695
      %719 = vmatprep.subr.bf16.mxu0 0
      %720 = vmatpush1.bf16.msra.mxu0 %v694
      %721 = vmatprep.subr.bf16.mxu0 0
      %722 = vmatpush2.bf16.msra.mxu0 0
      %723 = vmatprep.subr.bf16.mxu0 0
      %724 = vmatpush2.bf16.msra.mxu0 0
      %725 = vmatprep.subr.bf16.mxu0 0
      %726 = vmatpush2.bf16.msra.mxu0 0
      %727 = vmatprep.subr.bf16.mxu0 0
      %728 = vmatpush2.bf16.msra.mxu0 0
      %729 = vmatprep.subr.bf16.mxu0 0
      %730 = vmatpush2.bf16.msra.mxu0 0
      %731 = vmatprep.subr.bf16.mxu0 0
      %732 = vmatpush2.bf16.msra.mxu0 0
      %733 = vmatprep.subr.bf16.mxu0 0
      %734 = vmatpush2.bf16.msra.mxu0 0
      %735 = vmatprep.subr.bf16.mxu0 0
      %736 = vmatpush2.bf16.msra.mxu0 0
      %737 = vmatprep.mubr.bf16.mxu0 0
      %738 = vmatmul.mubr.bf16.gmra.mxu0 %v478
      %v739 = vpop.f32.mrf.mxu0
      %v740 = vadd.f32 %v703, %v739
      %v741 = vpop.f32.mrf.mxu0
      %v742 = vpop.f32.mrf.mxu0
      %v743 = vadd.f32 %v703, %v742
      %v744 = vpop.f32.mrf.mxu0
      %745 = vmatprep.mubr.bf16.mxu0 0
      %746 = vmatmul.mubr.bf16.gmra.mxu0 %v481
      %v747 = vpop.f32.mrf.mxu0
      %v748 = vadd.f32 %v703, %v747
      %v749 = vpop.f32.mrf.mxu0
      %v750 = vpop.f32.mrf.mxu0
      %v751 = vadd.f32 %v703, %v750
      %v752 = vpop.f32.mrf.mxu0
      %753 = vmatprep.mubr.bf16.mxu0 0
      %754 = vmatmul.mubr.bf16.gmra.mxu0 %v484
      %v755 = vpop.f32.mrf.mxu0
      %v756 = vadd.f32 %v703, %v755
      %v757 = vpop.f32.mrf.mxu0
      %v758 = vpop.f32.mrf.mxu0
      %v759 = vadd.f32 %v703, %v758
      %v760 = vpop.f32.mrf.mxu0
      %761 = vmatprep.mubr.bf16.mxu0 0
      %762 = vmatmul.mubr.bf16.gmra.mxu0 %v487
      %v763 = vpop.f32.mrf.mxu0
      %v764 = vadd.f32 %v703, %v763
      %v765 = vpop.f32.mrf.mxu0
      %v766 = vpop.f32.mrf.mxu0
      %v767 = vadd.f32 %v703, %v766
      %v768 = vpop.f32.mrf.mxu0
      %769 = vmatprep.mubr.bf16.mxu0 0
      %770 = vmatmul.mubr.bf16.gmra.mxu0 %v490
      %v771 = vpop.f32.mrf.mxu0
      %v772 = vadd.f32 %v703, %v771
      %v773 = vpop.f32.mrf.mxu0
      %v774 = vpop.f32.mrf.mxu0
      %v775 = vadd.f32 %v703, %v774
      %v776 = vpop.f32.mrf.mxu0
      %777 = vmatprep.mubr.bf16.mxu0 0
      %778 = vmatmul.mubr.bf16.gmra.mxu0 %v493
      %v779 = vpop.f32.mrf.mxu0
      %v780 = vadd.f32 %v703, %v779
      %v781 = vpop.f32.mrf.mxu0
      %v782 = vpop.f32.mrf.mxu0
      %v783 = vadd.f32 %v703, %v782
      %v784 = vpop.f32.mrf.mxu0
      %785 = vmatprep.mubr.bf16.mxu0 0
      %786 = vmatmul.mubr.bf16.gmra.mxu0 %v496
      %v787 = vpop.f32.mrf.mxu0
      %v788 = vadd.f32 %v703, %v787
      %v789 = vpop.f32.mrf.mxu0
      %v790 = vpop.f32.mrf.mxu0
      %v791 = vadd.f32 %v703, %v790
      %v792 = vpop.f32.mrf.mxu0
      %793 = vmatprep.mubr.bf16.mxu0 0
      %794 = vmatmul.mubr.bf16.gmra.mxu0 %v499
      %v795 = vpop.f32.mrf.mxu0
      %v796 = vadd.f32 %v703, %v795
      %v797 = vpop.f32.mrf.mxu0
      %v798 = vpop.f32.mrf.mxu0
      %v799 = vadd.f32 %v703, %v798
      %v800 = vpop.f32.mrf.mxu0
      %801 = vmatprep.mubr.bf16.mxu0 0
      %802 = vmatmul.mubr.bf16.gmra.mxu0 %v502
      %v803 = vpop.f32.mrf.mxu0
      %v804 = vadd.f32 %v703, %v803
      %v805 = vpop.f32.mrf.mxu0
      %v806 = vpop.f32.mrf.mxu0
      %v807 = vadd.f32 %v703, %v806
      %v808 = vpop.f32.mrf.mxu0
      %809 = vmatprep.mubr.bf16.mxu0 0
      %810 = vmatmul.mubr.bf16.gmra.mxu0 %v505
      %v811 = vpop.f32.mrf.mxu0
      %v812 = vadd.f32 %v703, %v811
      %v813 = vpop.f32.mrf.mxu0
      %v814 = vpop.f32.mrf.mxu0
      %v815 = vadd.f32 %v703, %v814
      %v816 = vpop.f32.mrf.mxu0
      %817 = vmatprep.mubr.bf16.mxu0 0
      %818 = vmatmul.mubr.bf16.gmra.mxu0 %v508
      %v819 = vpop.f32.mrf.mxu0
      %v820 = vadd.f32 %v703, %v819
      %v821 = vpop.f32.mrf.mxu0
      %v822 = vpop.f32.mrf.mxu0
      %v823 = vadd.f32 %v703, %v822
      %v824 = vpop.f32.mrf.mxu0
      %825 = vmatprep.mubr.bf16.mxu0 0
      %826 = vmatmul.mubr.bf16.gmra.mxu0 %v511
      %v827 = vpop.f32.mrf.mxu0
      %v828 = vadd.f32 %v703, %v827
      %v829 = vpop.f32.mrf.mxu0
      %v830 = vpop.f32.mrf.mxu0
      %v831 = vadd.f32 %v703, %v830
      %v832 = vpop.f32.mrf.mxu0
      %833 = vmatprep.mubr.bf16.mxu0 0
      %834 = vmatmul.mubr.bf16.gmra.mxu0 %v514
      %v835 = vpop.f32.mrf.mxu0
      %v836 = vadd.f32 %v703, %v835
      %v837 = vpop.f32.mrf.mxu0
      %v838 = vpop.f32.mrf.mxu0
      %v839 = vadd.f32 %v703, %v838
      %v840 = vpop.f32.mrf.mxu0
      %841 = vmatprep.mubr.bf16.mxu0 0
      %842 = vmatmul.mubr.bf16.gmra.mxu0 %v517
      %v843 = vpop.f32.mrf.mxu0
      %v844 = vadd.f32 %v703, %v843
      %v845 = vpop.f32.mrf.mxu0
      %v846 = vpop.f32.mrf.mxu0
      %v847 = vadd.f32 %v703, %v846
      %v848 = vpop.f32.mrf.mxu0
      %849 = vmatprep.mubr.bf16.mxu0 0
      %850 = vmatmul.mubr.bf16.gmra.mxu0 %v520
      %v851 = vpop.f32.mrf.mxu0
      %v852 = vadd.f32 %v703, %v851
      %v853 = vpop.f32.mrf.mxu0
      %v854 = vpop.f32.mrf.mxu0
      %v855 = vadd.f32 %v703, %v854
      %v856 = vpop.f32.mrf.mxu0
      %857 = vmatprep.mubr.bf16.mxu0 0
      %858 = vmatmul.mubr.bf16.gmra.mxu0 %v523
      %v859 = vpop.f32.mrf.mxu0
      %v860 = vadd.f32 %v703, %v859
      %v861 = vpop.f32.mrf.mxu0
      %v862 = vpop.f32.mrf.mxu0
      %v863 = vadd.f32 %v703, %v862
      %v864 = vpop.f32.mrf.mxu0
      %865 = vdwg.mxu0
      %v866 = vld [vmem:[%s3] sm:$0xff]
      %v867 = vld [vmem:[%s3 + $0x8] sm:$0xff]
      %v868 = vld [vmem:[%s3 + $0x10] sm:$0xff]
      %v869 = vld [vmem:[%s3 + $0x18] sm:$0xff]
      %v870 = vld [vmem:[%s3 + $0x20] sm:$0xff]
      %v871 = vld [vmem:[%s3 + $0x28] sm:$0xff]
      %v872 = vld [vmem:[%s3 + $0x30] sm:$0xff]
      %v873 = vld [vmem:[%s3 + $0x38] sm:$0xff]
      %v874 = vpack.c.bf16 %v867, %v866
      %v875 = vpack.c.bf16 %v869, %v868
      %v876 = vpack.c.bf16 %v871, %v870
      %v877 = vpack.c.bf16 %v873, %v872
      %v878 = vld [vmem:[%s6] sm:$0x1]
      %v880 = vlaneseq
      %v881 = vshrl.u32 %v880, 7
      %v882 = vsub.s32 0, %v881
      %v883 = vrot.slane %v878, %v882
      %885 = vmatprep.subr.bf16.mxu0 0
      %886 = vmatpush1.bf16.msra.mxu0 0
      %887 = vmatprep.subr.bf16.mxu0 0
      %888 = vmatpush1.bf16.msra.mxu0 0
      %889 = vmatprep.subr.bf16.mxu0 0
      %890 = vmatpush1.bf16.msra.mxu0 0
      %891 = vmatprep.subr.bf16.mxu0 0
      %892 = vmatpush1.bf16.msra.mxu0 0
      %893 = vmatprep.subr.bf16.mxu0 0
      %894 = vmatpush1.bf16.msra.mxu0 %v877
      %895 = vmatprep.subr.bf16.mxu0 0
      %896 = vmatpush1.bf16.msra.mxu0 %v876
      %897 = vmatprep.subr.bf16.mxu0 0
      %898 = vmatpush1.bf16.msra.mxu0 %v875
      %899 = vmatprep.subr.bf16.mxu0 0
      %900 = vmatpush1.bf16.msra.mxu0 %v874
      %901 = vmatprep.subr.bf16.mxu0 0
      %902 = vmatpush2.bf16.msra.mxu0 0
      %903 = vmatprep.subr.bf16.mxu0 0
      %904 = vmatpush2.bf16.msra.mxu0 0
      %905 = vmatprep.subr.bf16.mxu0 0
      %906 = vmatpush2.bf16.msra.mxu0 0
      %907 = vmatprep.subr.bf16.mxu0 0
      %908 = vmatpush2.bf16.msra.mxu0 0
      %909 = vmatprep.subr.bf16.mxu0 0
      %910 = vmatpush2.bf16.msra.mxu0 0
      %911 = vmatprep.subr.bf16.mxu0 0
      %912 = vmatpush2.bf16.msra.mxu0 0
      %913 = vmatprep.subr.bf16.mxu0 0
      %914 = vmatpush2.bf16.msra.mxu0 0
      %915 = vmatprep.subr.bf16.mxu0 0
      %916 = vmatpush2.bf16.msra.mxu0 0
      %917 = vmatprep.mubr.bf16.mxu0 0
      %918 = vmatmul.mubr.bf16.gmra.mxu0 %v478
      %v919 = vpop.f32.mrf.mxu0
      %v920 = vadd.f32 %v883, %v919
      %v921 = vpop.f32.mrf.mxu0
      %v922 = vpop.f32.mrf.mxu0
      %v923 = vadd.f32 %v883, %v922
      %v924 = vpop.f32.mrf.mxu0
      %925 = vmatprep.mubr.bf16.mxu0 0
      %926 = vmatmul.mubr.bf16.gmra.mxu0 %v481
      %v927 = vpop.f32.mrf.mxu0
      %v928 = vadd.f32 %v883, %v927
      %v929 = vpop.f32.mrf.mxu0
      %v930 = vpop.f32.mrf.mxu0
      %v931 = vadd.f32 %v883, %v930
      %v932 = vpop.f32.mrf.mxu0
      %933 = vmatprep.mubr.bf16.mxu0 0
      %934 = vmatmul.mubr.bf16.gmra.mxu0 %v484
      %v935 = vpop.f32.mrf.mxu0
      %v936 = vadd.f32 %v883, %v935
      %v937 = vpop.f32.mrf.mxu0
      %v938 = vpop.f32.mrf.mxu0
      %v939 = vadd.f32 %v883, %v938
      %v940 = vpop.f32.mrf.mxu0
      %941 = vmatprep.mubr.bf16.mxu0 0
      %942 = vmatmul.mubr.bf16.gmra.mxu0 %v487
      %v943 = vpop.f32.mrf.mxu0
      %v944 = vadd.f32 %v883, %v943
      %v945 = vpop.f32.mrf.mxu0
      %v946 = vpop.f32.mrf.mxu0
      %v947 = vadd.f32 %v883, %v946
      %v948 = vpop.f32.mrf.mxu0
      %949 = vmatprep.mubr.bf16.mxu0 0
      %950 = vmatmul.mubr.bf16.gmra.mxu0 %v490
      %v951 = vpop.f32.mrf.mxu0
      %v952 = vadd.f32 %v883, %v951
      %v953 = vpop.f32.mrf.mxu0
      %v954 = vpop.f32.mrf.mxu0
      %v955 = vadd.f32 %v883, %v954
      %v956 = vpop.f32.mrf.mxu0
      %957 = vmatprep.mubr.bf16.mxu0 0
      %958 = vmatmul.mubr.bf16.gmra.mxu0 %v493
      %v959 = vpop.f32.mrf.mxu0
      %v960 = vadd.f32 %v883, %v959
      %v961 = vpop.f32.mrf.mxu0
      %v962 = vpop.f32.mrf.mxu0
      %v963 = vadd.f32 %v883, %v962
      %v964 = vpop.f32.mrf.mxu0
      %965 = vmatprep.mubr.bf16.mxu0 0
      %966 = vmatmul.mubr.bf16.gmra.mxu0 %v496
      %v967 = vpop.f32.mrf.mxu0
      %v968 = vadd.f32 %v883, %v967
      %v969 = vpop.f32.mrf.mxu0
      %v970 = vpop.f32.mrf.mxu0
      %v971 = vadd.f32 %v883, %v970
      %v972 = vpop.f32.mrf.mxu0
      %973 = vmatprep.mubr.bf16.mxu0 0
      %974 = vmatmul.mubr.bf16.gmra.mxu0 %v499
      %v975 = vpop.f32.mrf.mxu0
      %v976 = vadd.f32 %v883, %v975
      %v977 = vpop.f32.mrf.mxu0
      %v978 = vpop.f32.mrf.mxu0
      %v979 = vadd.f32 %v883, %v978
      %v980 = vpop.f32.mrf.mxu0
      %981 = vmatprep.mubr.bf16.mxu0 0
      %982 = vmatmul.mubr.bf16.gmra.mxu0 %v502
      %v983 = vpop.f32.mrf.mxu0
      %v984 = vadd.f32 %v883, %v983
      %v985 = vpop.f32.mrf.mxu0
      %v986 = vpop.f32.mrf.mxu0
      %v987 = vadd.f32 %v883, %v986
      %v988 = vpop.f32.mrf.mxu0
      %989 = vmatprep.mubr.bf16.mxu0 0
      %990 = vmatmul.mubr.bf16.gmra.mxu0 %v505
      %v991 = vpop.f32.mrf.mxu0
      %v992 = vadd.f32 %v883, %v991
      %v993 = vpop.f32.mrf.mxu0
      %v994 = vpop.f32.mrf.mxu0
      %v995 = vadd.f32 %v883, %v994
      %v996 = vpop.f32.mrf.mxu0
      %997 = vmatprep.mubr.bf16.mxu0 0
      %998 = vmatmul.mubr.bf16.gmra.mxu0 %v508
      %v999 = vpop.f32.mrf.mxu0
      %v1000 = vadd.f32 %v883, %v999
      %v1001 = vpop.f32.mrf.mxu0
      %v1002 = vpop.f32.mrf.mxu0
      %v1003 = vadd.f32 %v883, %v1002
      %v1004 = vpop.f32.mrf.mxu0
      %1005 = vmatprep.mubr.bf16.mxu0 0
      %1006 = vmatmul.mubr.bf16.gmra.mxu0 %v511
      %v1007 = vpop.f32.mrf.mxu0
      %v1008 = vadd.f32 %v883, %v1007
      %v1009 = vpop.f32.mrf.mxu0
      %v1010 = vpop.f32.mrf.mxu0
      %v1011 = vadd.f32 %v883, %v1010
      %v1012 = vpop.f32.mrf.mxu0
      %1013 = vmatprep.mubr.bf16.mxu0 0
      %1014 = vmatmul.mubr.bf16.gmra.mxu0 %v514
      %v1015 = vpop.f32.mrf.mxu0
      %v1016 = vadd.f32 %v883, %v1015
      %v1017 = vpop.f32.mrf.mxu0
      %v1018 = vpop.f32.mrf.mxu0
      %v1019 = vadd.f32 %v883, %v1018
      %v1020 = vpop.f32.mrf.mxu0
      %1021 = vmatprep.mubr.bf16.mxu0 0
      %1022 = vmatmul.mubr.bf16.gmra.mxu0 %v517
      %v1023 = vpop.f32.mrf.mxu0
      %v1024 = vadd.f32 %v883, %v1023
      %v1025 = vpop.f32.mrf.mxu0
      %v1026 = vpop.f32.mrf.mxu0
      %v1027 = vadd.f32 %v883, %v1026
      %v1028 = vpop.f32.mrf.mxu0
      %1029 = vmatprep.mubr.bf16.mxu0 0
      %1030 = vmatmul.mubr.bf16.gmra.mxu0 %v520
      %v1031 = vpop.f32.mrf.mxu0
      %v1032 = vadd.f32 %v883, %v1031
      %v1033 = vpop.f32.mrf.mxu0
      %v1034 = vpop.f32.mrf.mxu0
      %v1035 = vadd.f32 %v883, %v1034
      %v1036 = vpop.f32.mrf.mxu0
      %1037 = vmatprep.mubr.bf16.mxu0 0
      %1038 = vmatmul.mubr.bf16.gmra.mxu0 %v523
      %v1039 = vpop.f32.mrf.mxu0
      %v1040 = vadd.f32 %v883, %v1039
      %v1041 = vpop.f32.mrf.mxu0
      %v1042 = vpop.f32.mrf.mxu0
      %v1043 = vadd.f32 %v883, %v1042
      %v1044 = vpop.f32.mrf.mxu0
      %1045 = vdwg.mxu0
      %1046 = vst.msk [vmem:[%s407] sm:$0xff] %vm476, %v920
      %1047 = vst.msk [vmem:[%s407 + $0x8] sm:$0xff] %vm476, %v923
      %1048 = vst.msk [vmem:[%s407 + $0x10] sm:$0xff] %vm476, %v928
      %1049 = vst.msk [vmem:[%s407 + $0x18] sm:$0xff] %vm476, %v931
      %1050 = vst.msk [vmem:[%s407 + $0x20] sm:$0xff] %vm476, %v936
      %1051 = vst.msk [vmem:[%s407 + $0x28] sm:$0xff] %vm476, %v939
      %1052 = vst.msk [vmem:[%s407 + $0x30] sm:$0xff] %vm476, %v944
      %1053 = vst.msk [vmem:[%s407 + $0x38] sm:$0xff] %vm476, %v947
      %1054 = vst.msk [vmem:[%s407 + $0x40] sm:$0xff] %vm476, %v952
      %1055 = vst.msk [vmem:[%s407 + $0x48] sm:$0xff] %vm476, %v955
      %1056 = vst.msk [vmem:[%s407 + $0x50] sm:$0xff] %vm476, %v960
      %1057 = vst.msk [vmem:[%s407 + $0x58] sm:$0xff] %vm476, %v963
      %1058 = vst.msk [vmem:[%s407 + $0x60] sm:$0xff] %vm476, %v968
      %1059 = vst.msk [vmem:[%s407 + $0x68] sm:$0xff] %vm476, %v971
      %1060 = vst.msk [vmem:[%s407 + $0x70] sm:$0xff] %vm476, %v976
      %1061 = vst.msk [vmem:[%s407 + $0x78] sm:$0xff] %vm476, %v979
      %1062 = vst.msk [vmem:[%s407 + $0x80] sm:$0xff] %vm476, %v984
      %1063 = vst.msk [vmem:[%s407 + $0x88] sm:$0xff] %vm476, %v987
      %1064 = vst.msk [vmem:[%s407 + $0x90] sm:$0xff] %vm476, %v992
      %1065 = vst.msk [vmem:[%s407 + $0x98] sm:$0xff] %vm476, %v995
      %1066 = vst.msk [vmem:[%s407 + $0xa0] sm:$0xff] %vm476, %v1000
      %1067 = vst.msk [vmem:[%s407 + $0xa8] sm:$0xff] %vm476, %v1003
      %1068 = vst.msk [vmem:[%s407 + $0xb0] sm:$0xff] %vm476, %v1008
      %1069 = vst.msk [vmem:[%s407 + $0xb8] sm:$0xff] %vm476, %v1011
      %1070 = vst.msk [vmem:[%s407 + $0xc0] sm:$0xff] %vm476, %v1016
      %1071 = vst.msk [vmem:[%s407 + $0xc8] sm:$0xff] %vm476, %v1019
      %1072 = vst.msk [vmem:[%s407 + $0xd0] sm:$0xff] %vm476, %v1024
      %1073 = vst.msk [vmem:[%s407 + $0xd8] sm:$0xff] %vm476, %v1027
      %1074 = vst.msk [vmem:[%s407 + $0xe0] sm:$0xff] %vm476, %v1032
      %1075 = vst.msk [vmem:[%s407 + $0xe8] sm:$0xff] %vm476, %v1035
      %1076 = vst.msk [vmem:[%s407 + $0xf0] sm:$0xff] %vm476, %v1040
      %1077 = vst.msk [vmem:[%s407 + $0xf8] sm:$0xff] %vm476, %v1043
      %v1078 = vmul.f32 %v560, %v560
      %v1079 = vmul.f32 %v563, %v563
      %v1080 = vmul.f32 %v568, %v568
      %v1081 = vmul.f32 %v571, %v571
      %v1082 = vmul.f32 %v576, %v576
      %v1083 = vmul.f32 %v579, %v579
      %v1084 = vmul.f32 %v584, %v584
      %v1085 = vmul.f32 %v587, %v587
      %v1086 = vmul.f32 %v592, %v592
      %v1087 = vmul.f32 %v595, %v595
      %v1088 = vmul.f32 %v600, %v600
      %v1089 = vmul.f32 %v603, %v603
      %v1090 = vmul.f32 %v608, %v608
      %v1091 = vmul.f32 %v611, %v611
      %v1092 = vmul.f32 %v616, %v616
      %v1093 = vmul.f32 %v619, %v619
      %v1094 = vmul.f32 %v624, %v624
      %v1095 = vmul.f32 %v627, %v627
      %v1096 = vmul.f32 %v632, %v632
      %v1097 = vmul.f32 %v635, %v635
      %v1098 = vmul.f32 %v640, %v640
      %v1099 = vmul.f32 %v643, %v643
      %v1100 = vmul.f32 %v648, %v648
      %v1101 = vmul.f32 %v651, %v651
      %v1102 = vmul.f32 %v656, %v656
      %v1103 = vmul.f32 %v659, %v659
      %v1104 = vmul.f32 %v664, %v664
      %v1105 = vmul.f32 %v667, %v667
      %v1106 = vmul.f32 %v672, %v672
      %v1107 = vmul.f32 %v675, %v675
      %v1108 = vmul.f32 %v680, %v680
      %v1109 = vmul.f32 %v683, %v683
      %v1110 = vsel %vm476, %v1078, 0.0
      %v1111 = vsel %vm476, %v1079, 0.0
      %v1112 = vadd.f32 %v1110, %v1111
      %v1113 = vsel %vm476, %v1080, 0.0
      %v1114 = vadd.f32 %v1112, %v1113
      %v1115 = vsel %vm476, %v1081, 0.0
      %v1116 = vadd.f32 %v1114, %v1115
      %v1117 = vsel %vm476, %v1082, 0.0
      %v1118 = vadd.f32 %v1116, %v1117
      %v1119 = vsel %vm476, %v1083, 0.0
      %v1120 = vadd.f32 %v1118, %v1119
      %v1121 = vsel %vm476, %v1084, 0.0
      %v1122 = vadd.f32 %v1120, %v1121
      %v1123 = vsel %vm476, %v1085, 0.0
      %v1124 = vadd.f32 %v1122, %v1123
      %v1125 = vsel %vm476, %v1086, 0.0
      %v1126 = vadd.f32 %v1124, %v1125
      %v1127 = vsel %vm476, %v1087, 0.0
      %v1128 = vadd.f32 %v1126, %v1127
      %v1129 = vsel %vm476, %v1088, 0.0
      %v1130 = vadd.f32 %v1128, %v1129
      %v1131 = vsel %vm476, %v1089, 0.0
      %v1132 = vadd.f32 %v1130, %v1131
      %v1133 = vsel %vm476, %v1090, 0.0
      %v1134 = vadd.f32 %v1132, %v1133
      %v1135 = vsel %vm476, %v1091, 0.0
      %v1136 = vadd.f32 %v1134, %v1135
      %v1137 = vsel %vm476, %v1092, 0.0
      %v1138 = vadd.f32 %v1136, %v1137
      %v1139 = vsel %vm476, %v1093, 0.0
      %v1140 = vadd.f32 %v1138, %v1139
      %v1141 = vsel %vm476, %v1094, 0.0
      %v1142 = vadd.f32 %v1140, %v1141
      %v1143 = vsel %vm476, %v1095, 0.0
      %v1144 = vadd.f32 %v1142, %v1143
      %v1145 = vsel %vm476, %v1096, 0.0
      %v1146 = vadd.f32 %v1144, %v1145
      %v1147 = vsel %vm476, %v1097, 0.0
      %v1148 = vadd.f32 %v1146, %v1147
      %v1149 = vsel %vm476, %v1098, 0.0
      %v1150 = vadd.f32 %v1148, %v1149
      %v1151 = vsel %vm476, %v1099, 0.0
      %v1152 = vadd.f32 %v1150, %v1151
      %v1153 = vsel %vm476, %v1100, 0.0
      %v1154 = vadd.f32 %v1152, %v1153
      %v1155 = vsel %vm476, %v1101, 0.0
      %v1156 = vadd.f32 %v1154, %v1155
      %v1157 = vsel %vm476, %v1102, 0.0
      %v1158 = vadd.f32 %v1156, %v1157
      %v1159 = vsel %vm476, %v1103, 0.0
      %v1160 = vadd.f32 %v1158, %v1159
      %v1161 = vsel %vm476, %v1104, 0.0
      %v1162 = vadd.f32 %v1160, %v1161
      %v1163 = vsel %vm476, %v1105, 0.0
      %v1164 = vadd.f32 %v1162, %v1163
      %v1165 = vsel %vm476, %v1106, 0.0
      %v1166 = vadd.f32 %v1164, %v1165
      %v1167 = vsel %vm476, %v1107, 0.0
      %v1168 = vadd.f32 %v1166, %v1167
      %v1169 = vsel %vm476, %v1108, 0.0
      %v1170 = vadd.f32 %v1168, %v1169
      %v1171 = vsel %vm476, %v1109, 0.0
      %v1172 = vadd.f32 %v1170, %v1171
      %v1173 = vrot.slane %v1172, 4
      %v1174 = vadd.f32 %v1172, %v1173
      %v1175 = vrot.slane %v1174, 2
      %v1176 = vadd.f32 %v1174, %v1175
      %v1177 = vrot.slane %v1176, 1
      %v1178 = vadd.f32 %v1176, %v1177
      %v1179 = vrsqrt.pop %v1178
      %v1180 = vmul.f32 %v1178, %v1179
      %vm1181 = vcmp.eq.f32.partialorder %v1178, inf
      %v1182 = vsel %vm1181, %v1178, %v1180
      %vm1183 = vcmp.eq.f32.partialorder %v1178, 0.0
      %v1184 = vand.u32 %v1178, 2147483648
      %v1185 = vsel %vm1183, %v1184, %v1182
      %v1186 = vmax.f32 %v1185, 1e-12
      %v1187 = vrcp.pop %v1186
      %v1188 = vmul.f32 %v560, %v1187
      %v1189 = vmul.f32 %v563, %v1187
      %v1190 = vmul.f32 %v568, %v1187
      %v1191 = vmul.f32 %v571, %v1187
      %v1192 = vmul.f32 %v576, %v1187
      %v1193 = vmul.f32 %v579, %v1187
      %v1194 = vmul.f32 %v584, %v1187
      %v1195 = vmul.f32 %v587, %v1187
      %v1196 = vmul.f32 %v592, %v1187
      %v1197 = vmul.f32 %v595, %v1187
      %v1198 = vmul.f32 %v600, %v1187
      %v1199 = vmul.f32 %v603, %v1187
      %v1200 = vmul.f32 %v608, %v1187
      %v1201 = vmul.f32 %v611, %v1187
      %v1202 = vmul.f32 %v616, %v1187
      %v1203 = vmul.f32 %v619, %v1187
      %v1204 = vmul.f32 %v624, %v1187
      %v1205 = vmul.f32 %v627, %v1187
      %v1206 = vmul.f32 %v632, %v1187
      %v1207 = vmul.f32 %v635, %v1187
      %v1208 = vmul.f32 %v640, %v1187
      %v1209 = vmul.f32 %v643, %v1187
      %v1210 = vmul.f32 %v648, %v1187
      %v1211 = vmul.f32 %v651, %v1187
      %v1212 = vmul.f32 %v656, %v1187
      %v1213 = vmul.f32 %v659, %v1187
      %v1214 = vmul.f32 %v664, %v1187
      %v1215 = vmul.f32 %v667, %v1187
      %v1216 = vmul.f32 %v672, %v1187
      %v1217 = vmul.f32 %v675, %v1187
      %v1218 = vmul.f32 %v680, %v1187
      %v1219 = vmul.f32 %v683, %v1187
      %v1220 = vmul.f32 %v740, %v740
      %v1221 = vmul.f32 %v743, %v743
      %v1222 = vmul.f32 %v748, %v748
      %v1223 = vmul.f32 %v751, %v751
      %v1224 = vmul.f32 %v756, %v756
      %v1225 = vmul.f32 %v759, %v759
      %v1226 = vmul.f32 %v764, %v764
      %v1227 = vmul.f32 %v767, %v767
      %v1228 = vmul.f32 %v772, %v772
      %v1229 = vmul.f32 %v775, %v775
      %v1230 = vmul.f32 %v780, %v780
      %v1231 = vmul.f32 %v783, %v783
      %v1232 = vmul.f32 %v788, %v788
      %v1233 = vmul.f32 %v791, %v791
      %v1234 = vmul.f32 %v796, %v796
      %v1235 = vmul.f32 %v799, %v799
      %v1236 = vmul.f32 %v804, %v804
      %v1237 = vmul.f32 %v807, %v807
      %v1238 = vmul.f32 %v812, %v812
      %v1239 = vmul.f32 %v815, %v815
      %v1240 = vmul.f32 %v820, %v820
      %v1241 = vmul.f32 %v823, %v823
      %v1242 = vmul.f32 %v828, %v828
      %v1243 = vmul.f32 %v831, %v831
      %v1244 = vmul.f32 %v836, %v836
      %v1245 = vmul.f32 %v839, %v839
      %v1246 = vmul.f32 %v844, %v844
      %v1247 = vmul.f32 %v847, %v847
      %v1248 = vmul.f32 %v852, %v852
      %v1249 = vmul.f32 %v855, %v855
      %v1250 = vmul.f32 %v860, %v860
      %v1251 = vmul.f32 %v863, %v863
      %v1252 = vsel %vm476, %v1220, 0.0
      %v1253 = vsel %vm476, %v1221, 0.0
      %v1254 = vadd.f32 %v1252, %v1253
      %v1255 = vsel %vm476, %v1222, 0.0
      %v1256 = vadd.f32 %v1254, %v1255
      %v1257 = vsel %vm476, %v1223, 0.0
      %v1258 = vadd.f32 %v1256, %v1257
      %v1259 = vsel %vm476, %v1224, 0.0
      %v1260 = vadd.f32 %v1258, %v1259
      %v1261 = vsel %vm476, %v1225, 0.0
      %v1262 = vadd.f32 %v1260, %v1261
      %v1263 = vsel %vm476, %v1226, 0.0
      %v1264 = vadd.f32 %v1262, %v1263
      %v1265 = vsel %vm476, %v1227, 0.0
      %v1266 = vadd.f32 %v1264, %v1265
      %v1267 = vsel %vm476, %v1228, 0.0
      %v1268 = vadd.f32 %v1266, %v1267
      %v1269 = vsel %vm476, %v1229, 0.0
      %v1270 = vadd.f32 %v1268, %v1269
      %v1271 = vsel %vm476, %v1230, 0.0
      %v1272 = vadd.f32 %v1270, %v1271
      %v1273 = vsel %vm476, %v1231, 0.0
      %v1274 = vadd.f32 %v1272, %v1273
      %v1275 = vsel %vm476, %v1232, 0.0
      %v1276 = vadd.f32 %v1274, %v1275
      %v1277 = vsel %vm476, %v1233, 0.0
      %v1278 = vadd.f32 %v1276, %v1277
      %v1279 = vsel %vm476, %v1234, 0.0
      %v1280 = vadd.f32 %v1278, %v1279
      %v1281 = vsel %vm476, %v1235, 0.0
      %v1282 = vadd.f32 %v1280, %v1281
      %v1283 = vsel %vm476, %v1236, 0.0
      %v1284 = vadd.f32 %v1282, %v1283
      %v1285 = vsel %vm476, %v1237, 0.0
      %v1286 = vadd.f32 %v1284, %v1285
      %v1287 = vsel %vm476, %v1238, 0.0
      %v1288 = vadd.f32 %v1286, %v1287
      %v1289 = vsel %vm476, %v1239, 0.0
      %v1290 = vadd.f32 %v1288, %v1289
      %v1291 = vsel %vm476, %v1240, 0.0
      %v1292 = vadd.f32 %v1290, %v1291
      %v1293 = vsel %vm476, %v1241, 0.0
      %v1294 = vadd.f32 %v1292, %v1293
      %v1295 = vsel %vm476, %v1242, 0.0
      %v1296 = vadd.f32 %v1294, %v1295
      %v1297 = vsel %vm476, %v1243, 0.0
      %v1298 = vadd.f32 %v1296, %v1297
      %v1299 = vsel %vm476, %v1244, 0.0
      %v1300 = vadd.f32 %v1298, %v1299
      %v1301 = vsel %vm476, %v1245, 0.0
      %v1302 = vadd.f32 %v1300, %v1301
      %v1303 = vsel %vm476, %v1246, 0.0
      %v1304 = vadd.f32 %v1302, %v1303
      %v1305 = vsel %vm476, %v1247, 0.0
      %v1306 = vadd.f32 %v1304, %v1305
      %v1307 = vsel %vm476, %v1248, 0.0
      %v1308 = vadd.f32 %v1306, %v1307
      %v1309 = vsel %vm476, %v1249, 0.0
      %v1310 = vadd.f32 %v1308, %v1309
      %v1311 = vsel %vm476, %v1250, 0.0
      %v1312 = vadd.f32 %v1310, %v1311
      %v1313 = vsel %vm476, %v1251, 0.0
      %v1314 = vadd.f32 %v1312, %v1313
      %v1315 = vrot.slane %v1314, 4
      %v1316 = vadd.f32 %v1314, %v1315
      %v1317 = vrot.slane %v1316, 2
      %v1318 = vadd.f32 %v1316, %v1317
      %v1319 = vrot.slane %v1318, 1
      %v1320 = vadd.f32 %v1318, %v1319
      %v1321 = vrsqrt.pop %v1320
      %v1322 = vmul.f32 %v1320, %v1321
      %vm1323 = vcmp.eq.f32.partialorder %v1320, inf
      %v1324 = vsel %vm1323, %v1320, %v1322
      %vm1325 = vcmp.eq.f32.partialorder %v1320, 0.0
      %v1326 = vand.u32 %v1320, 2147483648
      %v1327 = vsel %vm1325, %v1326, %v1324
      %v1328 = vmax.f32 %v1327, 1e-12
      %v1329 = vrcp.pop %v1328
      %v1330 = vmul.f32 %v740, %v1329
      %v1331 = vmul.f32 %v743, %v1329
      %v1332 = vmul.f32 %v748, %v1329
      %v1333 = vmul.f32 %v751, %v1329
      %v1334 = vmul.f32 %v756, %v1329
      %v1335 = vmul.f32 %v759, %v1329
      %v1336 = vmul.f32 %v764, %v1329
      %v1337 = vmul.f32 %v767, %v1329
      %v1338 = vmul.f32 %v772, %v1329
      %v1339 = vmul.f32 %v775, %v1329
      %v1340 = vmul.f32 %v780, %v1329
      %v1341 = vmul.f32 %v783, %v1329
      %v1342 = vmul.f32 %v788, %v1329
      %v1343 = vmul.f32 %v791, %v1329
      %v1344 = vmul.f32 %v796, %v1329
      %v1345 = vmul.f32 %v799, %v1329
      %v1346 = vmul.f32 %v804, %v1329
      %v1347 = vmul.f32 %v807, %v1329
      %v1348 = vmul.f32 %v812, %v1329
      %v1349 = vmul.f32 %v815, %v1329
      %v1350 = vmul.f32 %v820, %v1329
      %v1351 = vmul.f32 %v823, %v1329
      %v1352 = vmul.f32 %v828, %v1329
      %v1353 = vmul.f32 %v831, %v1329
      %v1354 = vmul.f32 %v836, %v1329
      %v1355 = vmul.f32 %v839, %v1329
      %v1356 = vmul.f32 %v844, %v1329
      %v1357 = vmul.f32 %v847, %v1329
      %v1358 = vmul.f32 %v852, %v1329
      %v1359 = vmul.f32 %v855, %v1329
      %v1360 = vmul.f32 %v860, %v1329
      %v1361 = vmul.f32 %v863, %v1329
      %v1362 = vld [vmem:[%s7] sm:$0x1]
      %v1364 = vlaneseq
      %v1365 = vshrl.u32 %v1364, 7
      %v1366 = vsub.s32 0, %v1365
      %v1367 = vrot.slane %v1362, %v1366
      %v1369 = vmul.f32 %v1188, %v1367
      %v1370 = vmul.f32 %v1189, %v1367
      %v1371 = vmul.f32 %v1190, %v1367
      %v1372 = vmul.f32 %v1191, %v1367
      %v1373 = vmul.f32 %v1192, %v1367
      %v1374 = vmul.f32 %v1193, %v1367
      %v1375 = vmul.f32 %v1194, %v1367
      %v1376 = vmul.f32 %v1195, %v1367
      %v1377 = vmul.f32 %v1196, %v1367
      %v1378 = vmul.f32 %v1197, %v1367
      %v1379 = vmul.f32 %v1198, %v1367
      %v1380 = vmul.f32 %v1199, %v1367
      %v1381 = vmul.f32 %v1200, %v1367
      %v1382 = vmul.f32 %v1201, %v1367
      %v1383 = vmul.f32 %v1202, %v1367
      %v1384 = vmul.f32 %v1203, %v1367
      %v1385 = vmul.f32 %v1204, %v1367
      %v1386 = vmul.f32 %v1205, %v1367
      %v1387 = vmul.f32 %v1206, %v1367
      %v1388 = vmul.f32 %v1207, %v1367
      %v1389 = vmul.f32 %v1208, %v1367
      %v1390 = vmul.f32 %v1209, %v1367
      %v1391 = vmul.f32 %v1210, %v1367
      %v1392 = vmul.f32 %v1211, %v1367
      %v1393 = vmul.f32 %v1212, %v1367
      %v1394 = vmul.f32 %v1213, %v1367
      %v1395 = vmul.f32 %v1214, %v1367
      %v1396 = vmul.f32 %v1215, %v1367
      %v1397 = vmul.f32 %v1216, %v1367
      %v1398 = vmul.f32 %v1217, %v1367
      %v1399 = vmul.f32 %v1218, %v1367
      %v1400 = vmul.f32 %v1219, %v1367
      %v1401 = vpack.c.bf16 %v1370, %v1369
      %v1402 = vpack.c.bf16 %v1372, %v1371
      %v1403 = vpack.c.bf16 %v1374, %v1373
      %v1404 = vpack.c.bf16 %v1376, %v1375
      %v1405 = vpack.c.bf16 %v1378, %v1377
      %v1406 = vpack.c.bf16 %v1380, %v1379
      %v1407 = vpack.c.bf16 %v1382, %v1381
      %v1408 = vpack.c.bf16 %v1384, %v1383
      %v1409 = vpack.c.bf16 %v1386, %v1385
      %v1410 = vpack.c.bf16 %v1388, %v1387
      %v1411 = vpack.c.bf16 %v1390, %v1389
      %v1412 = vpack.c.bf16 %v1392, %v1391
      %v1413 = vpack.c.bf16 %v1394, %v1393
      %v1414 = vpack.c.bf16 %v1396, %v1395
      %v1415 = vpack.c.bf16 %v1398, %v1397
      %v1416 = vpack.c.bf16 %v1400, %v1399
      %v1417 = vpack.c.bf16 %v1331, %v1330
      %v1418 = vpack.c.bf16 %v1333, %v1332
      %v1419 = vpack.c.bf16 %v1335, %v1334
      %v1420 = vpack.c.bf16 %v1337, %v1336
      %v1421 = vpack.c.bf16 %v1339, %v1338
      %v1422 = vpack.c.bf16 %v1341, %v1340
      %v1423 = vpack.c.bf16 %v1343, %v1342
      %v1424 = vpack.c.bf16 %v1345, %v1344
      %v1425 = vpack.c.bf16 %v1347, %v1346
      %v1426 = vpack.c.bf16 %v1349, %v1348
      %v1427 = vpack.c.bf16 %v1351, %v1350
      %v1428 = vpack.c.bf16 %v1353, %v1352
      %v1429 = vpack.c.bf16 %v1355, %v1354
      %v1430 = vpack.c.bf16 %v1357, %v1356
      %v1431 = vpack.c.bf16 %v1359, %v1358
      %v1432 = vpack.c.bf16 %v1361, %v1360
      %v1433 = vld [vmem:[%s8] sm:$0xff]
      %v1434 = vld [vmem:[%s8 + $0x8] sm:$0xff]
      %v1435 = vld [vmem:[%s8 + $0x10] sm:$0xff]
      %v1436 = vld [vmem:[%s8 + $0x18] sm:$0xff]
      %v1437 = vld [vmem:[%s8 + $0x20] sm:$0xff]
      %v1438 = vld [vmem:[%s8 + $0x28] sm:$0xff]
      %v1439 = vld [vmem:[%s8 + $0x30] sm:$0xff]
      %v1440 = vld [vmem:[%s8 + $0x38] sm:$0xff]
      %1441 = vxpose.xlu0.c.b16.start [1/8] %v1401, 128
      %1442 = vxpose.xlu0.c.b16.cont [2/8] %v1402, 128
      %1443 = vxpose.xlu0.c.b16.cont [3/8] %v1403, 128
      %1444 = vxpose.xlu0.c.b16.cont [4/8] %v1404, 128
      %1445 = vxpose.xlu0.c.b16.cont [5/8] %v1405, 128
      %1446 = vxpose.xlu0.c.b16.cont [6/8] %v1406, 128
      %1447 = vxpose.xlu0.c.b16.cont [7/8] %v1407, 128
      %1448 = vxpose.xlu0.c.b16.end [8/8] %v1408, 128
      %v1449 = vpop.trf.xlu0
      %v1450 = vpop.trf.xlu0
      %v1451 = vpop.trf.xlu0
      %v1452 = vpop.trf.xlu0
      %v1453 = vpop.trf.xlu0
      %v1454 = vpop.trf.xlu0
      %v1455 = vpop.trf.xlu0
      %v1456 = vpop.trf.xlu0
      %1457 = vxpose.xlu0.c.b16.start [1/8] %v1409, 128
      %1458 = vxpose.xlu0.c.b16.cont [2/8] %v1410, 128
      %1459 = vxpose.xlu0.c.b16.cont [3/8] %v1411, 128
      %1460 = vxpose.xlu0.c.b16.cont [4/8] %v1412, 128
      %1461 = vxpose.xlu0.c.b16.cont [5/8] %v1413, 128
      %1462 = vxpose.xlu0.c.b16.cont [6/8] %v1414, 128
      %1463 = vxpose.xlu0.c.b16.cont [7/8] %v1415, 128
      %1464 = vxpose.xlu0.c.b16.end [8/8] %v1416, 128
      %v1465 = vpop.trf.xlu0
      %v1466 = vpop.trf.xlu0
      %v1467 = vpop.trf.xlu0
      %v1468 = vpop.trf.xlu0
      %v1469 = vpop.trf.xlu0
      %v1470 = vpop.trf.xlu0
      %v1471 = vpop.trf.xlu0
      %v1472 = vpop.trf.xlu0
      %1473 = vmatprep.subr.bf16.mxu0 0
      %1474 = vmatpush1.bf16.msra.mxu0 %v1424
      %1475 = vmatprep.subr.bf16.mxu0 0
      %1476 = vmatpush1.bf16.msra.mxu0 %v1423
      %1477 = vmatprep.subr.bf16.mxu0 0
      %1478 = vmatpush1.bf16.msra.mxu0 %v1422
      %1479 = vmatprep.subr.bf16.mxu0 0
      %1480 = vmatpush1.bf16.msra.mxu0 %v1421
      %1481 = vmatprep.subr.bf16.mxu0 0
      %1482 = vmatpush1.bf16.msra.mxu0 %v1420
      %1483 = vmatprep.subr.bf16.mxu0 0
      %1484 = vmatpush1.bf16.msra.mxu0 %v1419
      %1485 = vmatprep.subr.bf16.mxu0 0
      %1486 = vmatpush1.bf16.msra.mxu0 %v1418
      %1487 = vmatprep.subr.bf16.mxu0 0
      %1488 = vmatpush1.bf16.msra.mxu0 %v1417
      %1489 = vmatprep.subr.bf16.mxu0 0
      %1490 = vmatpush2.bf16.msra.mxu0 %v1432
      %1491 = vmatprep.subr.bf16.mxu0 0
      %1492 = vmatpush2.bf16.msra.mxu0 %v1431
      %1493 = vmatprep.subr.bf16.mxu0 0
      %1494 = vmatpush2.bf16.msra.mxu0 %v1430
      %1495 = vmatprep.subr.bf16.mxu0 0
      %1496 = vmatpush2.bf16.msra.mxu0 %v1429
      %1497 = vmatprep.subr.bf16.mxu0 0
      %1498 = vmatpush2.bf16.msra.mxu0 %v1428
      %1499 = vmatprep.subr.bf16.mxu0 0
      %1500 = vmatpush2.bf16.msra.mxu0 %v1427
      %1501 = vmatprep.subr.bf16.mxu0 0
      %1502 = vmatpush2.bf16.msra.mxu0 %v1426
      %1503 = vmatprep.subr.bf16.mxu0 0
      %1504 = vmatpush2.bf16.msra.mxu0 %v1425
      %1505 = vmatprep.mubr.bf16.mxu0 %v1465
      %1506 = vmatmul.mubr.bf16.gmra.mxu0 %v1449
      %v1507 = vpop.f32.mrf.mxu0
      %v1508 = vadd.f32 %v1433, %v1507
      %v1509 = vpop.f32.mrf.mxu0
      %v1510 = vpop.f32.mrf.mxu0
      %v1511 = vadd.f32 %v1434, %v1510
      %v1512 = vpop.f32.mrf.mxu0
      %1513 = vmatprep.mubr.bf16.mxu0 %v1466
      %1514 = vmatmul.mubr.bf16.gmra.mxu0 %v1450
      %v1515 = vpop.f32.mrf.mxu0
      %v1516 = vadd.f32 %v1435, %v1515
      %v1517 = vpop.f32.mrf.mxu0
      %v1518 = vpop.f32.mrf.mxu0
      %v1519 = vadd.f32 %v1436, %v1518
      %v1520 = vpop.f32.mrf.mxu0
      %1521 = vmatprep.mubr.bf16.mxu0 %v1467
      %1522 = vmatmul.mubr.bf16.gmra.mxu0 %v1451
      %v1523 = vpop.f32.mrf.mxu0
      %v1524 = vadd.f32 %v1437, %v1523
      %v1525 = vpop.f32.mrf.mxu0
      %v1526 = vpop.f32.mrf.mxu0
      %v1527 = vadd.f32 %v1438, %v1526
      %v1528 = vpop.f32.mrf.mxu0
      %1529 = vmatprep.mubr.bf16.mxu0 %v1468
      %1530 = vmatmul.mubr.bf16.gmra.mxu0 %v1452
      %v1531 = vpop.f32.mrf.mxu0
      %v1532 = vadd.f32 %v1439, %v1531
      %v1533 = vpop.f32.mrf.mxu0
      %v1534 = vpop.f32.mrf.mxu0
      %v1535 = vadd.f32 %v1440, %v1534
      %v1536 = vpop.f32.mrf.mxu0
      %1537 = vdwg.mxu0
      %v1538 = vsel %vm476, %v1508, -inf
      %1539 = vmax.xlane.f32.xlu0 %v1538
      %v1540 = vpop.xlane.xlu0 %1539
      %v1541 = vsel %vm476, %v1511, -inf
      %1542 = vmax.xlane.f32.xlu0 %v1541
      %v1543 = vpop.xlane.xlu0 %1542
      %v1544 = vsel %vm476, %v1516, -inf
      %1545 = vmax.xlane.f32.xlu0 %v1544
      %v1546 = vpop.xlane.xlu0 %1545
      %v1547 = vsel %vm476, %v1519, -inf
      %1548 = vmax.xlane.f32.xlu0 %v1547
      %v1549 = vpop.xlane.xlu0 %1548
      %v1550 = vsel %vm476, %v1524, -inf
      %1551 = vmax.xlane.f32.xlu0 %v1550
      %v1552 = vpop.xlane.xlu0 %1551
      %v1553 = vsel %vm476, %v1527, -inf
      %1554 = vmax.xlane.f32.xlu0 %v1553
      %v1555 = vpop.xlane.xlu0 %1554
      %v1556 = vsel %vm476, %v1532, -inf
      %1557 = vmax.xlane.f32.xlu0 %v1556
      %v1558 = vpop.xlane.xlu0 %1557
      %v1559 = vsel %vm476, %v1535, -inf
      %1560 = vmax.xlane.f32.xlu0 %v1559
      %v1561 = vpop.xlane.xlu0 %1560
      %v1562 = vsub.f32 %v1508, %v1540
      %v1563 = vsub.f32 %v1511, %v1543
      %v1564 = vsub.f32 %v1516, %v1546
      %v1565 = vsub.f32 %v1519, %v1549
      %v1566 = vsub.f32 %v1524, %v1552
      %v1567 = vsub.f32 %v1527, %v1555
      %v1568 = vsub.f32 %v1532, %v1558
      %v1569 = vsub.f32 %v1535, %v1561
      %v1570 = vmul.f32 %v1562, 1.442695
      %v1571 = vpow.pop %v1570
      %v1572 = vmul.f32 %v1563, 1.442695
      %v1573 = vpow.pop %v1572
      %v1574 = vmul.f32 %v1564, 1.442695
      %v1575 = vpow.pop %v1574
      %v1576 = vmul.f32 %v1565, 1.442695
      %v1577 = vpow.pop %v1576
      %v1578 = vmul.f32 %v1566, 1.442695
      %v1579 = vpow.pop %v1578
      %v1580 = vmul.f32 %v1567, 1.442695
      %v1581 = vpow.pop %v1580
      %v1582 = vmul.f32 %v1568, 1.442695
      %v1583 = vpow.pop %v1582
      %v1584 = vmul.f32 %v1569, 1.442695
      %v1585 = vpow.pop %v1584
      %v1586 = vsel %vm476, %v1571, 0.0
      %1587 = vadd.xlane.f32.xlu0 %v1586
      %v1588 = vpop.xlane.xlu0 %1587
      %v1589 = vsel %vm476, %v1573, 0.0
      %1590 = vadd.xlane.f32.xlu0 %v1589
      %v1591 = vpop.xlane.xlu0 %1590
      %v1592 = vsel %vm476, %v1575, 0.0
      %1593 = vadd.xlane.f32.xlu0 %v1592
      %v1594 = vpop.xlane.xlu0 %1593
      %v1595 = vsel %vm476, %v1577, 0.0
      %1596 = vadd.xlane.f32.xlu0 %v1595
      %v1597 = vpop.xlane.xlu0 %1596
      %v1598 = vsel %vm476, %v1579, 0.0
      %1599 = vadd.xlane.f32.xlu0 %v1598
      %v1600 = vpop.xlane.xlu0 %1599
      %v1601 = vsel %vm476, %v1581, 0.0
      %1602 = vadd.xlane.f32.xlu0 %v1601
      %v1603 = vpop.xlane.xlu0 %1602
      %v1604 = vsel %vm476, %v1583, 0.0
      %1605 = vadd.xlane.f32.xlu0 %v1604
      %v1606 = vpop.xlane.xlu0 %1605
      %v1607 = vsel %vm476, %v1585, 0.0
      %1608 = vadd.xlane.f32.xlu0 %v1607
      %v1609 = vpop.xlane.xlu0 %1608
      %v1610 = vrcp.pop %v1588
      %v1611 = vrcp.pop %v1591
      %v1612 = vrcp.pop %v1594
      %v1613 = vrcp.pop %v1597
      %v1614 = vrcp.pop %v1600
      %v1615 = vrcp.pop %v1603
      %v1616 = vrcp.pop %v1606
      %v1617 = vrcp.pop %v1609
      %v1618 = vmul.f32 %v1571, %v1610
      %v1619 = vmul.f32 %v1573, %v1611
      %v1620 = vmul.f32 %v1575, %v1612
      %v1621 = vmul.f32 %v1577, %v1613
      %v1622 = vmul.f32 %v1579, %v1614
      %v1623 = vmul.f32 %v1581, %v1615
      %v1624 = vmul.f32 %v1583, %v1616
      %v1625 = vmul.f32 %v1585, %v1617
      %v1626 = vpack.c.bf16 %v923, %v920
      %v1627 = vpack.c.bf16 %v931, %v928
      %v1628 = vpack.c.bf16 %v939, %v936
      %v1629 = vpack.c.bf16 %v947, %v944
      %v1630 = vpack.c.bf16 %v955, %v952
      %v1631 = vpack.c.bf16 %v963, %v960
      %v1632 = vpack.c.bf16 %v971, %v968
      %v1633 = vpack.c.bf16 %v979, %v976
      %v1634 = vpack.c.bf16 %v987, %v984
      %v1635 = vpack.c.bf16 %v995, %v992
      %v1636 = vpack.c.bf16 %v1003, %v1000
      %v1637 = vpack.c.bf16 %v1011, %v1008
      %v1638 = vpack.c.bf16 %v1019, %v1016
      %v1639 = vpack.c.bf16 %v1027, %v1024
      %v1640 = vpack.c.bf16 %v1035, %v1032
      %v1641 = vpack.c.bf16 %v1043, %v1040
      %v1642 = vpack.c.bf16 %v1619, %v1618
      %v1643 = vpack.c.bf16 %v1621, %v1620
      %v1644 = vpack.c.bf16 %v1623, %v1622
      %v1645 = vpack.c.bf16 %v1625, %v1624
      %v1647 = vsel %vm476, %v1626, 0
      %v1650 = vsel %vm476, %v1627, 0
      %v1653 = vsel %vm476, %v1628, 0
      %v1656 = vsel %vm476, %v1629, 0
      %v1659 = vsel %vm476, %v1630, 0
      %v1662 = vsel %vm476, %v1631, 0
      %v1665 = vsel %vm476, %v1632, 0
      %v1668 = vsel %vm476, %v1633, 0
      %v1671 = vsel %vm476, %v1634, 0
      %v1674 = vsel %vm476, %v1635, 0
      %v1677 = vsel %vm476, %v1636, 0
      %v1680 = vsel %vm476, %v1637, 0
      %v1683 = vsel %vm476, %v1638, 0
      %v1686 = vsel %vm476, %v1639, 0
      %v1689 = vsel %vm476, %v1640, 0
      %v1692 = vsel %vm476, %v1641, 0
      %v1695 = vsel %vm476, %v1642, 0
      %v1698 = vsel %vm476, %v1643, 0
      %v1701 = vsel %vm476, %v1644, 0
      %v1704 = vsel %vm476, %v1645, 0
      %1706 = vmatprep.subr.bf16.mxu0 0
      %1707 = vmatpush1.bf16.xpose.msra.mxu0 0
      %1708 = vmatprep.subr.bf16.mxu0 0
      %1709 = vmatpush1.bf16.xpose.msra.mxu0 0
      %1710 = vmatprep.subr.bf16.mxu0 0
      %1711 = vmatpush1.bf16.xpose.msra.mxu0 0
      %1712 = vmatprep.subr.bf16.mxu0 0
      %1713 = vmatpush1.bf16.xpose.msra.mxu0 0
      %1714 = vmatprep.subr.bf16.mxu0 0
      %1715 = vmatpush1.bf16.xpose.msra.mxu0 %v1704
      %1716 = vmatprep.subr.bf16.mxu0 0
      %1717 = vmatpush1.bf16.xpose.msra.mxu0 %v1701
      %1718 = vmatprep.subr.bf16.mxu0 0
      %1719 = vmatpush1.bf16.xpose.msra.mxu0 %v1698
      %1720 = vmatprep.subr.bf16.mxu0 0
      %1721 = vmatpush1.bf16.xpose.msra.mxu0 %v1695
      %1722 = vmatprep.subr.bf16.mxu0 0
      %1723 = vmatpush2.bf16.xpose.msra.mxu0 0
      %1724 = vmatprep.subr.bf16.mxu0 0
      %1725 = vmatpush2.bf16.xpose.msra.mxu0 0
      %1726 = vmatprep.subr.bf16.mxu0 0
      %1727 = vmatpush2.bf16.xpose.msra.mxu0 0
      %1728 = vmatprep.subr.bf16.mxu0 0
      %1729 = vmatpush2.bf16.xpose.msra.mxu0 0
      %1730 = vmatprep.subr.bf16.mxu0 0
      %1731 = vmatpush2.bf16.xpose.msra.mxu0 0
      %1732 = vmatprep.subr.bf16.mxu0 0
      %1733 = vmatpush2.bf16.xpose.msra.mxu0 0
      %1734 = vmatprep.subr.bf16.mxu0 0
      %1735 = vmatpush2.bf16.xpose.msra.mxu0 0
      %1736 = vmatprep.subr.bf16.mxu0 0
      %1737 = vmatpush2.bf16.xpose.msra.mxu0 0
      %1738 = vmatprep.mubr.bf16.mxu0 0
      %1739 = vmatmul.mubr.bf16.gmra.mxu0 %v1647
      %v1740 = vpop.f32.mrf.mxu0
      %v1741 = vadd.f32 0.0, %v1740
      %v1742 = vpop.f32.mrf.mxu0
      %v1743 = vpop.f32.mrf.mxu0
      %v1744 = vadd.f32 0.0, %v1743
      %v1745 = vpop.f32.mrf.mxu0
      %1746 = vmatprep.mubr.bf16.mxu0 0
      %1747 = vmatmul.mubr.bf16.gmra.mxu0 %v1650
      %v1748 = vpop.f32.mrf.mxu0
      %v1749 = vadd.f32 0.0, %v1748
      %v1750 = vpop.f32.mrf.mxu0
      %v1751 = vpop.f32.mrf.mxu0
      %v1752 = vadd.f32 0.0, %v1751
      %v1753 = vpop.f32.mrf.mxu0
      %1754 = vmatprep.mubr.bf16.mxu0 0
      %1755 = vmatmul.mubr.bf16.gmra.mxu0 %v1653
      %v1756 = vpop.f32.mrf.mxu0
      %v1757 = vadd.f32 0.0, %v1756
      %v1758 = vpop.f32.mrf.mxu0
      %v1759 = vpop.f32.mrf.mxu0
      %v1760 = vadd.f32 0.0, %v1759
      %v1761 = vpop.f32.mrf.mxu0
      %1762 = vmatprep.mubr.bf16.mxu0 0
      %1763 = vmatmul.mubr.bf16.gmra.mxu0 %v1656
      %v1764 = vpop.f32.mrf.mxu0
      %v1765 = vadd.f32 0.0, %v1764
      %v1766 = vpop.f32.mrf.mxu0
      %v1767 = vpop.f32.mrf.mxu0
      %v1768 = vadd.f32 0.0, %v1767
      %v1769 = vpop.f32.mrf.mxu0
      %1770 = vmatprep.mubr.bf16.mxu0 0
      %1771 = vmatmul.mubr.bf16.gmra.mxu0 %v1659
      %v1772 = vpop.f32.mrf.mxu0
      %v1773 = vadd.f32 0.0, %v1772
      %v1774 = vpop.f32.mrf.mxu0
      %v1775 = vpop.f32.mrf.mxu0
      %v1776 = vadd.f32 0.0, %v1775
      %v1777 = vpop.f32.mrf.mxu0
      %1778 = vmatprep.mubr.bf16.mxu0 0
      %1779 = vmatmul.mubr.bf16.gmra.mxu0 %v1662
      %v1780 = vpop.f32.mrf.mxu0
      %v1781 = vadd.f32 0.0, %v1780
      %v1782 = vpop.f32.mrf.mxu0
      %v1783 = vpop.f32.mrf.mxu0
      %v1784 = vadd.f32 0.0, %v1783
      %v1785 = vpop.f32.mrf.mxu0
      %1786 = vmatprep.mubr.bf16.mxu0 0
      %1787 = vmatmul.mubr.bf16.gmra.mxu0 %v1665
      %v1788 = vpop.f32.mrf.mxu0
      %v1789 = vadd.f32 0.0, %v1788
      %v1790 = vpop.f32.mrf.mxu0
      %v1791 = vpop.f32.mrf.mxu0
      %v1792 = vadd.f32 0.0, %v1791
      %v1793 = vpop.f32.mrf.mxu0
      %1794 = vmatprep.mubr.bf16.mxu0 0
      %1795 = vmatmul.mubr.bf16.gmra.mxu0 %v1668
      %v1796 = vpop.f32.mrf.mxu0
      %v1797 = vadd.f32 0.0, %v1796
      %v1798 = vpop.f32.mrf.mxu0
      %v1799 = vpop.f32.mrf.mxu0
      %v1800 = vadd.f32 0.0, %v1799
      %v1801 = vpop.f32.mrf.mxu0
      %1802 = vmatprep.mubr.bf16.mxu0 0
      %1803 = vmatmul.mubr.bf16.gmra.mxu0 %v1671
      %v1804 = vpop.f32.mrf.mxu0
      %v1805 = vadd.f32 0.0, %v1804
      %v1806 = vpop.f32.mrf.mxu0
      %v1807 = vpop.f32.mrf.mxu0
      %v1808 = vadd.f32 0.0, %v1807
      %v1809 = vpop.f32.mrf.mxu0
      %1810 = vmatprep.mubr.bf16.mxu0 0
      %1811 = vmatmul.mubr.bf16.gmra.mxu0 %v1674
      %v1812 = vpop.f32.mrf.mxu0
      %v1813 = vadd.f32 0.0, %v1812
      %v1814 = vpop.f32.mrf.mxu0
      %v1815 = vpop.f32.mrf.mxu0
      %v1816 = vadd.f32 0.0, %v1815
      %v1817 = vpop.f32.mrf.mxu0
      %1818 = vmatprep.mubr.bf16.mxu0 0
      %1819 = vmatmul.mubr.bf16.gmra.mxu0 %v1677
      %v1820 = vpop.f32.mrf.mxu0
      %v1821 = vadd.f32 0.0, %v1820
      %v1822 = vpop.f32.mrf.mxu0
      %v1823 = vpop.f32.mrf.mxu0
      %v1824 = vadd.f32 0.0, %v1823
      %v1825 = vpop.f32.mrf.mxu0
      %1826 = vmatprep.mubr.bf16.mxu0 0
      %1827 = vmatmul.mubr.bf16.gmra.mxu0 %v1680
      %v1828 = vpop.f32.mrf.mxu0
      %v1829 = vadd.f32 0.0, %v1828
      %v1830 = vpop.f32.mrf.mxu0
      %v1831 = vpop.f32.mrf.mxu0
      %v1832 = vadd.f32 0.0, %v1831
      %v1833 = vpop.f32.mrf.mxu0
      %1834 = vmatprep.mubr.bf16.mxu0 0
      %1835 = vmatmul.mubr.bf16.gmra.mxu0 %v1683
      %v1836 = vpop.f32.mrf.mxu0
      %v1837 = vadd.f32 0.0, %v1836
      %v1838 = vpop.f32.mrf.mxu0
      %v1839 = vpop.f32.mrf.mxu0
      %v1840 = vadd.f32 0.0, %v1839
      %v1841 = vpop.f32.mrf.mxu0
      %1842 = vmatprep.mubr.bf16.mxu0 0
      %1843 = vmatmul.mubr.bf16.gmra.mxu0 %v1686
      %v1844 = vpop.f32.mrf.mxu0
      %v1845 = vadd.f32 0.0, %v1844
      %v1846 = vpop.f32.mrf.mxu0
      %v1847 = vpop.f32.mrf.mxu0
      %v1848 = vadd.f32 0.0, %v1847
      %v1849 = vpop.f32.mrf.mxu0
      %1850 = vmatprep.mubr.bf16.mxu0 0
      %1851 = vmatmul.mubr.bf16.gmra.mxu0 %v1689
      %v1852 = vpop.f32.mrf.mxu0
      %v1853 = vadd.f32 0.0, %v1852
      %v1854 = vpop.f32.mrf.mxu0
      %v1855 = vpop.f32.mrf.mxu0
      %v1856 = vadd.f32 0.0, %v1855
      %v1857 = vpop.f32.mrf.mxu0
      %1858 = vmatprep.mubr.bf16.mxu0 0
      %1859 = vmatmul.mubr.bf16.gmra.mxu0 %v1692
      %v1860 = vpop.f32.mrf.mxu0
      %v1861 = vadd.f32 0.0, %v1860
      %v1862 = vpop.f32.mrf.mxu0
      %v1863 = vpop.f32.mrf.mxu0
      %v1864 = vadd.f32 0.0, %v1863
      %v1865 = vpop.f32.mrf.mxu0
      %1866 = vdwg.mxu0
      %1867 = vst.msk [vmem:[%s399] sm:$0xff] %vm476, %v1741
      %1868 = vst.msk [vmem:[%s399 + $0x8] sm:$0xff] %vm476, %v1744
      %1869 = vst.msk [vmem:[%s399 + $0x10] sm:$0xff] %vm476, %v1749
      %1870 = vst.msk [vmem:[%s399 + $0x18] sm:$0xff] %vm476, %v1752
      %1871 = vst.msk [vmem:[%s399 + $0x20] sm:$0xff] %vm476, %v1757
      %1872 = vst.msk [vmem:[%s399 + $0x28] sm:$0xff] %vm476, %v1760
      %1873 = vst.msk [vmem:[%s399 + $0x30] sm:$0xff] %vm476, %v1765
      %1874 = vst.msk [vmem:[%s399 + $0x38] sm:$0xff] %vm476, %v1768
      %1875 = vst.msk [vmem:[%s399 + $0x40] sm:$0xff] %vm476, %v1773
      %1876 = vst.msk [vmem:[%s399 + $0x48] sm:$0xff] %vm476, %v1776
      %1877 = vst.msk [vmem:[%s399 + $0x50] sm:$0xff] %vm476, %v1781
      %1878 = vst.msk [vmem:[%s399 + $0x58] sm:$0xff] %vm476, %v1784
      %1879 = vst.msk [vmem:[%s399 + $0x60] sm:$0xff] %vm476, %v1789
      %1880 = vst.msk [vmem:[%s399 + $0x68] sm:$0xff] %vm476, %v1792
      %1881 = vst.msk [vmem:[%s399 + $0x70] sm:$0xff] %vm476, %v1797
      %1882 = vst.msk [vmem:[%s399 + $0x78] sm:$0xff] %vm476, %v1800
      %1883 = vst.msk [vmem:[%s399 + $0x80] sm:$0xff] %vm476, %v1805
      %1884 = vst.msk [vmem:[%s399 + $0x88] sm:$0xff] %vm476, %v1808
      %1885 = vst.msk [vmem:[%s399 + $0x90] sm:$0xff] %vm476, %v1813
      %1886 = vst.msk [vmem:[%s399 + $0x98] sm:$0xff] %vm476, %v1816
      %1887 = vst.msk [vmem:[%s399 + $0xa0] sm:$0xff] %vm476, %v1821
      %1888 = vst.msk [vmem:[%s399 + $0xa8] sm:$0xff] %vm476, %v1824
      %1889 = vst.msk [vmem:[%s399 + $0xb0] sm:$0xff] %vm476, %v1829
      %1890 = vst.msk [vmem:[%s399 + $0xb8] sm:$0xff] %vm476, %v1832
      %1891 = vst.msk [vmem:[%s399 + $0xc0] sm:$0xff] %vm476, %v1837
      %1892 = vst.msk [vmem:[%s399 + $0xc8] sm:$0xff] %vm476, %v1840
      %1893 = vst.msk [vmem:[%s399 + $0xd0] sm:$0xff] %vm476, %v1845
      %1894 = vst.msk [vmem:[%s399 + $0xd8] sm:$0xff] %vm476, %v1848
      %1895 = vst.msk [vmem:[%s399 + $0xe0] sm:$0xff] %vm476, %v1853
      %1896 = vst.msk [vmem:[%s399 + $0xe8] sm:$0xff] %vm476, %v1856
      %1897 = vst.msk [vmem:[%s399 + $0xf0] sm:$0xff] %vm476, %v1861
      %1898 = vst.msk [vmem:[%s399 + $0xf8] sm:$0xff] %vm476, %v1864
      %v1899 = vsel %vm476, %v1741, 0.0
      %v1900 = vsel %vm476, %v1744, 0.0
      %v1901 = vadd.f32 %v1899, %v1900
      %v1902 = vsel %vm476, %v1749, 0.0
      %v1903 = vadd.f32 %v1901, %v1902
      %v1904 = vsel %vm476, %v1752, 0.0
      %v1905 = vadd.f32 %v1903, %v1904
      %v1906 = vsel %vm476, %v1757, 0.0
      %v1907 = vadd.f32 %v1905, %v1906
      %v1908 = vsel %vm476, %v1760, 0.0
      %v1909 = vadd.f32 %v1907, %v1908
      %v1910 = vsel %vm476, %v1765, 0.0
      %v1911 = vadd.f32 %v1909, %v1910
      %v1912 = vsel %vm476, %v1768, 0.0
      %v1913 = vadd.f32 %v1911, %v1912
      %v1914 = vsel %vm476, %v1773, 0.0
      %v1915 = vadd.f32 %v1913, %v1914
      %v1916 = vsel %vm476, %v1776, 0.0
      %v1917 = vadd.f32 %v1915, %v1916
      %v1918 = vsel %vm476, %v1781, 0.0
      %v1919 = vadd.f32 %v1917, %v1918
      %v1920 = vsel %vm476, %v1784, 0.0
      %v1921 = vadd.f32 %v1919, %v1920
      %v1922 = vsel %vm476, %v1789, 0.0
      %v1923 = vadd.f32 %v1921, %v1922
      %v1924 = vsel %vm476, %v1792, 0.0
      %v1925 = vadd.f32 %v1923, %v1924
      %v1926 = vsel %vm476, %v1797, 0.0
      %v1927 = vadd.f32 %v1925, %v1926
      %v1928 = vsel %vm476, %v1800, 0.0
      %v1929 = vadd.f32 %v1927, %v1928
      %v1930 = vsel %vm476, %v1805, 0.0
      %v1931 = vadd.f32 %v1929, %v1930
      %v1932 = vsel %vm476, %v1808, 0.0
      %v1933 = vadd.f32 %v1931, %v1932
      %v1934 = vsel %vm476, %v1813, 0.0
      %v1935 = vadd.f32 %v1933, %v1934
      %v1936 = vsel %vm476, %v1816, 0.0
      %v1937 = vadd.f32 %v1935, %v1936
      %v1938 = vsel %vm476, %v1821, 0.0
      %v1939 = vadd.f32 %v1937, %v1938
      %v1940 = vsel %vm476, %v1824, 0.0
      %v1941 = vadd.f32 %v1939, %v1940
      %v1942 = vsel %vm476, %v1829, 0.0
      %v1943 = vadd.f32 %v1941, %v1942
      %v1944 = vsel %vm476, %v1832, 0.0
      %v1945 = vadd.f32 %v1943, %v1944
      %v1946 = vsel %vm476, %v1837, 0.0
      %v1947 = vadd.f32 %v1945, %v1946
      %v1948 = vsel %vm476, %v1840, 0.0
      %v1949 = vadd.f32 %v1947, %v1948
      %v1950 = vsel %vm476, %v1845, 0.0
      %v1951 = vadd.f32 %v1949, %v1950
      %v1952 = vsel %vm476, %v1848, 0.0
      %v1953 = vadd.f32 %v1951, %v1952
      %v1954 = vsel %vm476, %v1853, 0.0
      %v1955 = vadd.f32 %v1953, %v1954
      %v1956 = vsel %vm476, %v1856, 0.0
      %v1957 = vadd.f32 %v1955, %v1956
      %v1958 = vsel %vm476, %v1861, 0.0
      %v1959 = vadd.f32 %v1957, %v1958
      %v1960 = vsel %vm476, %v1864, 0.0
      %v1961 = vadd.f32 %v1959, %v1960
      %v1962 = vrot.slane %v1961, 4
      %v1963 = vadd.f32 %v1961, %v1962
      %v1964 = vrot.slane %v1963, 2
      %v1965 = vadd.f32 %v1963, %v1964
      %v1966 = vrot.slane %v1965, 1
      %v1967 = vadd.f32 %v1965, %v1966
      %v1968 = vrcp.pop 256.0
      %v1969 = vmul.f32 %v1967, %v1968
      %vm1970 = vcmask 516096
      %1971 = vst.msk [vmem:[%s402] sm:$0x1] %vm1970, %v1969
      %p1972 = scmp.lt.s32.totalorder %s23, 1
      %s1973 = scalar_select %p1972, %s23, 1
      %s1974 = smul.addr %s1973, 32
      %s1975 = smul.addr %s1974, 8
      %s1976 = scalar_lea.vmem %s9, %s1975
      %p1977 = scmp.lt.s32.totalorder %s23, 1
      %s1978 = scalar_select %p1977, %s23, 1
      %s1979 = scalar_lea.vmem %s10, %s1978
      %p1980 = scmp.lt.s32.totalorder %s23, 1
      %s1981 = scalar_select %p1980, %s23, 1
      %s1982 = smul.addr %s1981, 32
      %s1983 = smul.addr %s1982, 8
      %s1984 = scalar_lea.vmem %s11, %s1983
      // Predicated region
      $region57: #{adaptive_channel_attention_forward.3} parent=55 // pred_check
        %p1985 = pneg %p235
      $region58: #{adaptive_channel_attention_forward.3} parent=55 // pred_check_branch
        %1987 = sbr.rel (%p1985) target = $region60
      $region59: #{adaptive_channel_attention_forward.3} parent=55 // pred_region
        _
      $region60: #{adaptive_channel_attention_forward.3} parent=55 // pred_fallthru
        _
      // Predicated region
      $region61: #{adaptive_channel_attention_forward.3} parent=55 // pred_check
        %p1988 = pneg %p261
      $region62: #{adaptive_channel_attention_forward.3} parent=55 // pred_check_branch
        %1990 = sbr.rel (%p1988) target = $region64
      $region63: #{adaptive_channel_attention_forward.3} parent=55 // pred_region
        _
      $region64: #{adaptive_channel_attention_forward.3} parent=55 // pred_fallthru
        _
      // Predicated region
      $region65: #{adaptive_channel_attention_forward.3} parent=55 // pred_check
        %p1991 = pneg %p287
      $region66: #{adaptive_channel_attention_forward.3} parent=55 // pred_check_branch
        %1993 = sbr.rel (%p1991) target = $region68
      $region67: #{adaptive_channel_attention_forward.3} parent=55 // pred_region
        _
      $region68: #{adaptive_channel_attention_forward.3} parent=55 // pred_fallthru
        _
    $region56: #{adaptive_channel_attention_forward.3} parent=5 // pred_fallthru
      _
    %p1994 = scmp.le.s32.totalorder 2, %s18
    // Predicated region
    $region69: #{adaptive_channel_attention_forward.3} parent=5 // pred_check
      %p1995 = pneg %p1994
    $region70: #{adaptive_channel_attention_forward.3} parent=5 // pred_check_branch
      %1997 = sbr.rel (%p1995) target = $region72
    $region71: #{adaptive_channel_attention_forward.3} parent=5 // pred_region
      %s1998 = ssub.s32 %s18, 2
      // Predicated region
      $region73: #{adaptive_channel_attention_forward.3} parent=71 // pred_check
        %p1999 = pneg %p241
      $region74: #{adaptive_channel_attention_forward.3} parent=71 // pred_check_branch
        %2001 = sbr.rel (%p1999) target = $region76
      $region75: #{adaptive_channel_attention_forward.3} parent=71 // pred_region
        %p2002 = scmp.lt.s32.totalorder %s24, 1
        %s2003 = scalar_select %p2002, %s24, 1
        %s2004 = smul.addr %s2003, 32
        %s2005 = smul.addr %s2004, 8
        %s2006 = scalar_lea.vmem %s9, %s2005
      $region76: #{adaptive_channel_attention_forward.3} parent=71 // pred_fallthru
        _
      // Predicated region
      $region77: #{adaptive_channel_attention_forward.3} parent=71 // pred_check
        %p2007 = pneg %p267
      $region78: #{adaptive_channel_attention_forward.3} parent=71 // pred_check_branch
        %2009 = sbr.rel (%p2007) target = $region80
      $region79: #{adaptive_channel_attention_forward.3} parent=71 // pred_region
        %p2010 = scmp.lt.s32.totalorder %s24, 1
        %s2011 = scalar_select %p2010, %s24, 1
        %s2012 = scalar_lea.vmem %s10, %s2011
      $region80: #{adaptive_channel_attention_forward.3} parent=71 // pred_fallthru
        _
      // Predicated region
      $region81: #{adaptive_channel_attention_forward.3} parent=71 // pred_check
        %p2013 = pneg %p293
      $region82: #{adaptive_channel_attention_forward.3} parent=71 // pred_check_branch
        %2015 = sbr.rel (%p2013) target = $region84
      $region83: #{adaptive_channel_attention_forward.3} parent=71 // pred_region
        %p2016 = scmp.lt.s32.totalorder %s24, 1
        %s2017 = scalar_select %p2016, %s24, 1
        %s2018 = smul.addr %s2017, 32
        %s2019 = smul.addr %s2018, 8
        %s2020 = scalar_lea.vmem %s11, %s2019
      $region84: #{adaptive_channel_attention_forward.3} parent=71 // pred_fallthru
        _
    $region72: #{adaptive_channel_attention_forward.3} parent=5 // pred_fallthru
      _
  $region6: #{adaptive_channel_attention_forward.3} parent=0 // loop_footer
    %s22 = sadd.s32 1, %s18
  $region7: #{adaptive_channel_attention_forward.3} parent=0 // loop_footer_branch
    %17 = sbr.rel target = $region3
  $region8: #{adaptive_channel_attention_forward.3} parent=0 // loop_exit
    _

// kernel: adaptive_channel_attention_forward.4
$region0: #{adaptive_channel_attention_forward.4}
  #allocation0 [shape = 'u32[]', space=smem, size = 0x4, offset = 0x4, fixed_abs, tag = 'smem constant byte address 0x4 - core index']
  #allocation1 [shape = 'u32[144,128]{1,0:T(1,128)}', space=vmem, size = 0x12000, scoped, tag = 'internal scratch']
  %s0 = inlined_call_operand.vmem [shape: f32[2,18,18,64], index: 0, kind: input, shape index: {}]
  %s1 = inlined_call_operand.vmem [shape: f32[3,3,64], index: 1, kind: input, shape index: {}]
  %s2 = inlined_call_operand.vmem [shape: f32[1,1,64], index: 2, kind: input, shape index: {}]
  %s3 = inlined_call_operand.vmem [shape: f32[2,16,16,64], index: 3, kind: output, shape index: {}]
  %s4 = sld [smem:[#allocation0]]
  $region45: #{adaptive_channel_attention_forward.4} parent=0
    _
  %s6 = ssub.s32 1, %s4
  %s7 = scalar_select 0, %s6, %s4
  loop: start=0, step=1, limit=4
  $region2: #{adaptive_channel_attention_forward.4} parent=0 // loop_pre_header
    _
  $region3: #{adaptive_channel_attention_forward.4} parent=0 // loop_header
    %s9 = sphi 0, %s13
    %p10 = scmp.ge.s32.totalorder %s9, 4
    %s19 = sphi 0, %s21
    %s22 = sphi 0, %s19
    %s23 = sphi 0, %s22
    %s39 = sphi 0, %s23
    %s43 = sphi 0, %s43
    %s45 = sphi 0, %s43
    %s46 = sphi 0, %s45
    %s60 = sphi 0, %s46
    %s64 = sphi 0, %s64
    %s66 = sphi 0, %s64
    %s67 = sphi 0, %s66
    %s81 = sphi 0, %s67
    %s87 = sphi 0, %s89
    %s90 = sphi 0, %s87
    %s91 = sphi 0, %s90
    %s107 = sphi 0, %s91
  $region4: #{adaptive_channel_attention_forward.4} parent=0 // loop_header_branch
    %12 = sbr.rel (%p10) target = $region8
  $region5: #{adaptive_channel_attention_forward.4} parent=0 // loop_body
    %s14 = ssub.s32 %s9, 1
    %s15 = ssub.s32 %s9, 2
    %s16 = sadd.s32 %s9, 1
    %s17 = ssub.s32 %s9, %s16
    %p18 = scmp.eq.s32.totalorder %s17, 0
    %s20 = sadd.s32 %s19, 1
    %s21 = scalar_select %p18, %s19, %s20
    %p24 = pneg %p18
    %p25 = scmp.eq.s32.totalorder %s9, 1
    %p26 = por %p24, %p25
    %p27 = scmp.ne.s32.totalorder %s19, %s22
    %p28 = scmp.eq.s32.totalorder %s9, 0
    %p29 = por %p27, %p28
    %p30 = scmp.ne.s32.totalorder %s19, %s22
    %p31 = scmp.eq.s32.totalorder %s14, 1
    %p32 = por %p30, %p31
    %p33 = scmp.ne.s32.totalorder %s22, %s23
    %p34 = scmp.eq.s32.totalorder %s14, 0
    %p35 = por %p33, %p34
    %p36 = scmp.ne.s32.totalorder %s22, %s23
    %p37 = scmp.eq.s32.totalorder %s15, 1
    %p38 = por %p36, %p37
    %p40 = scmp.ne.s32.totalorder %s23, %s39
    %p41 = scmp.eq.s32.totalorder %s15, 0
    %p42 = por %p40, %p41
    %s44 = sadd.s32 %s43, 1
    %p47 = scmp.eq.s32.totalorder %s9, 1
    %p48 = scmp.ne.s32.totalorder %s43, %s45
    %p49 = scmp.eq.s32.totalorder %s9, 0
    %p50 = por %p48, %p49
    %p51 = scmp.ne.s32.totalorder %s43, %s45
    %p52 = scmp.eq.s32.totalorder %s14, 1
    %p53 = por %p51, %p52
    %p54 = scmp.ne.s32.totalorder %s45, %s46
    %p55 = scmp.eq.s32.totalorder %s14, 0
    %p56 = por %p54, %p55
    %p57 = scmp.ne.s32.totalorder %s45, %s46
    %p58 = scmp.eq.s32.totalorder %s15, 1
    %p59 = por %p57, %p58
    %p61 = scmp.ne.s32.totalorder %s46, %s60
    %p62 = scmp.eq.s32.totalorder %s15, 0
    %p63 = por %p61, %p62
    %s65 = sadd.s32 %s64, 1
    %p68 = scmp.eq.s32.totalorder %s9, 1
    %p69 = scmp.ne.s32.totalorder %s64, %s66
    %p70 = scmp.eq.s32.totalorder %s9, 0
    %p71 = por %p69, %p70
    %p72 = scmp.ne.s32.totalorder %s64, %s66
    %p73 = scmp.eq.s32.totalorder %s14, 1
    %p74 = por %p72, %p73
    %p75 = scmp.ne.s32.totalorder %s66, %s67
    %p76 = scmp.eq.s32.totalorder %s14, 0
    %p77 = por %p75, %p76
    %p78 = scmp.ne.s32.totalorder %s66, %s67
    %p79 = scmp.eq.s32.totalorder %s15, 1
    %p80 = por %p78, %p79
    %p82 = scmp.ne.s32.totalorder %s67, %s81
    %p83 = scmp.eq.s32.totalorder %s15, 0
    %p84 = por %p82, %p83
    %s85 = ssub.s32 %s9, %s16
    %p86 = scmp.eq.s32.totalorder %s85, 0
    %s88 = sadd.s32 %s87, 1
    %s89 = scalar_select %p86, %s87, %s88
    %p92 = pneg %p86
    %p93 = scmp.eq.s32.totalorder %s9, 1
    %p94 = por %p92, %p93
    %p95 = scmp.ne.s32.totalorder %s87, %s90
    %p96 = scmp.eq.s32.totalorder %s9, 0
    %p97 = por %p95, %p96
    %p98 = scmp.ne.s32.totalorder %s87, %s90
    %p99 = scmp.eq.s32.totalorder %s14, 1
    %p100 = por %p98, %p99
    %p101 = scmp.ne.s32.totalorder %s90, %s91
    %p102 = scmp.eq.s32.totalorder %s14, 0
    %p103 = por %p101, %p102
    %p104 = scmp.ne.s32.totalorder %s90, %s91
    %p105 = scmp.eq.s32.totalorder %s15, 1
    %p106 = por %p104, %p105
    %p108 = scmp.ne.s32.totalorder %s91, %s107
    %p109 = scmp.eq.s32.totalorder %s15, 0
    %p110 = por %p108, %p109
    %p111 = scmp.le.s32.totalorder 1, %s9
    %p112 = scmp.lt.s32.totalorder %s9, 3
    %p113 = pnand %p111, %p112
    %p114 = pneg %p113
    // Predicated region
    $region9: #{adaptive_channel_attention_forward.4} parent=5 // pred_check
      _
    $region10: #{adaptive_channel_attention_forward.4} parent=5 // pred_check_branch
      %116 = sbr.rel (%p113) target = $region12
    $region11: #{adaptive_channel_attention_forward.4} parent=5 // pred_region
      %s117 = ssub.s32 %s9, 1
      // Predicated region
      $region13: #{adaptive_channel_attention_forward.4} parent=11 // pred_check
        %p118 = pneg %p56
      $region14: #{adaptive_channel_attention_forward.4} parent=11 // pred_check_branch
        %120 = sbr.rel (%p118) target = $region16
      $region15: #{adaptive_channel_attention_forward.4} parent=11 // pred_region
        _
      $region16: #{adaptive_channel_attention_forward.4} parent=11 // pred_fallthru
        _
      // Predicated region
      $region17: #{adaptive_channel_attention_forward.4} parent=11 // pred_check
        %p121 = pneg %p77
      $region18: #{adaptive_channel_attention_forward.4} parent=11 // pred_check_branch
        %123 = sbr.rel (%p121) target = $region20
      $region19: #{adaptive_channel_attention_forward.4} parent=11 // pred_region
        _
      $region20: #{adaptive_channel_attention_forward.4} parent=11 // pred_fallthru
        _
    $region12: #{adaptive_channel_attention_forward.4} parent=5 // pred_fallthru
      _
    %p124 = scmp.lt.s32.totalorder %s9, 2
    // Predicated region
    $region21: #{adaptive_channel_attention_forward.4} parent=5 // pred_check
      %p125 = pneg %p124
    $region22: #{adaptive_channel_attention_forward.4} parent=5 // pred_check_branch
      %127 = sbr.rel (%p125) target = $region24
    $region23: #{adaptive_channel_attention_forward.4} parent=5 // pred_region
      // Predicated region
      $region25: #{adaptive_channel_attention_forward.4} parent=23 // pred_check
        %p128 = pneg %p29
      $region26: #{adaptive_channel_attention_forward.4} parent=23 // pred_check_branch
        %130 = sbr.rel (%p128) target = $region28
      $region27: #{adaptive_channel_attention_forward.4} parent=23 // pred_region
        %p131 = scmp.lt.s32.totalorder %s9, 1
        %s132 = scalar_select %p131, %s9, 1
        %s133 = smul.addr %s132, 54
        %s134 = smul.addr %s133, 8
        %s135 = scalar_lea.vmem %s0, %s134
      $region28: #{adaptive_channel_attention_forward.4} parent=23 // pred_fallthru
        _
    $region24: #{adaptive_channel_attention_forward.4} parent=5 // pred_fallthru
      _
    %p136 = scmp.le.s32.totalorder 1, %s9
    %p137 = scmp.lt.s32.totalorder %s9, 3
    %p138 = pnand %p136, %p137
    %p139 = pneg %p138
    // Predicated region
    $region29: #{adaptive_channel_attention_forward.4} parent=5 // pred_check
      _
    $region30: #{adaptive_channel_attention_forward.4} parent=5 // pred_check_branch
      %141 = sbr.rel (%p138) target = $region32
    $region31: #{adaptive_channel_attention_forward.4} parent=5 // pred_region
      %s142 = ssub.s32 %s9, 1
      %p143 = scmp.lt.s32.totalorder %s14, 1
      %s144 = scalar_select %p143, %s14, 1
      %s145 = smul.addr %s144, 54
      %s146 = smul.addr %s145, 8
      %s147 = scalar_lea.vmem %s0, %s146
      %p148 = pneg %p35
      %p149 = pneg %p32
      %p150 = pneg %p56
      %p151 = pneg %p53
      %p152 = pneg %p77
      %p153 = pneg %p74
      %p154 = pneg %p103
      %p155 = pneg %p100
      %p156 = scmp.lt.s32.totalorder %s14, 1
      %s157 = scalar_select %p156, %s14, 1
      %s158 = smul.addr %s157, 32
      %s159 = smul.addr %s158, 8
      %s160 = scalar_lea.vmem %s3, %s159
      %p161 = scmp.lt.s32.totalorder %s14, 1
      %s162 = scalar_select %p161, %s14, 1
      %s163 = smul.addr %s162, 54
      %s164 = smul.addr %s163, 8
      %s165 = scalar_lea.vmem %s0, %s164
      %p166 = scmp.lt.s32.totalorder %s14, 1
      %s167 = scalar_select %p166, %s14, 1
      %s168 = smul.addr %s167, 32
      %s169 = smul.addr %s168, 8
      %s170 = scalar_lea.vmem %s3, %s169
      %v171 = vld [vmem:[%s1] sm:$0x7]
      %v172 = vld [vmem:[%s1 + $0x4] sm:$0x7]
      %v173 = vld [vmem:[%s1 + $0x8] sm:$0x7]
      %v174 = vld [vmem:[%s165] sm:$0xff]
      %v175 = vld [vmem:[%s165 + $0x8] sm:$0xff]
      %v176 = vld [vmem:[%s165 + $0x10] sm:$0x3]
      %v177 = vld [vmem:[%s165 + $0x18] sm:$0xff]
      %v178 = vld [vmem:[%s165 + $0x20] sm:$0xff]
      %v179 = vld [vmem:[%s165 + $0x28] sm:$0x3]
      %v180 = vld [vmem:[%s165 + $0x30] sm:$0xff]
      %v181 = vld [vmem:[%s165 + $0x38] sm:$0xff]
      %v182 = vld [vmem:[%s165 + $0x40] sm:$0x3]
      %v183 = vld [vmem:[%s165 + $0x48] sm:$0xff]
      %v184 = vld [vmem:[%s165 + $0x50] sm:$0xff]
      %v185 = vld [vmem:[%s165 + $0x58] sm:$0x3]
      %v186 = vld [vmem:[%s165 + $0x60] sm:$0xff]
      %v187 = vld [vmem:[%s165 + $0x68] sm:$0xff]
      %v188 = vld [vmem:[%s165 + $0x70] sm:$0x3]
      %v189 = vld [vmem:[%s165 + $0x78] sm:$0xff]
      %v190 = vld [vmem:[%s165 + $0x80] sm:$0xff]
      %v191 = vld [vmem:[%s165 + $0x88] sm:$0x3]
      %v192 = vld [vmem:[%s165 + $0x90] sm:$0xff]
      %v193 = vld [vmem:[%s165 + $0x98] sm:$0xff]
      %v194 = vld [vmem:[%s165 + $0xa0] sm:$0x3]
      %v195 = vld [vmem:[%s165 + $0xa8] sm:$0xff]
      %v196 = vld [vmem:[%s165 + $0xb0] sm:$0xff]
      %v197 = vld [vmem:[%s165 + $0xb8] sm:$0x3]
      %v198 = vld [vmem:[%s165 + $0xc0] sm:$0xff]
      %v199 = vld [vmem:[%s165 + $0xc8] sm:$0xff]
      %v200 = vld [vmem:[%s165 + $0xd0] sm:$0x3]
      %v201 = vld [vmem:[%s165 + $0xd8] sm:$0xff]
      %v202 = vld [vmem:[%s165 + $0xe0] sm:$0xff]
      %v203 = vld [vmem:[%s165 + $0xe8] sm:$0x3]
      %v204 = vld [vmem:[%s165 + $0xf0] sm:$0xff]
      %v205 = vld [vmem:[%s165 + $0xf8] sm:$0xff]
      %v206 = vld [vmem:[%s165 + $0x100] sm:$0x3]
      %v207 = vld [vmem:[%s165 + $0x108] sm:$0xff]
      %v208 = vld [vmem:[%s165 + $0x110] sm:$0xff]
      %v209 = vld [vmem:[%s165 + $0x118] sm:$0x3]
      %v210 = vld [vmem:[%s165 + $0x120] sm:$0xff]
      %v211 = vld [vmem:[%s165 + $0x128] sm:$0xff]
      %v212 = vld [vmem:[%s165 + $0x130] sm:$0x3]
      %v213 = vld [vmem:[%s165 + $0x138] sm:$0xff]
      %v214 = vld [vmem:[%s165 + $0x140] sm:$0xff]
      %v215 = vld [vmem:[%s165 + $0x148] sm:$0x3]
      %v216 = vld [vmem:[%s165 + $0x150] sm:$0xff]
      %v217 = vld [vmem:[%s165 + $0x158] sm:$0xff]
      %v218 = vld [vmem:[%s165 + $0x160] sm:$0x3]
      %v219 = vld [vmem:[%s165 + $0x168] sm:$0xff]
      %v220 = vld [vmem:[%s165 + $0x170] sm:$0xff]
      %v221 = vld [vmem:[%s165 + $0x178] sm:$0x3]
      %v222 = vlaneseq
      %v223 = vshrl.u32 %v222, 7
      %v224 = vsub.s32 0, %v223
      %v225 = vrot.slane %v171, %v224
      %v226 = vmul.f32 %v174, %v225
      %v227 = vmul.f32 %v175, %v225
      %v228 = vmul.f32 %v177, %v225
      %v229 = vmul.f32 %v178, %v225
      %v230 = vmul.f32 %v180, %v225
      %v231 = vmul.f32 %v181, %v225
      %v232 = vmul.f32 %v183, %v225
      %v233 = vmul.f32 %v184, %v225
      %v234 = vmul.f32 %v186, %v225
      %v235 = vmul.f32 %v187, %v225
      %v236 = vmul.f32 %v189, %v225
      %v237 = vmul.f32 %v190, %v225
      %v238 = vmul.f32 %v192, %v225
      %v239 = vmul.f32 %v193, %v225
      %v240 = vmul.f32 %v195, %v225
      %v241 = vmul.f32 %v196, %v225
      %v242 = vmul.f32 %v198, %v225
      %v243 = vmul.f32 %v199, %v225
      %v244 = vmul.f32 %v201, %v225
      %v245 = vmul.f32 %v202, %v225
      %v246 = vmul.f32 %v204, %v225
      %v247 = vmul.f32 %v205, %v225
      %v248 = vmul.f32 %v207, %v225
      %v249 = vmul.f32 %v208, %v225
      %v250 = vmul.f32 %v210, %v225
      %v251 = vmul.f32 %v211, %v225
      %v252 = vmul.f32 %v213, %v225
      %v253 = vmul.f32 %v214, %v225
      %v254 = vmul.f32 %v216, %v225
      %v255 = vmul.f32 %v217, %v225
      %v256 = vmul.f32 %v219, %v225
      %v257 = vmul.f32 %v220, %v225
      %v258 = vadd.f32 %v226, 0.0
      %v259 = vadd.f32 %v227, 0.0
      %v260 = vadd.f32 %v228, 0.0
      %v261 = vadd.f32 %v229, 0.0
      %v262 = vadd.f32 %v230, 0.0
      %v263 = vadd.f32 %v231, 0.0
      %v264 = vadd.f32 %v232, 0.0
      %v265 = vadd.f32 %v233, 0.0
      %v266 = vadd.f32 %v234, 0.0
      %v267 = vadd.f32 %v235, 0.0
      %v268 = vadd.f32 %v236, 0.0
      %v269 = vadd.f32 %v237, 0.0
      %v270 = vadd.f32 %v238, 0.0
      %v271 = vadd.f32 %v239, 0.0
      %v272 = vadd.f32 %v240, 0.0
      %v273 = vadd.f32 %v241, 0.0
      %v274 = vadd.f32 %v242, 0.0
      %v275 = vadd.f32 %v243, 0.0
      %v276 = vadd.f32 %v244, 0.0
      %v277 = vadd.f32 %v245, 0.0
      %v278 = vadd.f32 %v246, 0.0
      %v279 = vadd.f32 %v247, 0.0
      %v280 = vadd.f32 %v248, 0.0
      %v281 = vadd.f32 %v249, 0.0
      %v282 = vadd.f32 %v250, 0.0
      %v283 = vadd.f32 %v251, 0.0
      %v284 = vadd.f32 %v252, 0.0
      %v285 = vadd.f32 %v253, 0.0
      %v286 = vadd.f32 %v254, 0.0
      %v287 = vadd.f32 %v255, 0.0
      %v288 = vadd.f32 %v256, 0.0
      %v289 = vadd.f32 %v257, 0.0
      %v290 = vlaneseq
      %v291 = vshrl.u32 %v290, 7
      %v292 = vsub.s32 1, %v291
      %v293 = vrot.slane %v171, %v292
      %v294 = vmul.f32 %v174, %v293
      %v295 = vmul.f32 %v175, %v293
      %v296 = vmul.f32 %v176, %v293
      %v297 = vmul.f32 %v177, %v293
      %v298 = vmul.f32 %v178, %v293
      %v299 = vmul.f32 %v179, %v293
      %v300 = vmul.f32 %v180, %v293
      %v301 = vmul.f32 %v181, %v293
      %v302 = vmul.f32 %v182, %v293
      %v303 = vmul.f32 %v183, %v293
      %v304 = vmul.f32 %v184, %v293
      %v305 = vmul.f32 %v185, %v293
      %v306 = vmul.f32 %v186, %v293
      %v307 = vmul.f32 %v187, %v293
      %v308 = vmul.f32 %v188, %v293
      %v309 = vmul.f32 %v189, %v293
      %v310 = vmul.f32 %v190, %v293
      %v311 = vmul.f32 %v191, %v293
      %v312 = vmul.f32 %v192, %v293
      %v313 = vmul.f32 %v193, %v293
      %v314 = vmul.f32 %v194, %v293
      %v315 = vmul.f32 %v195, %v293
      %v316 = vmul.f32 %v196, %v293
      %v317 = vmul.f32 %v197, %v293
      %v318 = vmul.f32 %v198, %v293
      %v319 = vmul.f32 %v199, %v293
      %v320 = vmul.f32 %v200, %v293
      %v321 = vmul.f32 %v201, %v293
      %v322 = vmul.f32 %v202, %v293
      %v323 = vmul.f32 %v203, %v293
      %v324 = vmul.f32 %v204, %v293
      %v325 = vmul.f32 %v205, %v293
      %v326 = vmul.f32 %v206, %v293
      %v327 = vmul.f32 %v207, %v293
      %v328 = vmul.f32 %v208, %v293
      %v329 = vmul.f32 %v209, %v293
      %v330 = vmul.f32 %v210, %v293
      %v331 = vmul.f32 %v211, %v293
      %v332 = vmul.f32 %v212, %v293
      %v333 = vmul.f32 %v213, %v293
      %v334 = vmul.f32 %v214, %v293
      %v335 = vmul.f32 %v215, %v293
      %v336 = vmul.f32 %v216, %v293
      %v337 = vmul.f32 %v217, %v293
      %v338 = vmul.f32 %v218, %v293
      %v339 = vmul.f32 %v219, %v293
      %v340 = vmul.f32 %v220, %v293
      %v341 = vmul.f32 %v221, %v293
      %vm390 = vcmask 1046528
      %v391 = vrot.slane %v294, 1
      %v392 = vrot.slane %v295, 1
      %v393 = vsel %vm390, %v391, %v392
      %v394 = vrot.slane %v296, 1
      %v395 = vsel %vm390, %v392, %v394
      %v396 = vrot.slane %v297, 1
      %v397 = vrot.slane %v298, 1
      %v398 = vsel %vm390, %v396, %v397
      %v399 = vrot.slane %v299, 1
      %v400 = vsel %vm390, %v397, %v399
      %v401 = vrot.slane %v300, 1
      %v402 = vrot.slane %v301, 1
      %v403 = vsel %vm390, %v401, %v402
      %v404 = vrot.slane %v302, 1
      %v405 = vsel %vm390, %v402, %v404
      %v406 = vrot.slane %v303, 1
      %v407 = vrot.slane %v304, 1
      %v408 = vsel %vm390, %v406, %v407
      %v409 = vrot.slane %v305, 1
      %v410 = vsel %vm390, %v407, %v409
      %v411 = vrot.slane %v306, 1
      %v412 = vrot.slane %v307, 1
      %v413 = vsel %vm390, %v411, %v412
      %v414 = vrot.slane %v308, 1
      %v415 = vsel %vm390, %v412, %v414
      %v416 = vrot.slane %v309, 1
      %v417 = vrot.slane %v310, 1
      %v418 = vsel %vm390, %v416, %v417
      %v419 = vrot.slane %v311, 1
      %v420 = vsel %vm390, %v417, %v419
      %v421 = vrot.slane %v312, 1
      %v422 = vrot.slane %v313, 1
      %v423 = vsel %vm390, %v421, %v422
      %v424 = vrot.slane %v314, 1
      %v425 = vsel %vm390, %v422, %v424
      %v426 = vrot.slane %v315, 1
      %v427 = vrot.slane %v316, 1
      %v428 = vsel %vm390, %v426, %v427
      %v429 = vrot.slane %v317, 1
      %v430 = vsel %vm390, %v427, %v429
      %v431 = vrot.slane %v318, 1
      %v432 = vrot.slane %v319, 1
      %v433 = vsel %vm390, %v431, %v432
      %v434 = vrot.slane %v320, 1
      %v435 = vsel %vm390, %v432, %v434
      %v436 = vrot.slane %v321, 1
      %v437 = vrot.slane %v322, 1
      %v438 = vsel %vm390, %v436, %v437
      %v439 = vrot.slane %v323, 1
      %v440 = vsel %vm390, %v437, %v439
      %v441 = vrot.slane %v324, 1
      %v442 = vrot.slane %v325, 1
      %v443 = vsel %vm390, %v441, %v442
      %v444 = vrot.slane %v326, 1
      %v445 = vsel %vm390, %v442, %v444
      %v446 = vrot.slane %v327, 1
      %v447 = vrot.slane %v328, 1
      %v448 = vsel %vm390, %v446, %v447
      %v449 = vrot.slane %v329, 1
      %v450 = vsel %vm390, %v447, %v449
      %v451 = vrot.slane %v330, 1
      %v452 = vrot.slane %v331, 1
      %v453 = vsel %vm390, %v451, %v452
      %v454 = vrot.slane %v332, 1
      %v455 = vsel %vm390, %v452, %v454
      %v456 = vrot.slane %v333, 1
      %v457 = vrot.slane %v334, 1
      %v458 = vsel %vm390, %v456, %v457
      %v459 = vrot.slane %v335, 1
      %v460 = vsel %vm390, %v457, %v459
      %v461 = vrot.slane %v336, 1
      %v462 = vrot.slane %v337, 1
      %v463 = vsel %vm390, %v461, %v462
      %v464 = vrot.slane %v338, 1
      %v465 = vsel %vm390, %v462, %v464
      %v466 = vrot.slane %v339, 1
      %v467 = vrot.slane %v340, 1
      %v468 = vsel %vm390, %v466, %v467
      %v469 = vrot.slane %v341, 1
      %v470 = vsel %vm390, %v467, %v469
      %v503 = vadd.f32 %v258, %v393
      %v504 = vadd.f32 %v259, %v395
      %v505 = vadd.f32 %v260, %v398
      %v506 = vadd.f32 %v261, %v400
      %v507 = vadd.f32 %v262, %v403
      %v508 = vadd.f32 %v263, %v405
      %v509 = vadd.f32 %v264, %v408
      %v510 = vadd.f32 %v265, %v410
      %v511 = vadd.f32 %v266, %v413
      %v512 = vadd.f32 %v267, %v415
      %v513 = vadd.f32 %v268, %v418
      %v514 = vadd.f32 %v269, %v420
      %v515 = vadd.f32 %v270, %v423
      %v516 = vadd.f32 %v271, %v425
      %v517 = vadd.f32 %v272, %v428
      %v518 = vadd.f32 %v273, %v430
      %v519 = vadd.f32 %v274, %v433
      %v520 = vadd.f32 %v275, %v435
      %v521 = vadd.f32 %v276, %v438
      %v522 = vadd.f32 %v277, %v440
      %v523 = vadd.f32 %v278, %v443
      %v524 = vadd.f32 %v279, %v445
      %v525 = vadd.f32 %v280, %v448
      %v526 = vadd.f32 %v281, %v450
      %v527 = vadd.f32 %v282, %v453
      %v528 = vadd.f32 %v283, %v455
      %v529 = vadd.f32 %v284, %v458
      %v530 = vadd.f32 %v285, %v460
      %v531 = vadd.f32 %v286, %v463
      %v532 = vadd.f32 %v287, %v465
      %v533 = vadd.f32 %v288, %v468
      %v534 = vadd.f32 %v289, %v470
      %v535 = vlaneseq
      %v536 = vshrl.u32 %v535, 7
      %v537 = vsub.s32 2, %v536
      %v538 = vrot.slane %v171, %v537
      %v539 = vmul.f32 %v174, %v538
      %v540 = vmul.f32 %v175, %v538
      %v541 = vmul.f32 %v176, %v538
      %v542 = vmul.f32 %v177, %v538
      %v543 = vmul.f32 %v178, %v538
      %v544 = vmul.f32 %v179, %v538
      %v545 = vmul.f32 %v180, %v538
      %v546 = vmul.f32 %v181, %v538
      %v547 = vmul.f32 %v182, %v538
      %v548 = vmul.f32 %v183, %v538
      %v549 = vmul.f32 %v184, %v538
      %v550 = vmul.f32 %v185, %v538
      %v551 = vmul.f32 %v186, %v538
      %v552 = vmul.f32 %v187, %v538
      %v553 = vmul.f32 %v188, %v538
      %v554 = vmul.f32 %v189, %v538
      %v555 = vmul.f32 %v190, %v538
      %v556 = vmul.f32 %v191, %v538
      %v557 = vmul.f32 %v192, %v538
      %v558 = vmul.f32 %v193, %v538
      %v559 = vmul.f32 %v194, %v538
      %v560 = vmul.f32 %v195, %v538
      %v561 = vmul.f32 %v196, %v538
      %v562 = vmul.f32 %v197, %v538
      %v563 = vmul.f32 %v198, %v538
      %v564 = vmul.f32 %v199, %v538
      %v565 = vmul.f32 %v200, %v538
      %v566 = vmul.f32 %v201, %v538
      %v567 = vmul.f32 %v202, %v538
      %v568 = vmul.f32 %v203, %v538
      %v569 = vmul.f32 %v204, %v538
      %v570 = vmul.f32 %v205, %v538
      %v571 = vmul.f32 %v206, %v538
      %v572 = vmul.f32 %v207, %v538
      %v573 = vmul.f32 %v208, %v538
      %v574 = vmul.f32 %v209, %v538
      %v575 = vmul.f32 %v210, %v538
      %v576 = vmul.f32 %v211, %v538
      %v577 = vmul.f32 %v212, %v538
      %v578 = vmul.f32 %v213, %v538
      %v579 = vmul.f32 %v214, %v538
      %v580 = vmul.f32 %v215, %v538
      %v581 = vmul.f32 %v216, %v538
      %v582 = vmul.f32 %v217, %v538
      %v583 = vmul.f32 %v218, %v538
      %v584 = vmul.f32 %v219, %v538
      %v585 = vmul.f32 %v220, %v538
      %v586 = vmul.f32 %v221, %v538
      %vm635 = vcmask 1045504
      %v636 = vrot.slane %v539, 2
      %v637 = vrot.slane %v540, 2
      %v638 = vsel %vm635, %v636, %v637
      %v639 = vrot.slane %v541, 2
      %v640 = vsel %vm635, %v637, %v639
      %v641 = vrot.slane %v542, 2
      %v642 = vrot.slane %v543, 2
      %v643 = vsel %vm635, %v641, %v642
      %v644 = vrot.slane %v544, 2
      %v645 = vsel %vm635, %v642, %v644
      %v646 = vrot.slane %v545, 2
      %v647 = vrot.slane %v546, 2
      %v648 = vsel %vm635, %v646, %v647
      %v649 = vrot.slane %v547, 2
      %v650 = vsel %vm635, %v647, %v649
      %v651 = vrot.slane %v548, 2
      %v652 = vrot.slane %v549, 2
      %v653 = vsel %vm635, %v651, %v652
      %v654 = vrot.slane %v550, 2
      %v655 = vsel %vm635, %v652, %v654
      %v656 = vrot.slane %v551, 2
      %v657 = vrot.slane %v552, 2
      %v658 = vsel %vm635, %v656, %v657
      %v659 = vrot.slane %v553, 2
      %v660 = vsel %vm635, %v657, %v659
      %v661 = vrot.slane %v554, 2
      %v662 = vrot.slane %v555, 2
      %v663 = vsel %vm635, %v661, %v662
      %v664 = vrot.slane %v556, 2
      %v665 = vsel %vm635, %v662, %v664
      %v666 = vrot.slane %v557, 2
      %v667 = vrot.slane %v558, 2
      %v668 = vsel %vm635, %v666, %v667
      %v669 = vrot.slane %v559, 2
      %v670 = vsel %vm635, %v667, %v669
      %v671 = vrot.slane %v560, 2
      %v672 = vrot.slane %v561, 2
      %v673 = vsel %vm635, %v671, %v672
      %v674 = vrot.slane %v562, 2
      %v675 = vsel %vm635, %v672, %v674
      %v676 = vrot.slane %v563, 2
      %v677 = vrot.slane %v564, 2
      %v678 = vsel %vm635, %v676, %v677
      %v679 = vrot.slane %v565, 2
      %v680 = vsel %vm635, %v677, %v679
      %v681 = vrot.slane %v566, 2
      %v682 = vrot.slane %v567, 2
      %v683 = vsel %vm635, %v681, %v682
      %v684 = vrot.slane %v568, 2
      %v685 = vsel %vm635, %v682, %v684
      %v686 = vrot.slane %v569, 2
      %v687 = vrot.slane %v570, 2
      %v688 = vsel %vm635, %v686, %v687
      %v689 = vrot.slane %v571, 2
      %v690 = vsel %vm635, %v687, %v689
      %v691 = vrot.slane %v572, 2
      %v692 = vrot.slane %v573, 2
      %v693 = vsel %vm635, %v691, %v692
      %v694 = vrot.slane %v574, 2
      %v695 = vsel %vm635, %v692, %v694
      %v696 = vrot.slane %v575, 2
      %v697 = vrot.slane %v576, 2
      %v698 = vsel %vm635, %v696, %v697
      %v699 = vrot.slane %v577, 2
      %v700 = vsel %vm635, %v697, %v699
      %v701 = vrot.slane %v578, 2
      %v702 = vrot.slane %v579, 2
      %v703 = vsel %vm635, %v701, %v702
      %v704 = vrot.slane %v580, 2
      %v705 = vsel %vm635, %v702, %v704
      %v706 = vrot.slane %v581, 2
      %v707 = vrot.slane %v582, 2
      %v708 = vsel %vm635, %v706, %v707
      %v709 = vrot.slane %v583, 2
      %v710 = vsel %vm635, %v707, %v709
      %v711 = vrot.slane %v584, 2
      %v712 = vrot.slane %v585, 2
      %v713 = vsel %vm635, %v711, %v712
      %v714 = vrot.slane %v586, 2
      %v715 = vsel %vm635, %v712, %v714
      %v748 = vadd.f32 %v503, %v638
      %v749 = vadd.f32 %v504, %v640
      %v750 = vadd.f32 %v505, %v643
      %v751 = vadd.f32 %v506, %v645
      %v752 = vadd.f32 %v507, %v648
      %v753 = vadd.f32 %v508, %v650
      %v754 = vadd.f32 %v509, %v653
      %v755 = vadd.f32 %v510, %v655
      %v756 = vadd.f32 %v511, %v658
      %v757 = vadd.f32 %v512, %v660
      %v758 = vadd.f32 %v513, %v663
      %v759 = vadd.f32 %v514, %v665
      %v760 = vadd.f32 %v515, %v668
      %v761 = vadd.f32 %v516, %v670
      %v762 = vadd.f32 %v517, %v673
      %v763 = vadd.f32 %v518, %v675
      %v764 = vadd.f32 %v519, %v678
      %v765 = vadd.f32 %v520, %v680
      %v766 = vadd.f32 %v521, %v683
      %v767 = vadd.f32 %v522, %v685
      %v768 = vadd.f32 %v523, %v688
      %v769 = vadd.f32 %v524, %v690
      %v770 = vadd.f32 %v525, %v693
      %v771 = vadd.f32 %v526, %v695
      %v772 = vadd.f32 %v527, %v698
      %v773 = vadd.f32 %v528, %v700
      %v774 = vadd.f32 %v529, %v703
      %v775 = vadd.f32 %v530, %v705
      %v776 = vadd.f32 %v531, %v708
      %v777 = vadd.f32 %v532, %v710
      %v778 = vadd.f32 %v533, %v713
      %v779 = vadd.f32 %v534, %v715
      %s780 = scalar_lea.vmem %s165, 24
      %v781 = vld [vmem:[%s780] sm:$0xff]
      %v782 = vld [vmem:[%s780 + $0x8] sm:$0xff]
      %v783 = vld [vmem:[%s780 + $0x10] sm:$0x3]
      %v784 = vld [vmem:[%s780 + $0x18] sm:$0xff]
      %v785 = vld [vmem:[%s780 + $0x20] sm:$0xff]
      %v786 = vld [vmem:[%s780 + $0x28] sm:$0x3]
      %v787 = vld [vmem:[%s780 + $0x30] sm:$0xff]
      %v788 = vld [vmem:[%s780 + $0x38] sm:$0xff]
      %v789 = vld [vmem:[%s780 + $0x40] sm:$0x3]
      %v790 = vld [vmem:[%s780 + $0x48] sm:$0xff]
      %v791 = vld [vmem:[%s780 + $0x50] sm:$0xff]
      %v792 = vld [vmem:[%s780 + $0x58] sm:$0x3]
      %v793 = vld [vmem:[%s780 + $0x60] sm:$0xff]
      %v794 = vld [vmem:[%s780 + $0x68] sm:$0xff]
      %v795 = vld [vmem:[%s780 + $0x70] sm:$0x3]
      %v796 = vld [vmem:[%s780 + $0x78] sm:$0xff]
      %v797 = vld [vmem:[%s780 + $0x80] sm:$0xff]
      %v798 = vld [vmem:[%s780 + $0x88] sm:$0x3]
      %v799 = vld [vmem:[%s780 + $0x90] sm:$0xff]
      %v800 = vld [vmem:[%s780 + $0x98] sm:$0xff]
      %v801 = vld [vmem:[%s780 + $0xa0] sm:$0x3]
      %v802 = vld [vmem:[%s780 + $0xa8] sm:$0xff]
      %v803 = vld [vmem:[%s780 + $0xb0] sm:$0xff]
      %v804 = vld [vmem:[%s780 + $0xb8] sm:$0x3]
      %v805 = vld [vmem:[%s780 + $0xc0] sm:$0xff]
      %v806 = vld [vmem:[%s780 + $0xc8] sm:$0xff]
      %v807 = vld [vmem:[%s780 + $0xd0] sm:$0x3]
      %v808 = vld [vmem:[%s780 + $0xd8] sm:$0xff]
      %v809 = vld [vmem:[%s780 + $0xe0] sm:$0xff]
      %v810 = vld [vmem:[%s780 + $0xe8] sm:$0x3]
      %v811 = vld [vmem:[%s780 + $0xf0] sm:$0xff]
      %v812 = vld [vmem:[%s780 + $0xf8] sm:$0xff]
      %v813 = vld [vmem:[%s780 + $0x100] sm:$0x3]
      %v814 = vld [vmem:[%s780 + $0x108] sm:$0xff]
      %v815 = vld [vmem:[%s780 + $0x110] sm:$0xff]
      %v816 = vld [vmem:[%s780 + $0x118] sm:$0x3]
      %v817 = vld [vmem:[%s780 + $0x120] sm:$0xff]
      %v818 = vld [vmem:[%s780 + $0x128] sm:$0xff]
      %v819 = vld [vmem:[%s780 + $0x130] sm:$0x3]
      %v820 = vld [vmem:[%s780 + $0x138] sm:$0xff]
      %v821 = vld [vmem:[%s780 + $0x140] sm:$0xff]
      %v822 = vld [vmem:[%s780 + $0x148] sm:$0x3]
      %v823 = vld [vmem:[%s780 + $0x150] sm:$0xff]
      %v824 = vld [vmem:[%s780 + $0x158] sm:$0xff]
      %v825 = vld [vmem:[%s780 + $0x160] sm:$0x3]
      %v826 = vld [vmem:[%s780 + $0x168] sm:$0xff]
      %v827 = vld [vmem:[%s780 + $0x170] sm:$0xff]
      %v828 = vld [vmem:[%s780 + $0x178] sm:$0x3]
      %v829 = vlaneseq
      %v830 = vshrl.u32 %v829, 7
      %v831 = vsub.s32 0, %v830
      %v832 = vrot.slane %v172, %v831
      %v833 = vmul.f32 %v781, %v832
      %v834 = vmul.f32 %v782, %v832
      %v835 = vmul.f32 %v784, %v832
      %v836 = vmul.f32 %v785, %v832
      %v837 = vmul.f32 %v787, %v832
      %v838 = vmul.f32 %v788, %v832
      %v839 = vmul.f32 %v790, %v832
      %v840 = vmul.f32 %v791, %v832
      %v841 = vmul.f32 %v793, %v832
      %v842 = vmul.f32 %v794, %v832
      %v843 = vmul.f32 %v796, %v832
      %v844 = vmul.f32 %v797, %v832
      %v845 = vmul.f32 %v799, %v832
      %v846 = vmul.f32 %v800, %v832
      %v847 = vmul.f32 %v802, %v832
      %v848 = vmul.f32 %v803, %v832
      %v849 = vmul.f32 %v805, %v832
      %v850 = vmul.f32 %v806, %v832
      %v851 = vmul.f32 %v808, %v832
      %v852 = vmul.f32 %v809, %v832
      %v853 = vmul.f32 %v811, %v832
      %v854 = vmul.f32 %v812, %v832
      %v855 = vmul.f32 %v814, %v832
      %v856 = vmul.f32 %v815, %v832
      %v857 = vmul.f32 %v817, %v832
      %v858 = vmul.f32 %v818, %v832
      %v859 = vmul.f32 %v820, %v832
      %v860 = vmul.f32 %v821, %v832
      %v861 = vmul.f32 %v823, %v832
      %v862 = vmul.f32 %v824, %v832
      %v863 = vmul.f32 %v826, %v832
      %v864 = vmul.f32 %v827, %v832
      %v865 = vadd.f32 %v748, %v833
      %v866 = vadd.f32 %v749, %v834
      %v867 = vadd.f32 %v750, %v835
      %v868 = vadd.f32 %v751, %v836
      %v869 = vadd.f32 %v752, %v837
      %v870 = vadd.f32 %v753, %v838
      %v871 = vadd.f32 %v754, %v839
      %v872 = vadd.f32 %v755, %v840
      %v873 = vadd.f32 %v756, %v841
      %v874 = vadd.f32 %v757, %v842
      %v875 = vadd.f32 %v758, %v843
      %v876 = vadd.f32 %v759, %v844
      %v877 = vadd.f32 %v760, %v845
      %v878 = vadd.f32 %v761, %v846
      %v879 = vadd.f32 %v762, %v847
      %v880 = vadd.f32 %v763, %v848
      %v881 = vadd.f32 %v764, %v849
      %v882 = vadd.f32 %v765, %v850
      %v883 = vadd.f32 %v766, %v851
      %v884 = vadd.f32 %v767, %v852
      %v885 = vadd.f32 %v768, %v853
      %v886 = vadd.f32 %v769, %v854
      %v887 = vadd.f32 %v770, %v855
      %v888 = vadd.f32 %v771, %v856
      %v889 = vadd.f32 %v772, %v857
      %v890 = vadd.f32 %v773, %v858
      %v891 = vadd.f32 %v774, %v859
      %v892 = vadd.f32 %v775, %v860
      %v893 = vadd.f32 %v776, %v861
      %v894 = vadd.f32 %v777, %v862
      %v895 = vadd.f32 %v778, %v863
      %v896 = vadd.f32 %v779, %v864
      %v897 = vlaneseq
      %v898 = vshrl.u32 %v897, 7
      %v899 = vsub.s32 1, %v898
      %v900 = vrot.slane %v172, %v899
      %v901 = vmul.f32 %v781, %v900
      %v902 = vmul.f32 %v782, %v900
      %v903 = vmul.f32 %v783, %v900
      %v904 = vmul.f32 %v784, %v900
      %v905 = vmul.f32 %v785, %v900
      %v906 = vmul.f32 %v786, %v900
      %v907 = vmul.f32 %v787, %v900
      %v908 = vmul.f32 %v788, %v900
      %v909 = vmul.f32 %v789, %v900
      %v910 = vmul.f32 %v790, %v900
      %v911 = vmul.f32 %v791, %v900
      %v912 = vmul.f32 %v792, %v900
      %v913 = vmul.f32 %v793, %v900
      %v914 = vmul.f32 %v794, %v900
      %v915 = vmul.f32 %v795, %v900
      %v916 = vmul.f32 %v796, %v900
      %v917 = vmul.f32 %v797, %v900
      %v918 = vmul.f32 %v798, %v900
      %v919 = vmul.f32 %v799, %v900
      %v920 = vmul.f32 %v800, %v900
      %v921 = vmul.f32 %v801, %v900
      %v922 = vmul.f32 %v802, %v900
      %v923 = vmul.f32 %v803, %v900
      %v924 = vmul.f32 %v804, %v900
      %v925 = vmul.f32 %v805, %v900
      %v926 = vmul.f32 %v806, %v900
      %v927 = vmul.f32 %v807, %v900
      %v928 = vmul.f32 %v808, %v900
      %v929 = vmul.f32 %v809, %v900
      %v930 = vmul.f32 %v810, %v900
      %v931 = vmul.f32 %v811, %v900
      %v932 = vmul.f32 %v812, %v900
      %v933 = vmul.f32 %v813, %v900
      %v934 = vmul.f32 %v814, %v900
      %v935 = vmul.f32 %v815, %v900
      %v936 = vmul.f32 %v816, %v900
      %v937 = vmul.f32 %v817, %v900
      %v938 = vmul.f32 %v818, %v900
      %v939 = vmul.f32 %v819, %v900
      %v940 = vmul.f32 %v820, %v900
      %v941 = vmul.f32 %v821, %v900
      %v942 = vmul.f32 %v822, %v900
      %v943 = vmul.f32 %v823, %v900
      %v944 = vmul.f32 %v824, %v900
      %v945 = vmul.f32 %v825, %v900
      %v946 = vmul.f32 %v826, %v900
      %v947 = vmul.f32 %v827, %v900
      %v948 = vmul.f32 %v828, %v900
      %v997 = vrot.slane %v901, 1
      %v998 = vrot.slane %v902, 1
      %v999 = vsel %vm390, %v997, %v998
      %v1000 = vrot.slane %v903, 1
      %v1001 = vsel %vm390, %v998, %v1000
      %v1002 = vrot.slane %v904, 1
      %v1003 = vrot.slane %v905, 1
      %v1004 = vsel %vm390, %v1002, %v1003
      %v1005 = vrot.slane %v906, 1
      %v1006 = vsel %vm390, %v1003, %v1005
      %v1007 = vrot.slane %v907, 1
      %v1008 = vrot.slane %v908, 1
      %v1009 = vsel %vm390, %v1007, %v1008
      %v1010 = vrot.slane %v909, 1
      %v1011 = vsel %vm390, %v1008, %v1010
      %v1012 = vrot.slane %v910, 1
      %v1013 = vrot.slane %v911, 1
      %v1014 = vsel %vm390, %v1012, %v1013
      %v1015 = vrot.slane %v912, 1
      %v1016 = vsel %vm390, %v1013, %v1015
      %v1017 = vrot.slane %v913, 1
      %v1018 = vrot.slane %v914, 1
      %v1019 = vsel %vm390, %v1017, %v1018
      %v1020 = vrot.slane %v915, 1
      %v1021 = vsel %vm390, %v1018, %v1020
      %v1022 = vrot.slane %v916, 1
      %v1023 = vrot.slane %v917, 1
      %v1024 = vsel %vm390, %v1022, %v1023
      %v1025 = vrot.slane %v918, 1
      %v1026 = vsel %vm390, %v1023, %v1025
      %v1027 = vrot.slane %v919, 1
      %v1028 = vrot.slane %v920, 1
      %v1029 = vsel %vm390, %v1027, %v1028
      %v1030 = vrot.slane %v921, 1
      %v1031 = vsel %vm390, %v1028, %v1030
      %v1032 = vrot.slane %v922, 1
      %v1033 = vrot.slane %v923, 1
      %v1034 = vsel %vm390, %v1032, %v1033
      %v1035 = vrot.slane %v924, 1
      %v1036 = vsel %vm390, %v1033, %v1035
      %v1037 = vrot.slane %v925, 1
      %v1038 = vrot.slane %v926, 1
      %v1039 = vsel %vm390, %v1037, %v1038
      %v1040 = vrot.slane %v927, 1
      %v1041 = vsel %vm390, %v1038, %v1040
      %v1042 = vrot.slane %v928, 1
      %v1043 = vrot.slane %v929, 1
      %v1044 = vsel %vm390, %v1042, %v1043
      %v1045 = vrot.slane %v930, 1
      %v1046 = vsel %vm390, %v1043, %v1045
      %v1047 = vrot.slane %v931, 1
      %v1048 = vrot.slane %v932, 1
      %v1049 = vsel %vm390, %v1047, %v1048
      %v1050 = vrot.slane %v933, 1
      %v1051 = vsel %vm390, %v1048, %v1050
      %v1052 = vrot.slane %v934, 1
      %v1053 = vrot.slane %v935, 1
      %v1054 = vsel %vm390, %v1052, %v1053
      %v1055 = vrot.slane %v936, 1
      %v1056 = vsel %vm390, %v1053, %v1055
      %v1057 = vrot.slane %v937, 1
      %v1058 = vrot.slane %v938, 1
      %v1059 = vsel %vm390, %v1057, %v1058
      %v1060 = vrot.slane %v939, 1
      %v1061 = vsel %vm390, %v1058, %v1060
      %v1062 = vrot.slane %v940, 1
      %v1063 = vrot.slane %v941, 1
      %v1064 = vsel %vm390, %v1062, %v1063
      %v1065 = vrot.slane %v942, 1
      %v1066 = vsel %vm390, %v1063, %v1065
      %v1067 = vrot.slane %v943, 1
      %v1068 = vrot.slane %v944, 1
      %v1069 = vsel %vm390, %v1067, %v1068
      %v1070 = vrot.slane %v945, 1
      %v1071 = vsel %vm390, %v1068, %v1070
      %v1072 = vrot.slane %v946, 1
      %v1073 = vrot.slane %v947, 1
      %v1074 = vsel %vm390, %v1072, %v1073
      %v1075 = vrot.slane %v948, 1
      %v1076 = vsel %vm390, %v1073, %v1075
      %v1109 = vadd.f32 %v865, %v999
      %v1110 = vadd.f32 %v866, %v1001
      %v1111 = vadd.f32 %v867, %v1004
      %v1112 = vadd.f32 %v868, %v1006
      %v1113 = vadd.f32 %v869, %v1009
      %v1114 = vadd.f32 %v870, %v1011
      %v1115 = vadd.f32 %v871, %v1014
      %v1116 = vadd.f32 %v872, %v1016
      %v1117 = vadd.f32 %v873, %v1019
      %v1118 = vadd.f32 %v874, %v1021
      %v1119 = vadd.f32 %v875, %v1024
      %v1120 = vadd.f32 %v876, %v1026
      %v1121 = vadd.f32 %v877, %v1029
      %v1122 = vadd.f32 %v878, %v1031
      %v1123 = vadd.f32 %v879, %v1034
      %v1124 = vadd.f32 %v880, %v1036
      %v1125 = vadd.f32 %v881, %v1039
      %v1126 = vadd.f32 %v882, %v1041
      %v1127 = vadd.f32 %v883, %v1044
      %v1128 = vadd.f32 %v884, %v1046
      %v1129 = vadd.f32 %v885, %v1049
      %v1130 = vadd.f32 %v886, %v1051
      %v1131 = vadd.f32 %v887, %v1054
      %v1132 = vadd.f32 %v888, %v1056
      %v1133 = vadd.f32 %v889, %v1059
      %v1134 = vadd.f32 %v890, %v1061
      %v1135 = vadd.f32 %v891, %v1064
      %v1136 = vadd.f32 %v892, %v1066
      %v1137 = vadd.f32 %v893, %v1069
      %v1138 = vadd.f32 %v894, %v1071
      %v1139 = vadd.f32 %v895, %v1074
      %v1140 = vadd.f32 %v896, %v1076
      %v1141 = vlaneseq
      %v1142 = vshrl.u32 %v1141, 7
      %v1143 = vsub.s32 2, %v1142
      %v1144 = vrot.slane %v172, %v1143
      %v1145 = vmul.f32 %v781, %v1144
      %v1146 = vmul.f32 %v782, %v1144
      %v1147 = vmul.f32 %v783, %v1144
      %v1148 = vmul.f32 %v784, %v1144
      %v1149 = vmul.f32 %v785, %v1144
      %v1150 = vmul.f32 %v786, %v1144
      %v1151 = vmul.f32 %v787, %v1144
      %v1152 = vmul.f32 %v788, %v1144
      %v1153 = vmul.f32 %v789, %v1144
      %v1154 = vmul.f32 %v790, %v1144
      %v1155 = vmul.f32 %v791, %v1144
      %v1156 = vmul.f32 %v792, %v1144
      %v1157 = vmul.f32 %v793, %v1144
      %v1158 = vmul.f32 %v794, %v1144
      %v1159 = vmul.f32 %v795, %v1144
      %v1160 = vmul.f32 %v796, %v1144
      %v1161 = vmul.f32 %v797, %v1144
      %v1162 = vmul.f32 %v798, %v1144
      %v1163 = vmul.f32 %v799, %v1144
      %v1164 = vmul.f32 %v800, %v1144
      %v1165 = vmul.f32 %v801, %v1144
      %v1166 = vmul.f32 %v802, %v1144
      %v1167 = vmul.f32 %v803, %v1144
      %v1168 = vmul.f32 %v804, %v1144
      %v1169 = vmul.f32 %v805, %v1144
      %v1170 = vmul.f32 %v806, %v1144
      %v1171 = vmul.f32 %v807, %v1144
      %v1172 = vmul.f32 %v808, %v1144
      %v1173 = vmul.f32 %v809, %v1144
      %v1174 = vmul.f32 %v810, %v1144
      %v1175 = vmul.f32 %v811, %v1144
      %v1176 = vmul.f32 %v812, %v1144
      %v1177 = vmul.f32 %v813, %v1144
      %v1178 = vmul.f32 %v814, %v1144
      %v1179 = vmul.f32 %v815, %v1144
      %v1180 = vmul.f32 %v816, %v1144
      %v1181 = vmul.f32 %v817, %v1144
      %v1182 = vmul.f32 %v818, %v1144
      %v1183 = vmul.f32 %v819, %v1144
      %v1184 = vmul.f32 %v820, %v1144
      %v1185 = vmul.f32 %v821, %v1144
      %v1186 = vmul.f32 %v822, %v1144
      %v1187 = vmul.f32 %v823, %v1144
      %v1188 = vmul.f32 %v824, %v1144
      %v1189 = vmul.f32 %v825, %v1144
      %v1190 = vmul.f32 %v826, %v1144
      %v1191 = vmul.f32 %v827, %v1144
      %v1192 = vmul.f32 %v828, %v1144
      %v1241 = vrot.slane %v1145, 2
      %v1242 = vrot.slane %v1146, 2
      %v1243 = vsel %vm635, %v1241, %v1242
      %v1244 = vrot.slane %v1147, 2
      %v1245 = vsel %vm635, %v1242, %v1244
      %v1246 = vrot.slane %v1148, 2
      %v1247 = vrot.slane %v1149, 2
      %v1248 = vsel %vm635, %v1246, %v1247
      %v1249 = vrot.slane %v1150, 2
      %v1250 = vsel %vm635, %v1247, %v1249
      %v1251 = vrot.slane %v1151, 2
      %v1252 = vrot.slane %v1152, 2
      %v1253 = vsel %vm635, %v1251, %v1252
      %v1254 = vrot.slane %v1153, 2
      %v1255 = vsel %vm635, %v1252, %v1254
      %v1256 = vrot.slane %v1154, 2
      %v1257 = vrot.slane %v1155, 2
      %v1258 = vsel %vm635, %v1256, %v1257
      %v1259 = vrot.slane %v1156, 2
      %v1260 = vsel %vm635, %v1257, %v1259
      %v1261 = vrot.slane %v1157, 2
      %v1262 = vrot.slane %v1158, 2
      %v1263 = vsel %vm635, %v1261, %v1262
      %v1264 = vrot.slane %v1159, 2
      %v1265 = vsel %vm635, %v1262, %v1264
      %v1266 = vrot.slane %v1160, 2
      %v1267 = vrot.slane %v1161, 2
      %v1268 = vsel %vm635, %v1266, %v1267
      %v1269 = vrot.slane %v1162, 2
      %v1270 = vsel %vm635, %v1267, %v1269
      %v1271 = vrot.slane %v1163, 2
      %v1272 = vrot.slane %v1164, 2
      %v1273 = vsel %vm635, %v1271, %v1272
      %v1274 = vrot.slane %v1165, 2
      %v1275 = vsel %vm635, %v1272, %v1274
      %v1276 = vrot.slane %v1166, 2
      %v1277 = vrot.slane %v1167, 2
      %v1278 = vsel %vm635, %v1276, %v1277
      %v1279 = vrot.slane %v1168, 2
      %v1280 = vsel %vm635, %v1277, %v1279
      %v1281 = vrot.slane %v1169, 2
      %v1282 = vrot.slane %v1170, 2
      %v1283 = vsel %vm635, %v1281, %v1282
      %v1284 = vrot.slane %v1171, 2
      %v1285 = vsel %vm635, %v1282, %v1284
      %v1286 = vrot.slane %v1172, 2
      %v1287 = vrot.slane %v1173, 2
      %v1288 = vsel %vm635, %v1286, %v1287
      %v1289 = vrot.slane %v1174, 2
      %v1290 = vsel %vm635, %v1287, %v1289
      %v1291 = vrot.slane %v1175, 2
      %v1292 = vrot.slane %v1176, 2
      %v1293 = vsel %vm635, %v1291, %v1292
      %v1294 = vrot.slane %v1177, 2
      %v1295 = vsel %vm635, %v1292, %v1294
      %v1296 = vrot.slane %v1178, 2
      %v1297 = vrot.slane %v1179, 2
      %v1298 = vsel %vm635, %v1296, %v1297
      %v1299 = vrot.slane %v1180, 2
      %v1300 = vsel %vm635, %v1297, %v1299
      %v1301 = vrot.slane %v1181, 2
      %v1302 = vrot.slane %v1182, 2
      %v1303 = vsel %vm635, %v1301, %v1302
      %v1304 = vrot.slane %v1183, 2
      %v1305 = vsel %vm635, %v1302, %v1304
      %v1306 = vrot.slane %v1184, 2
      %v1307 = vrot.slane %v1185, 2
      %v1308 = vsel %vm635, %v1306, %v1307
      %v1309 = vrot.slane %v1186, 2
      %v1310 = vsel %vm635, %v1307, %v1309
      %v1311 = vrot.slane %v1187, 2
      %v1312 = vrot.slane %v1188, 2
      %v1313 = vsel %vm635, %v1311, %v1312
      %v1314 = vrot.slane %v1189, 2
      %v1315 = vsel %vm635, %v1312, %v1314
      %v1316 = vrot.slane %v1190, 2
      %v1317 = vrot.slane %v1191, 2
      %v1318 = vsel %vm635, %v1316, %v1317
      %v1319 = vrot.slane %v1192, 2
      %v1320 = vsel %vm635, %v1317, %v1319
      %v1353 = vadd.f32 %v1109, %v1243
      %v1354 = vadd.f32 %v1110, %v1245
      %v1355 = vadd.f32 %v1111, %v1248
      %v1356 = vadd.f32 %v1112, %v1250
      %v1357 = vadd.f32 %v1113, %v1253
      %v1358 = vadd.f32 %v1114, %v1255
      %v1359 = vadd.f32 %v1115, %v1258
      %v1360 = vadd.f32 %v1116, %v1260
      %v1361 = vadd.f32 %v1117, %v1263
      %v1362 = vadd.f32 %v1118, %v1265
      %v1363 = vadd.f32 %v1119, %v1268
      %v1364 = vadd.f32 %v1120, %v1270
      %v1365 = vadd.f32 %v1121, %v1273
      %v1366 = vadd.f32 %v1122, %v1275
      %v1367 = vadd.f32 %v1123, %v1278
      %v1368 = vadd.f32 %v1124, %v1280
      %v1369 = vadd.f32 %v1125, %v1283
      %v1370 = vadd.f32 %v1126, %v1285
      %v1371 = vadd.f32 %v1127, %v1288
      %v1372 = vadd.f32 %v1128, %v1290
      %v1373 = vadd.f32 %v1129, %v1293
      %v1374 = vadd.f32 %v1130, %v1295
      %v1375 = vadd.f32 %v1131, %v1298
      %v1376 = vadd.f32 %v1132, %v1300
      %v1377 = vadd.f32 %v1133, %v1303
      %v1378 = vadd.f32 %v1134, %v1305
      %v1379 = vadd.f32 %v1135, %v1308
      %v1380 = vadd.f32 %v1136, %v1310
      %v1381 = vadd.f32 %v1137, %v1313
      %v1382 = vadd.f32 %v1138, %v1315
      %v1383 = vadd.f32 %v1139, %v1318
      %v1384 = vadd.f32 %v1140, %v1320
      %s1385 = scalar_lea.vmem %s165, 48
      %v1386 = vld [vmem:[%s1385] sm:$0xff]
      %v1387 = vld [vmem:[%s1385 + $0x8] sm:$0xff]
      %v1388 = vld [vmem:[%s1385 + $0x10] sm:$0x3]
      %v1389 = vld [vmem:[%s1385 + $0x18] sm:$0xff]
      %v1390 = vld [vmem:[%s1385 + $0x20] sm:$0xff]
      %v1391 = vld [vmem:[%s1385 + $0x28] sm:$0x3]
      %v1392 = vld [vmem:[%s1385 + $0x30] sm:$0xff]
      %v1393 = vld [vmem:[%s1385 + $0x38] sm:$0xff]
      %v1394 = vld [vmem:[%s1385 + $0x40] sm:$0x3]
      %v1395 = vld [vmem:[%s1385 + $0x48] sm:$0xff]
      %v1396 = vld [vmem:[%s1385 + $0x50] sm:$0xff]
      %v1397 = vld [vmem:[%s1385 + $0x58] sm:$0x3]
      %v1398 = vld [vmem:[%s1385 + $0x60] sm:$0xff]
      %v1399 = vld [vmem:[%s1385 + $0x68] sm:$0xff]
      %v1400 = vld [vmem:[%s1385 + $0x70] sm:$0x3]
      %v1401 = vld [vmem:[%s1385 + $0x78] sm:$0xff]
      %v1402 = vld [vmem:[%s1385 + $0x80] sm:$0xff]
      %v1403 = vld [vmem:[%s1385 + $0x88] sm:$0x3]
      %v1404 = vld [vmem:[%s1385 + $0x90] sm:$0xff]
      %v1405 = vld [vmem:[%s1385 + $0x98] sm:$0xff]
      %v1406 = vld [vmem:[%s1385 + $0xa0] sm:$0x3]
      %v1407 = vld [vmem:[%s1385 + $0xa8] sm:$0xff]
      %v1408 = vld [vmem:[%s1385 + $0xb0] sm:$0xff]
      %v1409 = vld [vmem:[%s1385 + $0xb8] sm:$0x3]
      %v1410 = vld [vmem:[%s1385 + $0xc0] sm:$0xff]
      %v1411 = vld [vmem:[%s1385 + $0xc8] sm:$0xff]
      %v1412 = vld [vmem:[%s1385 + $0xd0] sm:$0x3]
      %v1413 = vld [vmem:[%s1385 + $0xd8] sm:$0xff]
      %v1414 = vld [vmem:[%s1385 + $0xe0] sm:$0xff]
      %v1415 = vld [vmem:[%s1385 + $0xe8] sm:$0x3]
      %v1416 = vld [vmem:[%s1385 + $0xf0] sm:$0xff]
      %v1417 = vld [vmem:[%s1385 + $0xf8] sm:$0xff]
      %v1418 = vld [vmem:[%s1385 + $0x100] sm:$0x3]
      %v1419 = vld [vmem:[%s1385 + $0x108] sm:$0xff]
      %v1420 = vld [vmem:[%s1385 + $0x110] sm:$0xff]
      %v1421 = vld [vmem:[%s1385 + $0x118] sm:$0x3]
      %v1422 = vld [vmem:[%s1385 + $0x120] sm:$0xff]
      %v1423 = vld [vmem:[%s1385 + $0x128] sm:$0xff]
      %v1424 = vld [vmem:[%s1385 + $0x130] sm:$0x3]
      %v1425 = vld [vmem:[%s1385 + $0x138] sm:$0xff]
      %v1426 = vld [vmem:[%s1385 + $0x140] sm:$0xff]
      %v1427 = vld [vmem:[%s1385 + $0x148] sm:$0x3]
      %v1428 = vld [vmem:[%s1385 + $0x150] sm:$0xff]
      %v1429 = vld [vmem:[%s1385 + $0x158] sm:$0xff]
      %v1430 = vld [vmem:[%s1385 + $0x160] sm:$0x3]
      %v1431 = vld [vmem:[%s1385 + $0x168] sm:$0xff]
      %v1432 = vld [vmem:[%s1385 + $0x170] sm:$0xff]
      %v1433 = vld [vmem:[%s1385 + $0x178] sm:$0x3]
      %v1434 = vlaneseq
      %v1435 = vshrl.u32 %v1434, 7
      %v1436 = vsub.s32 0, %v1435
      %v1437 = vrot.slane %v173, %v1436
      %v1438 = vmul.f32 %v1386, %v1437
      %v1439 = vmul.f32 %v1387, %v1437
      %v1440 = vmul.f32 %v1389, %v1437
      %v1441 = vmul.f32 %v1390, %v1437
      %v1442 = vmul.f32 %v1392, %v1437
      %v1443 = vmul.f32 %v1393, %v1437
      %v1444 = vmul.f32 %v1395, %v1437
      %v1445 = vmul.f32 %v1396, %v1437
      %v1446 = vmul.f32 %v1398, %v1437
      %v1447 = vmul.f32 %v1399, %v1437
      %v1448 = vmul.f32 %v1401, %v1437
      %v1449 = vmul.f32 %v1402, %v1437
      %v1450 = vmul.f32 %v1404, %v1437
      %v1451 = vmul.f32 %v1405, %v1437
      %v1452 = vmul.f32 %v1407, %v1437
      %v1453 = vmul.f32 %v1408, %v1437
      %v1454 = vmul.f32 %v1410, %v1437
      %v1455 = vmul.f32 %v1411, %v1437
      %v1456 = vmul.f32 %v1413, %v1437
      %v1457 = vmul.f32 %v1414, %v1437
      %v1458 = vmul.f32 %v1416, %v1437
      %v1459 = vmul.f32 %v1417, %v1437
      %v1460 = vmul.f32 %v1419, %v1437
      %v1461 = vmul.f32 %v1420, %v1437
      %v1462 = vmul.f32 %v1422, %v1437
      %v1463 = vmul.f32 %v1423, %v1437
      %v1464 = vmul.f32 %v1425, %v1437
      %v1465 = vmul.f32 %v1426, %v1437
      %v1466 = vmul.f32 %v1428, %v1437
      %v1467 = vmul.f32 %v1429, %v1437
      %v1468 = vmul.f32 %v1431, %v1437
      %v1469 = vmul.f32 %v1432, %v1437
      %v1470 = vadd.f32 %v1353, %v1438
      %v1471 = vadd.f32 %v1354, %v1439
      %v1472 = vadd.f32 %v1355, %v1440
      %v1473 = vadd.f32 %v1356, %v1441
      %v1474 = vadd.f32 %v1357, %v1442
      %v1475 = vadd.f32 %v1358, %v1443
      %v1476 = vadd.f32 %v1359, %v1444
      %v1477 = vadd.f32 %v1360, %v1445
      %v1478 = vadd.f32 %v1361, %v1446
      %v1479 = vadd.f32 %v1362, %v1447
      %v1480 = vadd.f32 %v1363, %v1448
      %v1481 = vadd.f32 %v1364, %v1449
      %v1482 = vadd.f32 %v1365, %v1450
      %v1483 = vadd.f32 %v1366, %v1451
      %v1484 = vadd.f32 %v1367, %v1452
      %v1485 = vadd.f32 %v1368, %v1453
      %v1486 = vadd.f32 %v1369, %v1454
      %v1487 = vadd.f32 %v1370, %v1455
      %v1488 = vadd.f32 %v1371, %v1456
      %v1489 = vadd.f32 %v1372, %v1457
      %v1490 = vadd.f32 %v1373, %v1458
      %v1491 = vadd.f32 %v1374, %v1459
      %v1492 = vadd.f32 %v1375, %v1460
      %v1493 = vadd.f32 %v1376, %v1461
      %v1494 = vadd.f32 %v1377, %v1462
      %v1495 = vadd.f32 %v1378, %v1463
      %v1496 = vadd.f32 %v1379, %v1464
      %v1497 = vadd.f32 %v1380, %v1465
      %v1498 = vadd.f32 %v1381, %v1466
      %v1499 = vadd.f32 %v1382, %v1467
      %v1500 = vadd.f32 %v1383, %v1468
      %v1501 = vadd.f32 %v1384, %v1469
      %v1502 = vlaneseq
      %v1503 = vshrl.u32 %v1502, 7
      %v1504 = vsub.s32 1, %v1503
      %v1505 = vrot.slane %v173, %v1504
      %v1506 = vmul.f32 %v1386, %v1505
      %v1507 = vmul.f32 %v1387, %v1505
      %v1508 = vmul.f32 %v1388, %v1505
      %v1509 = vmul.f32 %v1389, %v1505
      %v1510 = vmul.f32 %v1390, %v1505
      %v1511 = vmul.f32 %v1391, %v1505
      %v1512 = vmul.f32 %v1392, %v1505
      %v1513 = vmul.f32 %v1393, %v1505
      %v1514 = vmul.f32 %v1394, %v1505
      %v1515 = vmul.f32 %v1395, %v1505
      %v1516 = vmul.f32 %v1396, %v1505
      %v1517 = vmul.f32 %v1397, %v1505
      %v1518 = vmul.f32 %v1398, %v1505
      %v1519 = vmul.f32 %v1399, %v1505
      %v1520 = vmul.f32 %v1400, %v1505
      %v1521 = vmul.f32 %v1401, %v1505
      %v1522 = vmul.f32 %v1402, %v1505
      %v1523 = vmul.f32 %v1403, %v1505
      %v1524 = vmul.f32 %v1404, %v1505
      %v1525 = vmul.f32 %v1405, %v1505
      %v1526 = vmul.f32 %v1406, %v1505
      %v1527 = vmul.f32 %v1407, %v1505
      %v1528 = vmul.f32 %v1408, %v1505
      %v1529 = vmul.f32 %v1409, %v1505
      %v1530 = vmul.f32 %v1410, %v1505
      %v1531 = vmul.f32 %v1411, %v1505
      %v1532 = vmul.f32 %v1412, %v1505
      %v1533 = vmul.f32 %v1413, %v1505
      %v1534 = vmul.f32 %v1414, %v1505
      %v1535 = vmul.f32 %v1415, %v1505
      %v1536 = vmul.f32 %v1416, %v1505
      %v1537 = vmul.f32 %v1417, %v1505
      %v1538 = vmul.f32 %v1418, %v1505
      %v1539 = vmul.f32 %v1419, %v1505
      %v1540 = vmul.f32 %v1420, %v1505
      %v1541 = vmul.f32 %v1421, %v1505
      %v1542 = vmul.f32 %v1422, %v1505
      %v1543 = vmul.f32 %v1423, %v1505
      %v1544 = vmul.f32 %v1424, %v1505
      %v1545 = vmul.f32 %v1425, %v1505
      %v1546 = vmul.f32 %v1426, %v1505
      %v1547 = vmul.f32 %v1427, %v1505
      %v1548 = vmul.f32 %v1428, %v1505
      %v1549 = vmul.f32 %v1429, %v1505
      %v1550 = vmul.f32 %v1430, %v1505
      %v1551 = vmul.f32 %v1431, %v1505
      %v1552 = vmul.f32 %v1432, %v1505
      %v1553 = vmul.f32 %v1433, %v1505
      %v1602 = vrot.slane %v1506, 1
      %v1603 = vrot.slane %v1507, 1
      %v1604 = vsel %vm390, %v1602, %v1603
      %v1605 = vrot.slane %v1508, 1
      %v1606 = vsel %vm390, %v1603, %v1605
      %v1607 = vrot.slane %v1509, 1
      %v1608 = vrot.slane %v1510, 1
      %v1609 = vsel %vm390, %v1607, %v1608
      %v1610 = vrot.slane %v1511, 1
      %v1611 = vsel %vm390, %v1608, %v1610
      %v1612 = vrot.slane %v1512, 1
      %v1613 = vrot.slane %v1513, 1
      %v1614 = vsel %vm390, %v1612, %v1613
      %v1615 = vrot.slane %v1514, 1
      %v1616 = vsel %vm390, %v1613, %v1615
      %v1617 = vrot.slane %v1515, 1
      %v1618 = vrot.slane %v1516, 1
      %v1619 = vsel %vm390, %v1617, %v1618
      %v1620 = vrot.slane %v1517, 1
      %v1621 = vsel %vm390, %v1618, %v1620
      %v1622 = vrot.slane %v1518, 1
      %v1623 = vrot.slane %v1519, 1
      %v1624 = vsel %vm390, %v1622, %v1623
      %v1625 = vrot.slane %v1520, 1
      %v1626 = vsel %vm390, %v1623, %v1625
      %v1627 = vrot.slane %v1521, 1
      %v1628 = vrot.slane %v1522, 1
      %v1629 = vsel %vm390, %v1627, %v1628
      %v1630 = vrot.slane %v1523, 1
      %v1631 = vsel %vm390, %v1628, %v1630
      %v1632 = vrot.slane %v1524, 1
      %v1633 = vrot.slane %v1525, 1
      %v1634 = vsel %vm390, %v1632, %v1633
      %v1635 = vrot.slane %v1526, 1
      %v1636 = vsel %vm390, %v1633, %v1635
      %v1637 = vrot.slane %v1527, 1
      %v1638 = vrot.slane %v1528, 1
      %v1639 = vsel %vm390, %v1637, %v1638
      %v1640 = vrot.slane %v1529, 1
      %v1641 = vsel %vm390, %v1638, %v1640
      %v1642 = vrot.slane %v1530, 1
      %v1643 = vrot.slane %v1531, 1
      %v1644 = vsel %vm390, %v1642, %v1643
      %v1645 = vrot.slane %v1532, 1
      %v1646 = vsel %vm390, %v1643, %v1645
      %v1647 = vrot.slane %v1533, 1
      %v1648 = vrot.slane %v1534, 1
      %v1649 = vsel %vm390, %v1647, %v1648
      %v1650 = vrot.slane %v1535, 1
      %v1651 = vsel %vm390, %v1648, %v1650
      %v1652 = vrot.slane %v1536, 1
      %v1653 = vrot.slane %v1537, 1
      %v1654 = vsel %vm390, %v1652, %v1653
      %v1655 = vrot.slane %v1538, 1
      %v1656 = vsel %vm390, %v1653, %v1655
      %v1657 = vrot.slane %v1539, 1
      %v1658 = vrot.slane %v1540, 1
      %v1659 = vsel %vm390, %v1657, %v1658
      %v1660 = vrot.slane %v1541, 1
      %v1661 = vsel %vm390, %v1658, %v1660
      %v1662 = vrot.slane %v1542, 1
      %v1663 = vrot.slane %v1543, 1
      %v1664 = vsel %vm390, %v1662, %v1663
      %v1665 = vrot.slane %v1544, 1
      %v1666 = vsel %vm390, %v1663, %v1665
      %v1667 = vrot.slane %v1545, 1
      %v1668 = vrot.slane %v1546, 1
      %v1669 = vsel %vm390, %v1667, %v1668
      %v1670 = vrot.slane %v1547, 1
      %v1671 = vsel %vm390, %v1668, %v1670
      %v1672 = vrot.slane %v1548, 1
      %v1673 = vrot.slane %v1549, 1
      %v1674 = vsel %vm390, %v1672, %v1673
      %v1675 = vrot.slane %v1550, 1
      %v1676 = vsel %vm390, %v1673, %v1675
      %v1677 = vrot.slane %v1551, 1
      %v1678 = vrot.slane %v1552, 1
      %v1679 = vsel %vm390, %v1677, %v1678
      %v1680 = vrot.slane %v1553, 1
      %v1681 = vsel %vm390, %v1678, %v1680
      %v1714 = vadd.f32 %v1470, %v1604
      %v1715 = vadd.f32 %v1471, %v1606
      %v1716 = vadd.f32 %v1472, %v1609
      %v1717 = vadd.f32 %v1473, %v1611
      %v1718 = vadd.f32 %v1474, %v1614
      %v1719 = vadd.f32 %v1475, %v1616
      %v1720 = vadd.f32 %v1476, %v1619
      %v1721 = vadd.f32 %v1477, %v1621
      %v1722 = vadd.f32 %v1478, %v1624
      %v1723 = vadd.f32 %v1479, %v1626
      %v1724 = vadd.f32 %v1480, %v1629
      %v1725 = vadd.f32 %v1481, %v1631
      %v1726 = vadd.f32 %v1482, %v1634
      %v1727 = vadd.f32 %v1483, %v1636
      %v1728 = vadd.f32 %v1484, %v1639
      %v1729 = vadd.f32 %v1485, %v1641
      %v1730 = vadd.f32 %v1486, %v1644
      %v1731 = vadd.f32 %v1487, %v1646
      %v1732 = vadd.f32 %v1488, %v1649
      %v1733 = vadd.f32 %v1489, %v1651
      %v1734 = vadd.f32 %v1490, %v1654
      %v1735 = vadd.f32 %v1491, %v1656
      %v1736 = vadd.f32 %v1492, %v1659
      %v1737 = vadd.f32 %v1493, %v1661
      %v1738 = vadd.f32 %v1494, %v1664
      %v1739 = vadd.f32 %v1495, %v1666
      %v1740 = vadd.f32 %v1496, %v1669
      %v1741 = vadd.f32 %v1497, %v1671
      %v1742 = vadd.f32 %v1498, %v1674
      %v1743 = vadd.f32 %v1499, %v1676
      %v1744 = vadd.f32 %v1500, %v1679
      %v1745 = vadd.f32 %v1501, %v1681
      %v1746 = vlaneseq
      %v1747 = vshrl.u32 %v1746, 7
      %v1748 = vsub.s32 2, %v1747
      %v1749 = vrot.slane %v173, %v1748
      %v1750 = vmul.f32 %v1386, %v1749
      %v1751 = vmul.f32 %v1387, %v1749
      %v1752 = vmul.f32 %v1388, %v1749
      %v1753 = vmul.f32 %v1389, %v1749
      %v1754 = vmul.f32 %v1390, %v1749
      %v1755 = vmul.f32 %v1391, %v1749
      %v1756 = vmul.f32 %v1392, %v1749
      %v1757 = vmul.f32 %v1393, %v1749
      %v1758 = vmul.f32 %v1394, %v1749
      %v1759 = vmul.f32 %v1395, %v1749
      %v1760 = vmul.f32 %v1396, %v1749
      %v1761 = vmul.f32 %v1397, %v1749
      %v1762 = vmul.f32 %v1398, %v1749
      %v1763 = vmul.f32 %v1399, %v1749
      %v1764 = vmul.f32 %v1400, %v1749
      %v1765 = vmul.f32 %v1401, %v1749
      %v1766 = vmul.f32 %v1402, %v1749
      %v1767 = vmul.f32 %v1403, %v1749
      %v1768 = vmul.f32 %v1404, %v1749
      %v1769 = vmul.f32 %v1405, %v1749
      %v1770 = vmul.f32 %v1406, %v1749
      %v1771 = vmul.f32 %v1407, %v1749
      %v1772 = vmul.f32 %v1408, %v1749
      %v1773 = vmul.f32 %v1409, %v1749
      %v1774 = vmul.f32 %v1410, %v1749
      %v1775 = vmul.f32 %v1411, %v1749
      %v1776 = vmul.f32 %v1412, %v1749
      %v1777 = vmul.f32 %v1413, %v1749
      %v1778 = vmul.f32 %v1414, %v1749
      %v1779 = vmul.f32 %v1415, %v1749
      %v1780 = vmul.f32 %v1416, %v1749
      %v1781 = vmul.f32 %v1417, %v1749
      %v1782 = vmul.f32 %v1418, %v1749
      %v1783 = vmul.f32 %v1419, %v1749
      %v1784 = vmul.f32 %v1420, %v1749
      %v1785 = vmul.f32 %v1421, %v1749
      %v1786 = vmul.f32 %v1422, %v1749
      %v1787 = vmul.f32 %v1423, %v1749
      %v1788 = vmul.f32 %v1424, %v1749
      %v1789 = vmul.f32 %v1425, %v1749
      %v1790 = vmul.f32 %v1426, %v1749
      %v1791 = vmul.f32 %v1427, %v1749
      %v1792 = vmul.f32 %v1428, %v1749
      %v1793 = vmul.f32 %v1429, %v1749
      %v1794 = vmul.f32 %v1430, %v1749
      %v1795 = vmul.f32 %v1431, %v1749
      %v1796 = vmul.f32 %v1432, %v1749
      %v1797 = vmul.f32 %v1433, %v1749
      %v1846 = vrot.slane %v1750, 2
      %v1847 = vrot.slane %v1751, 2
      %v1848 = vsel %vm635, %v1846, %v1847
      %v1849 = vrot.slane %v1752, 2
      %v1850 = vsel %vm635, %v1847, %v1849
      %v1851 = vrot.slane %v1753, 2
      %v1852 = vrot.slane %v1754, 2
      %v1853 = vsel %vm635, %v1851, %v1852
      %v1854 = vrot.slane %v1755, 2
      %v1855 = vsel %vm635, %v1852, %v1854
      %v1856 = vrot.slane %v1756, 2
      %v1857 = vrot.slane %v1757, 2
      %v1858 = vsel %vm635, %v1856, %v1857
      %v1859 = vrot.slane %v1758, 2
      %v1860 = vsel %vm635, %v1857, %v1859
      %v1861 = vrot.slane %v1759, 2
      %v1862 = vrot.slane %v1760, 2
      %v1863 = vsel %vm635, %v1861, %v1862
      %v1864 = vrot.slane %v1761, 2
      %v1865 = vsel %vm635, %v1862, %v1864
      %v1866 = vrot.slane %v1762, 2
      %v1867 = vrot.slane %v1763, 2
      %v1868 = vsel %vm635, %v1866, %v1867
      %v1869 = vrot.slane %v1764, 2
      %v1870 = vsel %vm635, %v1867, %v1869
      %v1871 = vrot.slane %v1765, 2
      %v1872 = vrot.slane %v1766, 2
      %v1873 = vsel %vm635, %v1871, %v1872
      %v1874 = vrot.slane %v1767, 2
      %v1875 = vsel %vm635, %v1872, %v1874
      %v1876 = vrot.slane %v1768, 2
      %v1877 = vrot.slane %v1769, 2
      %v1878 = vsel %vm635, %v1876, %v1877
      %v1879 = vrot.slane %v1770, 2
      %v1880 = vsel %vm635, %v1877, %v1879
      %v1881 = vrot.slane %v1771, 2
      %v1882 = vrot.slane %v1772, 2
      %v1883 = vsel %vm635, %v1881, %v1882
      %v1884 = vrot.slane %v1773, 2
      %v1885 = vsel %vm635, %v1882, %v1884
      %v1886 = vrot.slane %v1774, 2
      %v1887 = vrot.slane %v1775, 2
      %v1888 = vsel %vm635, %v1886, %v1887
      %v1889 = vrot.slane %v1776, 2
      %v1890 = vsel %vm635, %v1887, %v1889
      %v1891 = vrot.slane %v1777, 2
      %v1892 = vrot.slane %v1778, 2
      %v1893 = vsel %vm635, %v1891, %v1892
      %v1894 = vrot.slane %v1779, 2
      %v1895 = vsel %vm635, %v1892, %v1894
      %v1896 = vrot.slane %v1780, 2
      %v1897 = vrot.slane %v1781, 2
      %v1898 = vsel %vm635, %v1896, %v1897
      %v1899 = vrot.slane %v1782, 2
      %v1900 = vsel %vm635, %v1897, %v1899
      %v1901 = vrot.slane %v1783, 2
      %v1902 = vrot.slane %v1784, 2
      %v1903 = vsel %vm635, %v1901, %v1902
      %v1904 = vrot.slane %v1785, 2
      %v1905 = vsel %vm635, %v1902, %v1904
      %v1906 = vrot.slane %v1786, 2
      %v1907 = vrot.slane %v1787, 2
      %v1908 = vsel %vm635, %v1906, %v1907
      %v1909 = vrot.slane %v1788, 2
      %v1910 = vsel %vm635, %v1907, %v1909
      %v1911 = vrot.slane %v1789, 2
      %v1912 = vrot.slane %v1790, 2
      %v1913 = vsel %vm635, %v1911, %v1912
      %v1914 = vrot.slane %v1791, 2
      %v1915 = vsel %vm635, %v1912, %v1914
      %v1916 = vrot.slane %v1792, 2
      %v1917 = vrot.slane %v1793, 2
      %v1918 = vsel %vm635, %v1916, %v1917
      %v1919 = vrot.slane %v1794, 2
      %v1920 = vsel %vm635, %v1917, %v1919
      %v1921 = vrot.slane %v1795, 2
      %v1922 = vrot.slane %v1796, 2
      %v1923 = vsel %vm635, %v1921, %v1922
      %v1924 = vrot.slane %v1797, 2
      %v1925 = vsel %vm635, %v1922, %v1924
      %v1958 = vadd.f32 %v1714, %v1848
      %v1959 = vadd.f32 %v1715, %v1850
      %v1960 = vadd.f32 %v1716, %v1853
      %v1961 = vadd.f32 %v1717, %v1855
      %v1962 = vadd.f32 %v1718, %v1858
      %v1963 = vadd.f32 %v1719, %v1860
      %v1964 = vadd.f32 %v1720, %v1863
      %v1965 = vadd.f32 %v1721, %v1865
      %v1966 = vadd.f32 %v1722, %v1868
      %v1967 = vadd.f32 %v1723, %v1870
      %v1968 = vadd.f32 %v1724, %v1873
      %v1969 = vadd.f32 %v1725, %v1875
      %v1970 = vadd.f32 %v1726, %v1878
      %v1971 = vadd.f32 %v1727, %v1880
      %v1972 = vadd.f32 %v1728, %v1883
      %v1973 = vadd.f32 %v1729, %v1885
      %v1974 = vadd.f32 %v1730, %v1888
      %v1975 = vadd.f32 %v1731, %v1890
      %v1976 = vadd.f32 %v1732, %v1893
      %v1977 = vadd.f32 %v1733, %v1895
      %v1978 = vadd.f32 %v1734, %v1898
      %v1979 = vadd.f32 %v1735, %v1900
      %v1980 = vadd.f32 %v1736, %v1903
      %v1981 = vadd.f32 %v1737, %v1905
      %v1982 = vadd.f32 %v1738, %v1908
      %v1983 = vadd.f32 %v1739, %v1910
      %v1984 = vadd.f32 %v1740, %v1913
      %v1985 = vadd.f32 %v1741, %v1915
      %v1986 = vadd.f32 %v1742, %v1918
      %v1987 = vadd.f32 %v1743, %v1920
      %v1988 = vadd.f32 %v1744, %v1923
      %v1989 = vadd.f32 %v1745, %v1925
      %v1990 = vld [vmem:[%s2] sm:$0x1]
      %v1992 = vlaneseq
      %v1993 = vshrl.u32 %v1992, 7
      %v1994 = vsub.s32 0, %v1993
      %v1995 = vrot.slane %v1990, %v1994
      %v1997 = vadd.f32 %v1958, %v1995
      %v1998 = vadd.f32 %v1959, %v1995
      %v1999 = vadd.f32 %v1960, %v1995
      %v2000 = vadd.f32 %v1961, %v1995
      %v2001 = vadd.f32 %v1962, %v1995
      %v2002 = vadd.f32 %v1963, %v1995
      %v2003 = vadd.f32 %v1964, %v1995
      %v2004 = vadd.f32 %v1965, %v1995
      %v2005 = vadd.f32 %v1966, %v1995
      %v2006 = vadd.f32 %v1967, %v1995
      %v2007 = vadd.f32 %v1968, %v1995
      %v2008 = vadd.f32 %v1969, %v1995
      %v2009 = vadd.f32 %v1970, %v1995
      %v2010 = vadd.f32 %v1971, %v1995
      %v2011 = vadd.f32 %v1972, %v1995
      %v2012 = vadd.f32 %v1973, %v1995
      %v2013 = vadd.f32 %v1974, %v1995
      %v2014 = vadd.f32 %v1975, %v1995
      %v2015 = vadd.f32 %v1976, %v1995
      %v2016 = vadd.f32 %v1977, %v1995
      %v2017 = vadd.f32 %v1978, %v1995
      %v2018 = vadd.f32 %v1979, %v1995
      %v2019 = vadd.f32 %v1980, %v1995
      %v2020 = vadd.f32 %v1981, %v1995
      %v2021 = vadd.f32 %v1982, %v1995
      %v2022 = vadd.f32 %v1983, %v1995
      %v2023 = vadd.f32 %v1984, %v1995
      %v2024 = vadd.f32 %v1985, %v1995
      %v2025 = vadd.f32 %v1986, %v1995
      %v2026 = vadd.f32 %v1987, %v1995
      %v2027 = vadd.f32 %v1988, %v1995
      %v2028 = vadd.f32 %v1989, %v1995
      %v2029 = vmul.f32 %v1997, 0.5
      %v2030 = vmul.f32 %v1998, 0.5
      %v2031 = vmul.f32 %v1999, 0.5
      %v2032 = vmul.f32 %v2000, 0.5
      %v2033 = vmul.f32 %v2001, 0.5
      %v2034 = vmul.f32 %v2002, 0.5
      %v2035 = vmul.f32 %v2003, 0.5
      %v2036 = vmul.f32 %v2004, 0.5
      %v2037 = vmul.f32 %v2005, 0.5
      %v2038 = vmul.f32 %v2006, 0.5
      %v2039 = vmul.f32 %v2007, 0.5
      %v2040 = vmul.f32 %v2008, 0.5
      %v2041 = vmul.f32 %v2009, 0.5
      %v2042 = vmul.f32 %v2010, 0.5
      %v2043 = vmul.f32 %v2011, 0.5
      %v2044 = vmul.f32 %v2012, 0.5
      %v2045 = vmul.f32 %v2013, 0.5
      %v2046 = vmul.f32 %v2014, 0.5
      %v2047 = vmul.f32 %v2015, 0.5
      %v2048 = vmul.f32 %v2016, 0.5
      %v2049 = vmul.f32 %v2017, 0.5
      %v2050 = vmul.f32 %v2018, 0.5
      %v2051 = vmul.f32 %v2019, 0.5
      %v2052 = vmul.f32 %v2020, 0.5
      %v2053 = vmul.f32 %v2021, 0.5
      %v2054 = vmul.f32 %v2022, 0.5
      %v2055 = vmul.f32 %v2023, 0.5
      %v2056 = vmul.f32 %v2024, 0.5
      %v2057 = vmul.f32 %v2025, 0.5
      %v2058 = vmul.f32 %v2026, 0.5
      %v2059 = vmul.f32 %v2027, 0.5
      %v2060 = vmul.f32 %v2028, 0.5
      %v2061 = vmul.f32 %v1997, 0.70710677
      %v2062 = vmul.f32 %v1998, 0.70710677
      %v2063 = vmul.f32 %v1999, 0.70710677
      %v2064 = vmul.f32 %v2000, 0.70710677
      %v2065 = vmul.f32 %v2001, 0.70710677
      %v2066 = vmul.f32 %v2002, 0.70710677
      %v2067 = vmul.f32 %v2003, 0.70710677
      %v2068 = vmul.f32 %v2004, 0.70710677
      %v2069 = vmul.f32 %v2005, 0.70710677
      %v2070 = vmul.f32 %v2006, 0.70710677
      %v2071 = vmul.f32 %v2007, 0.70710677
      %v2072 = vmul.f32 %v2008, 0.70710677
      %v2073 = vmul.f32 %v2009, 0.70710677
      %v2074 = vmul.f32 %v2010, 0.70710677
      %v2075 = vmul.f32 %v2011, 0.70710677
      %v2076 = vmul.f32 %v2012, 0.70710677
      %v2077 = vmul.f32 %v2013, 0.70710677
      %v2078 = vmul.f32 %v2014, 0.70710677
      %v2079 = vmul.f32 %v2015, 0.70710677
      %v2080 = vmul.f32 %v2016, 0.70710677
      %v2081 = vmul.f32 %v2017, 0.70710677
      %v2082 = vmul.f32 %v2018, 0.70710677
      %v2083 = vmul.f32 %v2019, 0.70710677
      %v2084 = vmul.f32 %v2020, 0.70710677
      %v2085 = vmul.f32 %v2021, 0.70710677
      %v2086 = vmul.f32 %v2022, 0.70710677
      %v2087 = vmul.f32 %v2023, 0.70710677
      %v2088 = vmul.f32 %v2024, 0.70710677
      %v2089 = vmul.f32 %v2025, 0.70710677
      %v2090 = vmul.f32 %v2026, 0.70710677
      %v2091 = vmul.f32 %v2027, 0.70710677
      %v2092 = vmul.f32 %v2028, 0.70710677
      %v2093 = verf.f32.pop %v2061
      %v2094 = verf.f32.pop %v2062
      %v2095 = verf.f32.pop %v2063
      %v2096 = verf.f32.pop %v2064
      %v2097 = verf.f32.pop %v2065
      %v2098 = verf.f32.pop %v2066
      %v2099 = verf.f32.pop %v2067
      %v2100 = verf.f32.pop %v2068
      %v2101 = verf.f32.pop %v2069
      %v2102 = verf.f32.pop %v2070
      %v2103 = verf.f32.pop %v2071
      %v2104 = verf.f32.pop %v2072
      %v2105 = verf.f32.pop %v2073
      %v2106 = verf.f32.pop %v2074
      %v2107 = verf.f32.pop %v2075
      %v2108 = verf.f32.pop %v2076
      %v2109 = verf.f32.pop %v2077
      %v2110 = verf.f32.pop %v2078
      %v2111 = verf.f32.pop %v2079
      %v2112 = verf.f32.pop %v2080
      %v2113 = verf.f32.pop %v2081
      %v2114 = verf.f32.pop %v2082
      %v2115 = verf.f32.pop %v2083
      %v2116 = verf.f32.pop %v2084
      %v2117 = verf.f32.pop %v2085
      %v2118 = verf.f32.pop %v2086
      %v2119 = verf.f32.pop %v2087
      %v2120 = verf.f32.pop %v2088
      %v2121 = verf.f32.pop %v2089
      %v2122 = verf.f32.pop %v2090
      %v2123 = verf.f32.pop %v2091
      %v2124 = verf.f32.pop %v2092
      %v2125 = vadd.f32 %v2093, 1.0
      %v2126 = vadd.f32 %v2094, 1.0
      %v2127 = vadd.f32 %v2095, 1.0
      %v2128 = vadd.f32 %v2096, 1.0
      %v2129 = vadd.f32 %v2097, 1.0
      %v2130 = vadd.f32 %v2098, 1.0
      %v2131 = vadd.f32 %v2099, 1.0
      %v2132 = vadd.f32 %v2100, 1.0
      %v2133 = vadd.f32 %v2101, 1.0
      %v2134 = vadd.f32 %v2102, 1.0
      %v2135 = vadd.f32 %v2103, 1.0
      %v2136 = vadd.f32 %v2104, 1.0
      %v2137 = vadd.f32 %v2105, 1.0
      %v2138 = vadd.f32 %v2106, 1.0
      %v2139 = vadd.f32 %v2107, 1.0
      %v2140 = vadd.f32 %v2108, 1.0
      %v2141 = vadd.f32 %v2109, 1.0
      %v2142 = vadd.f32 %v2110, 1.0
      %v2143 = vadd.f32 %v2111, 1.0
      %v2144 = vadd.f32 %v2112, 1.0
      %v2145 = vadd.f32 %v2113, 1.0
      %v2146 = vadd.f32 %v2114, 1.0
      %v2147 = vadd.f32 %v2115, 1.0
      %v2148 = vadd.f32 %v2116, 1.0
      %v2149 = vadd.f32 %v2117, 1.0
      %v2150 = vadd.f32 %v2118, 1.0
      %v2151 = vadd.f32 %v2119, 1.0
      %v2152 = vadd.f32 %v2120, 1.0
      %v2153 = vadd.f32 %v2121, 1.0
      %v2154 = vadd.f32 %v2122, 1.0
      %v2155 = vadd.f32 %v2123, 1.0
      %v2156 = vadd.f32 %v2124, 1.0
      %v2157 = vmul.f32 %v2029, %v2125
      %v2158 = vmul.f32 %v2030, %v2126
      %v2159 = vmul.f32 %v2031, %v2127
      %v2160 = vmul.f32 %v2032, %v2128
      %v2161 = vmul.f32 %v2033, %v2129
      %v2162 = vmul.f32 %v2034, %v2130
      %v2163 = vmul.f32 %v2035, %v2131
      %v2164 = vmul.f32 %v2036, %v2132
      %v2165 = vmul.f32 %v2037, %v2133
      %v2166 = vmul.f32 %v2038, %v2134
      %v2167 = vmul.f32 %v2039, %v2135
      %v2168 = vmul.f32 %v2040, %v2136
      %v2169 = vmul.f32 %v2041, %v2137
      %v2170 = vmul.f32 %v2042, %v2138
      %v2171 = vmul.f32 %v2043, %v2139
      %v2172 = vmul.f32 %v2044, %v2140
      %v2173 = vmul.f32 %v2045, %v2141
      %v2174 = vmul.f32 %v2046, %v2142
      %v2175 = vmul.f32 %v2047, %v2143
      %v2176 = vmul.f32 %v2048, %v2144
      %v2177 = vmul.f32 %v2049, %v2145
      %v2178 = vmul.f32 %v2050, %v2146
      %v2179 = vmul.f32 %v2051, %v2147
      %v2180 = vmul.f32 %v2052, %v2148
      %v2181 = vmul.f32 %v2053, %v2149
      %v2182 = vmul.f32 %v2054, %v2150
      %v2183 = vmul.f32 %v2055, %v2151
      %v2184 = vmul.f32 %v2056, %v2152
      %v2185 = vmul.f32 %v2057, %v2153
      %v2186 = vmul.f32 %v2058, %v2154
      %v2187 = vmul.f32 %v2059, %v2155
      %v2188 = vmul.f32 %v2060, %v2156
      %vm2189 = vcmask 523264
      %2190 = vst.msk [vmem:[%s170] sm:$0xff] %vm2189, %v2157
      %2191 = vst.msk [vmem:[%s170 + $0x8] sm:$0xff] %vm2189, %v2158
      %2192 = vst.msk [vmem:[%s170 + $0x10] sm:$0xff] %vm2189, %v2159
      %2193 = vst.msk [vmem:[%s170 + $0x18] sm:$0xff] %vm2189, %v2160
      %2194 = vst.msk [vmem:[%s170 + $0x20] sm:$0xff] %vm2189, %v2161
      %2195 = vst.msk [vmem:[%s170 + $0x28] sm:$0xff] %vm2189, %v2162
      %2196 = vst.msk [vmem:[%s170 + $0x30] sm:$0xff] %vm2189, %v2163
      %2197 = vst.msk [vmem:[%s170 + $0x38] sm:$0xff] %vm2189, %v2164
      %2198 = vst.msk [vmem:[%s170 + $0x40] sm:$0xff] %vm2189, %v2165
      %2199 = vst.msk [vmem:[%s170 + $0x48] sm:$0xff] %vm2189, %v2166
      %2200 = vst.msk [vmem:[%s170 + $0x50] sm:$0xff] %vm2189, %v2167
      %2201 = vst.msk [vmem:[%s170 + $0x58] sm:$0xff] %vm2189, %v2168
      %2202 = vst.msk [vmem:[%s170 + $0x60] sm:$0xff] %vm2189, %v2169
      %2203 = vst.msk [vmem:[%s170 + $0x68] sm:$0xff] %vm2189, %v2170
      %2204 = vst.msk [vmem:[%s170 + $0x70] sm:$0xff] %vm2189, %v2171
      %2205 = vst.msk [vmem:[%s170 + $0x78] sm:$0xff] %vm2189, %v2172
      %2206 = vst.msk [vmem:[%s170 + $0x80] sm:$0xff] %vm2189, %v2173
      %2207 = vst.msk [vmem:[%s170 + $0x88] sm:$0xff] %vm2189, %v2174
      %2208 = vst.msk [vmem:[%s170 + $0x90] sm:$0xff] %vm2189, %v2175
      %2209 = vst.msk [vmem:[%s170 + $0x98] sm:$0xff] %vm2189, %v2176
      %2210 = vst.msk [vmem:[%s170 + $0xa0] sm:$0xff] %vm2189, %v2177
      %2211 = vst.msk [vmem:[%s170 + $0xa8] sm:$0xff] %vm2189, %v2178
      %2212 = vst.msk [vmem:[%s170 + $0xb0] sm:$0xff] %vm2189, %v2179
      %2213 = vst.msk [vmem:[%s170 + $0xb8] sm:$0xff] %vm2189, %v2180
      %2214 = vst.msk [vmem:[%s170 + $0xc0] sm:$0xff] %vm2189, %v2181
      %2215 = vst.msk [vmem:[%s170 + $0xc8] sm:$0xff] %vm2189, %v2182
      %2216 = vst.msk [vmem:[%s170 + $0xd0] sm:$0xff] %vm2189, %v2183
      %2217 = vst.msk [vmem:[%s170 + $0xd8] sm:$0xff] %vm2189, %v2184
      %2218 = vst.msk [vmem:[%s170 + $0xe0] sm:$0xff] %vm2189, %v2185
      %2219 = vst.msk [vmem:[%s170 + $0xe8] sm:$0xff] %vm2189, %v2186
      %2220 = vst.msk [vmem:[%s170 + $0xf0] sm:$0xff] %vm2189, %v2187
      %2221 = vst.msk [vmem:[%s170 + $0xf8] sm:$0xff] %vm2189, %v2188
      %p2222 = scmp.lt.s32.totalorder %s14, 1
      %s2223 = scalar_select %p2222, %s14, 1
      %s2224 = smul.addr %s2223, 32
      %s2225 = smul.addr %s2224, 8
      %s2226 = scalar_lea.vmem %s3, %s2225
      // Predicated region
      $region33: #{adaptive_channel_attention_forward.4} parent=31 // pred_check
        %p2227 = pneg %p100
      $region34: #{adaptive_channel_attention_forward.4} parent=31 // pred_check_branch
        %2229 = sbr.rel (%p2227) target = $region36
      $region35: #{adaptive_channel_attention_forward.4} parent=31 // pred_region
        _
      $region36: #{adaptive_channel_attention_forward.4} parent=31 // pred_fallthru
        _
    $region32: #{adaptive_channel_attention_forward.4} parent=5 // pred_fallthru
      _
    %p2230 = scmp.le.s32.totalorder 2, %s9
    // Predicated region
    $region37: #{adaptive_channel_attention_forward.4} parent=5 // pred_check
      %p2231 = pneg %p2230
    $region38: #{adaptive_channel_attention_forward.4} parent=5 // pred_check_branch
      %2233 = sbr.rel (%p2231) target = $region40
    $region39: #{adaptive_channel_attention_forward.4} parent=5 // pred_region
      %s2234 = ssub.s32 %s9, 2
      // Predicated region
      $region41: #{adaptive_channel_attention_forward.4} parent=39 // pred_check
        %p2235 = pneg %p106
      $region42: #{adaptive_channel_attention_forward.4} parent=39 // pred_check_branch
        %2237 = sbr.rel (%p2235) target = $region44
      $region43: #{adaptive_channel_attention_forward.4} parent=39 // pred_region
        %p2238 = scmp.lt.s32.totalorder %s15, 1
        %s2239 = scalar_select %p2238, %s15, 1
        %s2240 = smul.addr %s2239, 32
        %s2241 = smul.addr %s2240, 8
        %s2242 = scalar_lea.vmem %s3, %s2241
      $region44: #{adaptive_channel_attention_forward.4} parent=39 // pred_fallthru
        _
    $region40: #{adaptive_channel_attention_forward.4} parent=5 // pred_fallthru
      _
  $region6: #{adaptive_channel_attention_forward.4} parent=0 // loop_footer
    %s13 = sadd.s32 1, %s9
  $region7: #{adaptive_channel_attention_forward.4} parent=0 // loop_footer_branch
    %8 = sbr.rel target = $region3
  $region8: #{adaptive_channel_attention_forward.4} parent=0 // loop_exit
    _

</llo_original>
